<compile_context>
chip_gen: v5e
topology: v5e:2x2
jax: 0.10.0
libtpu: 0.0.40
codegen_flags: <defaults>
</compile_context>

<pallas_src>
import functools

import jax
import jax.numpy as jnp
from jax import lax
from jax.experimental import pallas as pl
from jax.experimental.pallas import tpu as pltpu

MXU_DTYPE = jnp.bfloat16          # matmul operand dtype (f32 accumulation)
_LANE = 128                       # TPU lane width: channels padded to multiple
_EPS = 1e-5                       # nn.BatchNorm2d default eps
_VMEM_LIMIT = 32 * 1024 * 1024    # safe on v5e/v6e (128 MiB) and v7x (64 MiB)


def _round_up(x, m):
    return ((x + m - 1) // m) * m


def _pick_band_height(h, w, max_rows=512):
    """Largest divisor of H whose band has at most ~max_rows output rows."""
    th = 1
    for cand in range(1, h + 1):
        if h % cand == 0 and cand * w <= max_rows:
            th = cand
    return th


# --------------------------------------------------------------------------
# Kernel 1: conv (9-tap MXU accumulation) + per-band BN statistics.
# --------------------------------------------------------------------------
def _conv_stats_kernel(band_ref, w_ref, conv_ref, stat_ref, *, th, width):
    coutp = w_ref.shape[2]

    # Accumulate the 9 taps directly into the VMEM-resident output tile.
    for t in range(9):
        dy, dx = t // 3, t % 3
        tap = band_ref[0, dy:dy + th, dx:dx + width, :].reshape(th * width, -1)
        part = jnp.dot(tap, w_ref[t], preferred_element_type=jnp.float32)
        if t == 0:
            conv_ref[0] = part
        else:
            conv_ref[0] += part

    acc = conv_ref[0]
    ssum = jnp.sum(acc, axis=0, keepdims=True)           # (1, Coutp)
    ssq = jnp.sum(acc * acc, axis=0, keepdims=True)      # (1, Coutp)
    stat_ref[0] = jnp.concatenate(
        [ssum, ssq, jnp.zeros((6, coutp), jnp.float32)], axis=0)


def _conv_pass(bands, w9, th, width, cp):
    nb = bands.shape[0]
    m_tile = th * width
    cinp, coutp = w9.shape[1], w9.shape[2]
    kernel = functools.partial(_conv_stats_kernel, th=th, width=width)
    return pl.pallas_call(
        kernel,
        grid=(nb,),
        in_specs=[
            pl.BlockSpec((1, th + 2, width + 2, cinp), lambda i: (i, 0, 0, 0)),
            pl.BlockSpec((9, cinp, coutp), lambda i: (0, 0, 0)),  # resident W
        ],
        out_specs=[
            pl.BlockSpec((1, m_tile, coutp), lambda i: (i, 0, 0)),
            pl.BlockSpec((1, 8, coutp), lambda i: (i, 0, 0)),
        ],
        out_shape=[
            jax.ShapeDtypeStruct((nb, m_tile, coutp), jnp.float32),
            jax.ShapeDtypeStruct((nb, 8, coutp), jnp.float32),
        ],
        compiler_params=pltpu.CompilerParams(
            dimension_semantics=("parallel",),
            vmem_limit_bytes=_VMEM_LIMIT),
    )(bands, w9)


# --------------------------------------------------------------------------
# Kernel 2: folded BatchNorm [+ residual] + ReLU [+ dropout] epilogue.
# --------------------------------------------------------------------------
def _bn_epilogue_kernel(conv_ref, scale_ref, shift_ref, *rest,
                        add_residual, apply_dropout, drop_p):
    refs = list(rest)
    res_ref = refs.pop(0) if add_residual else None
    rand_ref = refs.pop(0) if apply_dropout else None
    (out_ref,) = refs

    y = conv_ref[0] * scale_ref[...] + shift_ref[...]     # BN as scale/shift
    if add_residual:
        y = y + res_ref[0]                                # identity shortcut
    y = jnp.maximum(y, 0.0)                               # ReLU
    if apply_dropout:                                     # inverted dropout
        keep = rand_ref[0] >= jnp.float32(drop_p)
        y = jnp.where(keep, y * jnp.float32(1.0 / (1.0 - drop_p)), 0.0)
    out_ref[0] = y.astype(out_ref.dtype)


def _epilogue_pass(conv, scale, shift, residual=None, rand=None, *,
                   drop_p=0.2, out_dtype=jnp.float32):
    nb, m_tile, cp = conv.shape
    add_residual = residual is not None
    apply_dropout = rand is not None
    kernel = functools.partial(_bn_epilogue_kernel,
                               add_residual=add_residual,
                               apply_dropout=apply_dropout,
                               drop_p=drop_p)
    tile = pl.BlockSpec((1, m_tile, cp), lambda i: (i, 0, 0))
    vec = pl.BlockSpec((1, cp), lambda i: (0, 0))          # resident over grid
    in_specs = [tile, vec, vec]
    args = [conv, scale, shift]
    if add_residual:
        in_specs.append(tile)
        args.append(residual)
    if apply_dropout:
        in_specs.append(tile)
        args.append(rand)
    return pl.pallas_call(
        kernel,
        grid=(nb,),
        in_specs=in_specs,
        out_specs=tile,
        out_shape=jax.ShapeDtypeStruct((nb, m_tile, cp), out_dtype),
        compiler_params=pltpu.CompilerParams(
            dimension_semantics=("parallel",),
            vmem_limit_bytes=_VMEM_LIMIT),
    )(*args)


# --------------------------------------------------------------------------
# Pure-JAX glue (layout plumbing only).
# --------------------------------------------------------------------------
def _make_bands(x_img, th):
    """(N, H, W, Cp) -> (N*H//th, th+2, W+2, Cp) row bands with 1-row halo."""
    n, h, w, cp = x_img.shape
    xp = jnp.pad(x_img, ((0, 0), (1, 1), (1, 1), (0, 0)))
    nbper = h // th
    bands = jnp.stack([xp[:, b * th: b * th + th + 2] for b in range(nbper)],
                      axis=1)
    return bands.reshape(n * nbper, th + 2, w + 2, cp)


def _pack_weight(w, cp):
    """(Cout, Cin, 3, 3) -> (9, Cp, Cp) tap-major, channel-padded, MXU dtype."""
    cout, cin, kh, kw = w.shape
    wt = jnp.transpose(w, (2, 3, 1, 0)).reshape(kh * kw, cin, cout)
    wt = jnp.pad(wt, ((0, 0), (0, cp - cin), (0, cp - cout)))
    return wt.astype(MXU_DTYPE)


def _bn_scale_shift(partial_stats, gamma, beta, cp, m):
    """Fold global (training-mode) BN stats into per-channel scale/shift."""
    stats = jnp.sum(partial_stats, axis=0)                 # (8, Cp)
    mean = stats[0] / m
    var = stats[1] / m - mean * mean                       # biased variance
    gamma_p = jnp.pad(gamma.astype(jnp.float32), (0, cp - gamma.shape[0]))
    beta_p = jnp.pad(beta.astype(jnp.float32), (0, cp - beta.shape[0]))
    scale = gamma_p * lax.rsqrt(var + _EPS)
    shift = beta_p - mean * scale
    return scale.reshape(1, cp), shift.reshape(1, cp)


def basic_block_forward(x_nchw, params, dropout_key, drop_p=0.2):
    n, c, h, w = x_nchw.shape
    cout = params["w1"].shape[0]
    assert c == cout, "identity shortcut requires in_channel == out_channel"
    cp = _round_up(max(c, cout), _LANE)
    th = _pick_band_height(h, w)
    nbper = h // th
    nb = n * nbper
    m = n * h * w

    x = jnp.transpose(x_nchw, (0, 2, 3, 1)).astype(jnp.float32)   # NHWC
    x_p = jnp.pad(x, ((0, 0), (0, 0), (0, 0), (0, cp - c)))       # lane-pad C

    # ---- conv1 -> bn1 -> relu ----
    bands1 = _make_bands(x_p.astype(MXU_DTYPE), th)
    conv1, stats1 = _conv_pass(bands1, _pack_weight(params["w1"], cp), th, w, cp)
    scale1, shift1 = _bn_scale_shift(stats1, params["gamma1"], params["beta1"], cp, m)
    h1 = _epilogue_pass(conv1, scale1, shift1, out_dtype=MXU_DTYPE)

    # ---- conv2 -> bn2 -> (+ identity) -> relu -> dropout ----
    h1_img = h1.reshape(n, nbper, th, w, cp).reshape(n, h, w, cp)
    bands2 = _make_bands(h1_img, th)
    conv2, stats2 = _conv_pass(bands2, _pack_weight(params["w2"], cp), th, w, cp)
    scale2, shift2 = _bn_scale_shift(stats2, params["gamma2"], params["beta2"], cp, m)

    res = x_p.reshape(n, nbper, th, w, cp).reshape(nb, th * w, cp)
    rand = jax.random.uniform(dropout_key, (nb, th * w, cp), jnp.float32)
    out = _epilogue_pass(conv2, scale2, shift2, residual=res, rand=rand,
                         drop_p=drop_p, out_dtype=jnp.float32)

    out = out.reshape(n, h, w, cp)[:, :, :, :cout]
    return jnp.transpose(out, (0, 3, 1, 2))                       # back to NCHW


def _reference_forward_nodrop(x_nchw, params):
    """Pure-JAX reference of the block with dropout disabled (for checking)."""
    def conv(x, wt):
        return lax.conv_general_dilated(
            x, wt, (1, 1), "SAME", dimension_numbers=("NCHW", "OIHW", "NCHW"))

    def bn(x, g, b):
        mean = jnp.mean(x, axis=(0, 2, 3), keepdims=True)
        var = jnp.mean((x - mean) ** 2, axis=(0, 2, 3), keepdims=True)
        return ((x - mean) * lax.rsqrt(var + _EPS) * g.reshape(1, -1, 1, 1)
                + b.reshape(1, -1, 1, 1))

    h1 = jax.nn.relu(bn(conv(x_nchw, params["w1"]), params["gamma1"], params["beta1"]))
    o = bn(conv(h1, params["w2"]), params["gamma2"], params["beta2"]) + x_nchw
    return jax.nn.relu(o)


if __name__ == "__main__":
    key = jax.random.PRNGKey(0)
    kx, kw1, kw2, kdrop = jax.random.split(key, 4)

    in_channel = out_channel = 4          # identity shortcut => C_in == C_out
    N, H, W = 2, 16, 16

    x = jax.random.normal(kx, (N, in_channel, H, W), jnp.float32)
    params = {
        "w1": jax.random.normal(kw1, (out_channel, in_channel, 3, 3), jnp.float32)
              / jnp.sqrt(9.0 * in_channel),
        "gamma1": jnp.ones((out_channel,), jnp.float32),
        "beta1": jnp.zeros((out_channel,), jnp.float32),
        "w2": jax.random.normal(kw2, (out_channel, out_channel, 3, 3), jnp.float32)
              / jnp.sqrt(9.0 * out_channel),
        "gamma2": jnp.ones((out_channel,), jnp.float32),
        "beta2": jnp.zeros((out_channel,), jnp.float32),
    }

    # Numerics check against a pure-JAX reference (dropout disabled; bf16 MXU
    # operands => generous tolerance).
    got = basic_block_forward(x, params, kdrop, drop_p=0.0)
    want = _reference_forward_nodrop(x, params)
    jax.block_until_ready(got)
    assert got.shape == (N, out_channel, H, W)
    assert bool(jnp.allclose(got, want, atol=1e-1, rtol=1e-1)), \
        float(jnp.max(jnp.abs(got - want)))

    # Real forward: training-mode dropout p=0.2.
    out = basic_block_forward(x, params, kdrop, drop_p=0.2)
    jax.block_until_ready(out)
    assert out.shape == (N, out_channel, H, W)
    assert bool(jnp.all(out >= 0.0))      # post-ReLU/dropout sanity check
    print("KERNEL_OK")
</pallas_src>

<mosaic_0001>
module attributes {stable_mosaic.version = 11 : i64} {
  func.func @_conv_stats_kernel(%arg0: i32, %arg1: memref<1x18x18x128xbf16, #tpu.memory_space<vmem>>, %arg2: memref<9x128x128xbf16, #tpu.memory_space<vmem>>, %arg3: memref<1x256x128xf32, #tpu.memory_space<vmem>>, %arg4: memref<1x8x128xf32, #tpu.memory_space<vmem>>) attributes {dimension_semantics = [#tpu.dimension_semantics<parallel>], iteration_bounds = array<i64: 2>, scalar_prefetch = 0 : i64, scratch_operands = 0 : i64, tpu.core_type = #tpu.core_type<tc>, window_params = [{transform_indices = @transform_0, window_bounds = array<i64: 1, 18, 18, 128>}, {pipeline_mode = #tpu.pipeline_mode<synchronous>, transform_indices = @transform_1, window_bounds = array<i64: 9, 128, 128>}, {transform_indices = @transform_2, window_bounds = array<i64: 1, 256, 128>}, {transform_indices = @transform_3, window_bounds = array<i64: 1, 8, 128>}]} {
    %c0 = arith.constant 0 : index
    %c0_0 = arith.constant 0 : index
    %c0_1 = arith.constant 0 : index
    %c0_2 = arith.constant 0 : index
    %0 = vector.load %arg1[%c0, %c0_0, %c0_1, %c0_2] : memref<1x18x18x128xbf16, #tpu.memory_space<vmem>>, vector<1x16x16x128xbf16>
    %1 = vector.shape_cast %0 : vector<1x16x16x128xbf16> to vector<16x16x128xbf16>
    %2 = vector.shape_cast %1 : vector<16x16x128xbf16> to vector<256x128xbf16>
    %c0_3 = arith.constant 0 : index
    %c0_4 = arith.constant 0 : index
    %c0_5 = arith.constant 0 : index
    %3 = vector.load %arg2[%c0_3, %c0_4, %c0_5] : memref<9x128x128xbf16, #tpu.memory_space<vmem>>, vector<1x128x128xbf16>
    %4 = vector.shape_cast %3 : vector<1x128x128xbf16> to vector<128x128xbf16>
    %cst = arith.constant dense<0.000000e+00> : vector<256x128xf32>
    %5 = tpu.matmul %2, %4, %cst {dimension_numbers = #tpu.dot_dimension_numbers<[1], [0], [0], [1], [0, 0, 1, 1], [], []>} : vector<256x128xbf16>, vector<128x128xbf16>, vector<256x128xf32> -> vector<256x128xf32>
    %c0_6 = arith.constant 0 : index
    %c0_7 = arith.constant 0 : index
    %c0_8 = arith.constant 0 : index
    %6 = vector.load %arg3[%c0_6, %c0_7, %c0_8] : memref<1x256x128xf32, #tpu.memory_space<vmem>>, vector<1x256x128xf32>
    %7 = vector.shape_cast %6 : vector<1x256x128xf32> to vector<256x128xf32>
    %8 = vector.shape_cast %5 : vector<256x128xf32> to vector<1x256x128xf32>
    tpu.vector_store %arg3[%c0_6, %c0_7, %c0_8], %8 {strides = array<i32>} : memref<1x256x128xf32, #tpu.memory_space<vmem>>, vector<1x256x128xf32>,
    %c0_9 = arith.constant 0 : index
    %c0_10 = arith.constant 0 : index
    %c1 = arith.constant 1 : index
    %c0_11 = arith.constant 0 : index
    %9 = vector.load %arg1[%c0_9, %c0_10, %c1, %c0_11] : memref<1x18x18x128xbf16, #tpu.memory_space<vmem>>, vector<1x16x16x128xbf16>
    %10 = vector.shape_cast %9 : vector<1x16x16x128xbf16> to vector<16x16x128xbf16>
    %11 = vector.shape_cast %10 : vector<16x16x128xbf16> to vector<256x128xbf16>
    %c1_12 = arith.constant 1 : index
    %c0_13 = arith.constant 0 : index
    %c0_14 = arith.constant 0 : index
    %12 = vector.load %arg2[%c1_12, %c0_13, %c0_14] : memref<9x128x128xbf16, #tpu.memory_space<vmem>>, vector<1x128x128xbf16>
    %13 = vector.shape_cast %12 : vector<1x128x128xbf16> to vector<128x128xbf16>
    %cst_15 = arith.constant dense<0.000000e+00> : vector<256x128xf32>
    %14 = tpu.matmul %11, %13, %cst_15 {dimension_numbers = #tpu.dot_dimension_numbers<[1], [0], [0], [1], [0, 0, 1, 1], [], []>} : vector<256x128xbf16>, vector<128x128xbf16>, vector<256x128xf32> -> vector<256x128xf32>
    %c0_16 = arith.constant 0 : index
    %c0_17 = arith.constant 0 : index
    %c0_18 = arith.constant 0 : index
    %15 = vector.load %arg3[%c0_16, %c0_17, %c0_18] : memref<1x256x128xf32, #tpu.memory_space<vmem>>, vector<1x256x128xf32>
    %16 = vector.shape_cast %15 : vector<1x256x128xf32> to vector<256x128xf32>
    %17 = arith.addf %16, %14 : vector<256x128xf32>
    %c0_19 = arith.constant 0 : index
    %c0_20 = arith.constant 0 : index
    %c0_21 = arith.constant 0 : index
    %18 = vector.load %arg3[%c0_19, %c0_20, %c0_21] : memref<1x256x128xf32, #tpu.memory_space<vmem>>, vector<1x256x128xf32>
    %19 = vector.shape_cast %18 : vector<1x256x128xf32> to vector<256x128xf32>
    %20 = vector.shape_cast %17 : vector<256x128xf32> to vector<1x256x128xf32>
    tpu.vector_store %arg3[%c0_19, %c0_20, %c0_21], %20 {strides = array<i32>} : memref<1x256x128xf32, #tpu.memory_space<vmem>>, vector<1x256x128xf32>,
    %c0_22 = arith.constant 0 : index
    %c0_23 = arith.constant 0 : index
    %c2 = arith.constant 2 : index
    %c0_24 = arith.constant 0 : index
    %21 = vector.load %arg1[%c0_22, %c0_23, %c2, %c0_24] : memref<1x18x18x128xbf16, #tpu.memory_space<vmem>>, vector<1x16x16x128xbf16>
    %22 = vector.shape_cast %21 : vector<1x16x16x128xbf16> to vector<16x16x128xbf16>
    %23 = vector.shape_cast %22 : vector<16x16x128xbf16> to vector<256x128xbf16>
    %c2_25 = arith.constant 2 : index
    %c0_26 = arith.constant 0 : index
    %c0_27 = arith.constant 0 : index
    %24 = vector.load %arg2[%c2_25, %c0_26, %c0_27] : memref<9x128x128xbf16, #tpu.memory_space<vmem>>, vector<1x128x128xbf16>
    %25 = vector.shape_cast %24 : vector<1x128x128xbf16> to vector<128x128xbf16>
    %cst_28 = arith.constant dense<0.000000e+00> : vector<256x128xf32>
    %26 = tpu.matmul %23, %25, %cst_28 {dimension_numbers = #tpu.dot_dimension_numbers<[1], [0], [0], [1], [0, 0, 1, 1], [], []>} : vector<256x128xbf16>, vector<128x128xbf16>, vector<256x128xf32> -> vector<256x128xf32>
    %c0_29 = arith.constant 0 : index
    %c0_30 = arith.constant 0 : index
    %c0_31 = arith.constant 0 : index
    %27 = vector.load %arg3[%c0_29, %c0_30, %c0_31] : memref<1x256x128xf32, #tpu.memory_space<vmem>>, vector<1x256x128xf32>
    %28 = vector.shape_cast %27 : vector<1x256x128xf32> to vector<256x128xf32>
    %29 = arith.addf %28, %26 : vector<256x128xf32>
    %c0_32 = arith.constant 0 : index
    %c0_33 = arith.constant 0 : index
    %c0_34 = arith.constant 0 : index
    %30 = vector.load %arg3[%c0_32, %c0_33, %c0_34] : memref<1x256x128xf32, #tpu.memory_space<vmem>>, vector<1x256x128xf32>
    %31 = vector.shape_cast %30 : vector<1x256x128xf32> to vector<256x128xf32>
    %32 = vector.shape_cast %29 : vector<256x128xf32> to vector<1x256x128xf32>
    tpu.vector_store %arg3[%c0_32, %c0_33, %c0_34], %32 {strides = array<i32>} : memref<1x256x128xf32, #tpu.memory_space<vmem>>, vector<1x256x128xf32>,
    %c0_35 = arith.constant 0 : index
    %c1_36 = arith.constant 1 : index
    %c0_37 = arith.constant 0 : index
    %c0_38 = arith.constant 0 : index
    %33 = vector.load %arg1[%c0_35, %c1_36, %c0_37, %c0_38] : memref<1x18x18x128xbf16, #tpu.memory_space<vmem>>, vector<1x16x16x128xbf16>
    %34 = vector.shape_cast %33 : vector<1x16x16x128xbf16> to vector<16x16x128xbf16>
    %35 = vector.shape_cast %34 : vector<16x16x128xbf16> to vector<256x128xbf16>
    %c3 = arith.constant 3 : index
    %c0_39 = arith.constant 0 : index
    %c0_40 = arith.constant 0 : index
    %36 = vector.load %arg2[%c3, %c0_39, %c0_40] : memref<9x128x128xbf16, #tpu.memory_space<vmem>>, vector<1x128x128xbf16>
    %37 = vector.shape_cast %36 : vector<1x128x128xbf16> to vector<128x128xbf16>
    %cst_41 = arith.constant dense<0.000000e+00> : vector<256x128xf32>
    %38 = tpu.matmul %35, %37, %cst_41 {dimension_numbers = #tpu.dot_dimension_numbers<[1], [0], [0], [1], [0, 0, 1, 1], [], []>} : vector<256x128xbf16>, vector<128x128xbf16>, vector<256x128xf32> -> vector<256x128xf32>
    %c0_42 = arith.constant 0 : index
    %c0_43 = arith.constant 0 : index
    %c0_44 = arith.constant 0 : index
    %39 = vector.load %arg3[%c0_42, %c0_43, %c0_44] : memref<1x256x128xf32, #tpu.memory_space<vmem>>, vector<1x256x128xf32>
    %40 = vector.shape_cast %39 : vector<1x256x128xf32> to vector<256x128xf32>
    %41 = arith.addf %40, %38 : vector<256x128xf32>
    %c0_45 = arith.constant 0 : index
    %c0_46 = arith.constant 0 : index
    %c0_47 = arith.constant 0 : index
    %42 = vector.load %arg3[%c0_45, %c0_46, %c0_47] : memref<1x256x128xf32, #tpu.memory_space<vmem>>, vector<1x256x128xf32>
    %43 = vector.shape_cast %42 : vector<1x256x128xf32> to vector<256x128xf32>
    %44 = vector.shape_cast %41 : vector<256x128xf32> to vector<1x256x128xf32>
    tpu.vector_store %arg3[%c0_45, %c0_46, %c0_47], %44 {strides = array<i32>} : memref<1x256x128xf32, #tpu.memory_space<vmem>>, vector<1x256x128xf32>,
    %c0_48 = arith.constant 0 : index
    %c1_49 = arith.constant 1 : index
    %c1_50 = arith.constant 1 : index
    %c0_51 = arith.constant 0 : index
    %45 = vector.load %arg1[%c0_48, %c1_49, %c1_50, %c0_51] : memref<1x18x18x128xbf16, #tpu.memory_space<vmem>>, vector<1x16x16x128xbf16>
    %46 = vector.shape_cast %45 : vector<1x16x16x128xbf16> to vector<16x16x128xbf16>
    %47 = vector.shape_cast %46 : vector<16x16x128xbf16> to vector<256x128xbf16>
    %c4 = arith.constant 4 : index
    %c0_52 = arith.constant 0 : index
    %c0_53 = arith.constant 0 : index
    %48 = vector.load %arg2[%c4, %c0_52, %c0_53] : memref<9x128x128xbf16, #tpu.memory_space<vmem>>, vector<1x128x128xbf16>
    %49 = vector.shape_cast %48 : vector<1x128x128xbf16> to vector<128x128xbf16>
    %cst_54 = arith.constant dense<0.000000e+00> : vector<256x128xf32>
    %50 = tpu.matmul %47, %49, %cst_54 {dimension_numbers = #tpu.dot_dimension_numbers<[1], [0], [0], [1], [0, 0, 1, 1], [], []>} : vector<256x128xbf16>, vector<128x128xbf16>, vector<256x128xf32> -> vector<256x128xf32>
    %c0_55 = arith.constant 0 : index
    %c0_56 = arith.constant 0 : index
    %c0_57 = arith.constant 0 : index
    %51 = vector.load %arg3[%c0_55, %c0_56, %c0_57] : memref<1x256x128xf32, #tpu.memory_space<vmem>>, vector<1x256x128xf32>
    %52 = vector.shape_cast %51 : vector<1x256x128xf32> to vector<256x128xf32>
    %53 = arith.addf %52, %50 : vector<256x128xf32>
    %c0_58 = arith.constant 0 : index
    %c0_59 = arith.constant 0 : index
    %c0_60 = arith.constant 0 : index
    %54 = vector.load %arg3[%c0_58, %c0_59, %c0_60] : memref<1x256x128xf32, #tpu.memory_space<vmem>>, vector<1x256x128xf32>
    %55 = vector.shape_cast %54 : vector<1x256x128xf32> to vector<256x128xf32>
    %56 = vector.shape_cast %53 : vector<256x128xf32> to vector<1x256x128xf32>
    tpu.vector_store %arg3[%c0_58, %c0_59, %c0_60], %56 {strides = array<i32>} : memref<1x256x128xf32, #tpu.memory_space<vmem>>, vector<1x256x128xf32>,
    %c0_61 = arith.constant 0 : index
    %c1_62 = arith.constant 1 : index
    %c2_63 = arith.constant 2 : index
    %c0_64 = arith.constant 0 : index
    %57 = vector.load %arg1[%c0_61, %c1_62, %c2_63, %c0_64] : memref<1x18x18x128xbf16, #tpu.memory_space<vmem>>, vector<1x16x16x128xbf16>
    %58 = vector.shape_cast %57 : vector<1x16x16x128xbf16> to vector<16x16x128xbf16>
    %59 = vector.shape_cast %58 : vector<16x16x128xbf16> to vector<256x128xbf16>
    %c5 = arith.constant 5 : index
    %c0_65 = arith.constant 0 : index
    %c0_66 = arith.constant 0 : index
    %60 = vector.load %arg2[%c5, %c0_65, %c0_66] : memref<9x128x128xbf16, #tpu.memory_space<vmem>>, vector<1x128x128xbf16>
    %61 = vector.shape_cast %60 : vector<1x128x128xbf16> to vector<128x128xbf16>
    %cst_67 = arith.constant dense<0.000000e+00> : vector<256x128xf32>
    %62 = tpu.matmul %59, %61, %cst_67 {dimension_numbers = #tpu.dot_dimension_numbers<[1], [0], [0], [1], [0, 0, 1, 1], [], []>} : vector<256x128xbf16>, vector<128x128xbf16>, vector<256x128xf32> -> vector<256x128xf32>
    %c0_68 = arith.constant 0 : index
    %c0_69 = arith.constant 0 : index
    %c0_70 = arith.constant 0 : index
    %63 = vector.load %arg3[%c0_68, %c0_69, %c0_70] : memref<1x256x128xf32, #tpu.memory_space<vmem>>, vector<1x256x128xf32>
    %64 = vector.shape_cast %63 : vector<1x256x128xf32> to vector<256x128xf32>
    %65 = arith.addf %64, %62 : vector<256x128xf32>
    %c0_71 = arith.constant 0 : index
    %c0_72 = arith.constant 0 : index
    %c0_73 = arith.constant 0 : index
    %66 = vector.load %arg3[%c0_71, %c0_72, %c0_73] : memref<1x256x128xf32, #tpu.memory_space<vmem>>, vector<1x256x128xf32>
    %67 = vector.shape_cast %66 : vector<1x256x128xf32> to vector<256x128xf32>
    %68 = vector.shape_cast %65 : vector<256x128xf32> to vector<1x256x128xf32>
    tpu.vector_store %arg3[%c0_71, %c0_72, %c0_73], %68 {strides = array<i32>} : memref<1x256x128xf32, #tpu.memory_space<vmem>>, vector<1x256x128xf32>,
    %c0_74 = arith.constant 0 : index
    %c2_75 = arith.constant 2 : index
    %c0_76 = arith.constant 0 : index
    %c0_77 = arith.constant 0 : index
    %69 = vector.load %arg1[%c0_74, %c2_75, %c0_76, %c0_77] : memref<1x18x18x128xbf16, #tpu.memory_space<vmem>>, vector<1x16x16x128xbf16>
    %70 = vector.shape_cast %69 : vector<1x16x16x128xbf16> to vector<16x16x128xbf16>
    %71 = vector.shape_cast %70 : vector<16x16x128xbf16> to vector<256x128xbf16>
    %c6 = arith.constant 6 : index
    %c0_78 = arith.constant 0 : index
    %c0_79 = arith.constant 0 : index
    %72 = vector.load %arg2[%c6, %c0_78, %c0_79] : memref<9x128x128xbf16, #tpu.memory_space<vmem>>, vector<1x128x128xbf16>
    %73 = vector.shape_cast %72 : vector<1x128x128xbf16> to vector<128x128xbf16>
    %cst_80 = arith.constant dense<0.000000e+00> : vector<256x128xf32>
    %74 = tpu.matmul %71, %73, %cst_80 {dimension_numbers = #tpu.dot_dimension_numbers<[1], [0], [0], [1], [0, 0, 1, 1], [], []>} : vector<256x128xbf16>, vector<128x128xbf16>, vector<256x128xf32> -> vector<256x128xf32>
    %c0_81 = arith.constant 0 : index
    %c0_82 = arith.constant 0 : index
    %c0_83 = arith.constant 0 : index
    %75 = vector.load %arg3[%c0_81, %c0_82, %c0_83] : memref<1x256x128xf32, #tpu.memory_space<vmem>>, vector<1x256x128xf32>
    %76 = vector.shape_cast %75 : vector<1x256x128xf32> to vector<256x128xf32>
    %77 = arith.addf %76, %74 : vector<256x128xf32>
    %c0_84 = arith.constant 0 : index
    %c0_85 = arith.constant 0 : index
    %c0_86 = arith.constant 0 : index
    %78 = vector.load %arg3[%c0_84, %c0_85, %c0_86] : memref<1x256x128xf32, #tpu.memory_space<vmem>>, vector<1x256x128xf32>
    %79 = vector.shape_cast %78 : vector<1x256x128xf32> to vector<256x128xf32>
    %80 = vector.shape_cast %77 : vector<256x128xf32> to vector<1x256x128xf32>
    tpu.vector_store %arg3[%c0_84, %c0_85, %c0_86], %80 {strides = array<i32>} : memref<1x256x128xf32, #tpu.memory_space<vmem>>, vector<1x256x128xf32>,
    %c0_87 = arith.constant 0 : index
    %c2_88 = arith.constant 2 : index
    %c1_89 = arith.constant 1 : index
    %c0_90 = arith.constant 0 : index
    %81 = vector.load %arg1[%c0_87, %c2_88, %c1_89, %c0_90] : memref<1x18x18x128xbf16, #tpu.memory_space<vmem>>, vector<1x16x16x128xbf16>
    %82 = vector.shape_cast %81 : vector<1x16x16x128xbf16> to vector<16x16x128xbf16>
    %83 = vector.shape_cast %82 : vector<16x16x128xbf16> to vector<256x128xbf16>
    %c7 = arith.constant 7 : index
    %c0_91 = arith.constant 0 : index
    %c0_92 = arith.constant 0 : index
    %84 = vector.load %arg2[%c7, %c0_91, %c0_92] : memref<9x128x128xbf16, #tpu.memory_space<vmem>>, vector<1x128x128xbf16>
    %85 = vector.shape_cast %84 : vector<1x128x128xbf16> to vector<128x128xbf16>
    %cst_93 = arith.constant dense<0.000000e+00> : vector<256x128xf32>
    %86 = tpu.matmul %83, %85, %cst_93 {dimension_numbers = #tpu.dot_dimension_numbers<[1], [0], [0], [1], [0, 0, 1, 1], [], []>} : vector<256x128xbf16>, vector<128x128xbf16>, vector<256x128xf32> -> vector<256x128xf32>
    %c0_94 = arith.constant 0 : index
    %c0_95 = arith.constant 0 : index
    %c0_96 = arith.constant 0 : index
    %87 = vector.load %arg3[%c0_94, %c0_95, %c0_96] : memref<1x256x128xf32, #tpu.memory_space<vmem>>, vector<1x256x128xf32>
    %88 = vector.shape_cast %87 : vector<1x256x128xf32> to vector<256x128xf32>
    %89 = arith.addf %88, %86 : vector<256x128xf32>
    %c0_97 = arith.constant 0 : index
    %c0_98 = arith.constant 0 : index
    %c0_99 = arith.constant 0 : index
    %90 = vector.load %arg3[%c0_97, %c0_98, %c0_99] : memref<1x256x128xf32, #tpu.memory_space<vmem>>, vector<1x256x128xf32>
    %91 = vector.shape_cast %90 : vector<1x256x128xf32> to vector<256x128xf32>
    %92 = vector.shape_cast %89 : vector<256x128xf32> to vector<1x256x128xf32>
    tpu.vector_store %arg3[%c0_97, %c0_98, %c0_99], %92 {strides = array<i32>} : memref<1x256x128xf32, #tpu.memory_space<vmem>>, vector<1x256x128xf32>,
    %c0_100 = arith.constant 0 : index
    %c2_101 = arith.constant 2 : index
    %c2_102 = arith.constant 2 : index
    %c0_103 = arith.constant 0 : index
    %93 = vector.load %arg1[%c0_100, %c2_101, %c2_102, %c0_103] : memref<1x18x18x128xbf16, #tpu.memory_space<vmem>>, vector<1x16x16x128xbf16>
    %94 = vector.shape_cast %93 : vector<1x16x16x128xbf16> to vector<16x16x128xbf16>
    %95 = vector.shape_cast %94 : vector<16x16x128xbf16> to vector<256x128xbf16>
    %c8 = arith.constant 8 : index
    %c0_104 = arith.constant 0 : index
    %c0_105 = arith.constant 0 : index
    %96 = vector.load %arg2[%c8, %c0_104, %c0_105] : memref<9x128x128xbf16, #tpu.memory_space<vmem>>, vector<1x128x128xbf16>
    %97 = vector.shape_cast %96 : vector<1x128x128xbf16> to vector<128x128xbf16>
    %cst_106 = arith.constant dense<0.000000e+00> : vector<256x128xf32>
    %98 = tpu.matmul %95, %97, %cst_106 {dimension_numbers = #tpu.dot_dimension_numbers<[1], [0], [0], [1], [0, 0, 1, 1], [], []>} : vector<256x128xbf16>, vector<128x128xbf16>, vector<256x128xf32> -> vector<256x128xf32>
    %c0_107 = arith.constant 0 : index
    %c0_108 = arith.constant 0 : index
    %c0_109 = arith.constant 0 : index
    %99 = vector.load %arg3[%c0_107, %c0_108, %c0_109] : memref<1x256x128xf32, #tpu.memory_space<vmem>>, vector<1x256x128xf32>
    %100 = vector.shape_cast %99 : vector<1x256x128xf32> to vector<256x128xf32>
    %101 = arith.addf %100, %98 : vector<256x128xf32>
    %c0_110 = arith.constant 0 : index
    %c0_111 = arith.constant 0 : index
    %c0_112 = arith.constant 0 : index
    %102 = vector.load %arg3[%c0_110, %c0_111, %c0_112] : memref<1x256x128xf32, #tpu.memory_space<vmem>>, vector<1x256x128xf32>
    %103 = vector.shape_cast %102 : vector<1x256x128xf32> to vector<256x128xf32>
    %104 = vector.shape_cast %101 : vector<256x128xf32> to vector<1x256x128xf32>
    tpu.vector_store %arg3[%c0_110, %c0_111, %c0_112], %104 {strides = array<i32>} : memref<1x256x128xf32, #tpu.memory_space<vmem>>, vector<1x256x128xf32>,
    %c0_113 = arith.constant 0 : index
    %c0_114 = arith.constant 0 : index
    %c0_115 = arith.constant 0 : index
    %105 = vector.load %arg3[%c0_113, %c0_114, %c0_115] : memref<1x256x128xf32, #tpu.memory_space<vmem>>, vector<1x256x128xf32>
    %106 = vector.shape_cast %105 : vector<1x256x128xf32> to vector<256x128xf32>
    %cst_116 = arith.constant dense<0.000000e+00> : vector<128xf32>
    %107 = vector.multi_reduction <add>, %106, %cst_116 [0] : vector<256x128xf32> to vector<128xf32>
    %108 = vector.shape_cast %107 : vector<128xf32> to vector<1x128xf32>
    %109 = arith.mulf %106, %106 : vector<256x128xf32>
    %cst_117 = arith.constant dense<0.000000e+00> : vector<128xf32>
    %110 = vector.multi_reduction <add>, %109, %cst_117 [0] : vector<256x128xf32> to vector<128xf32>
    %111 = vector.shape_cast %110 : vector<128xf32> to vector<1x128xf32>
    %cst_118 = arith.constant 0.000000e+00 : f32
    %112 = vector.broadcast %cst_118 : f32 to vector<6x128xf32>
    %113 = tpu.concatenate %108, %111, %112 in 0 : vector<1x128xf32>, vector<1x128xf32>, vector<6x128xf32> -> vector<8x128xf32>
    %c0_119 = arith.constant 0 : index
    %c0_120 = arith.constant 0 : index
    %c0_121 = arith.constant 0 : index
    %114 = vector.load %arg4[%c0_119, %c0_120, %c0_121] : memref<1x8x128xf32, #tpu.memory_space<vmem>>, vector<1x8x128xf32>
    %115 = vector.shape_cast %114 : vector<1x8x128xf32> to vector<8x128xf32>
    %116 = vector.shape_cast %113 : vector<8x128xf32> to vector<1x8x128xf32>
    tpu.vector_store %arg4[%c0_119, %c0_120, %c0_121], %116 {strides = array<i32>} : memref<1x8x128xf32, #tpu.memory_space<vmem>>, vector<1x8x128xf32>,
    return
  }
  func.func @transform_0(%arg0: i32) -> (i32, i32, i32, i32) {
    %c0_i32 = arith.constant 0 : i32
    %c0_i32_0 = arith.constant 0 : i32
    %c0_i32_1 = arith.constant 0 : i32
    %c0_i32_2 = arith.constant 0 : i32
    return %arg0, %c0_i32, %c0_i32_0, %c0_i32_1 : i32, i32, i32, i32
  }
  func.func @transform_1(%arg0: i32) -> (i32, i32, i32) {
    %c0_i32 = arith.constant 0 : i32
    %c0_i32_0 = arith.constant 0 : i32
    %c0_i32_1 = arith.constant 0 : i32
    %c0_i32_2 = arith.constant 0 : i32
    return %c0_i32, %c0_i32_0, %c0_i32_1 : i32, i32, i32
  }
  func.func @transform_2(%arg0: i32) -> (i32, i32, i32) {
    %c0_i32 = arith.constant 0 : i32
    %c0_i32_0 = arith.constant 0 : i32
    %c0_i32_1 = arith.constant 0 : i32
    return %arg0, %c0_i32, %c0_i32_0 : i32, i32, i32
  }
  func.func @transform_3(%arg0: i32) -> (i32, i32, i32) {
    %c0_i32 = arith.constant 0 : i32
    %c0_i32_0 = arith.constant 0 : i32
    %c0_i32_1 = arith.constant 0 : i32
    return %arg0, %c0_i32, %c0_i32_0 : i32, i32, i32
  }
}

</mosaic_0001>

<llo_original>
// kernel: tpu_custom_call.1
$region0: #{tpu_custom_call.1}
  #allocation0 [shape = 'u32[]', space=smem, size = 0x4, offset = 0x4, fixed_abs, tag = 'smem constant byte address 0x4 - core index']
  #allocation1 [shape = 'u32[72,128]{1,0:T(1,128)}', space=vmem, size = 0x9000, scoped, tag = 'internal scratch']
  %s0 = inlined_call_operand.vmem [shape: bf16[2,18,18,128], index: 0, kind: input, shape index: {}]
  %s1 = inlined_call_operand.vmem [shape: bf16[9,128,128], index: 1, kind: input, shape index: {}]
  %s2 = inlined_call_operand.hbm [shape: f32[2,256,128], index: 2, kind: output, shape index: {0}]
  %s3 = inlined_call_operand.hbm [shape: f32[2,8,128], index: 3, kind: output, shape index: {1}]
  %4 = xla_tuple %s2, %s3
  %s5 = sld [smem:[#allocation0]]
  $region49: #{tpu_custom_call.1} parent=0
    _
  %s7 = ssub.s32 1, %s5
  %s8 = scalar_select 0, %s7, %s5
  $region1: #{tpu_custom_call.1} parent=0
    #allocation2 [shape = 'u8[262144]{0}', space=vmem, size = 0x40000, scoped, tag = 'output window, operand 0']
    #allocation3 [shape = 's32[2]{0}', space=sflag, size = 0x8, scoped, tag = 'scoped memory for tpu_custom_call.1']
    #allocation4 [shape = 'u8[8192]{0}', space=vmem, size = 0x2000, scoped, tag = 'output window, operand 1']
    #allocation5 [shape = 's32[2]{0}', space=sflag, size = 0x8, scoped, tag = 'scoped memory for tpu_custom_call.1']
    %9 = vsyncpa [#allocation3], 0
    %s10 = scalar_lea.sflag [#allocation3], 1
    %11 = vsyncpa %s10, 0
    %12 = vsyncpa [#allocation5], 0
    %s13 = scalar_lea.sflag [#allocation5], 1
    %14 = vsyncpa %s13, 0
    loop: start=0, step=1, limit=4
    $region2: #{tpu_custom_call.1} parent=1 // loop_pre_header
      _
    $region3: #{tpu_custom_call.1} parent=1 // loop_header
      %s16 = sphi 0, %s20
      %p17 = scmp.ge.s32.totalorder %s16, 4
      %s26 = sphi 0, %s28
      %s29 = sphi 0, %s26
      %s30 = sphi 0, %s29
      %s46 = sphi 0, %s30
      %s50 = sphi 0, %s50
      %s52 = sphi 0, %s50
      %s53 = sphi 0, %s52
      %s67 = sphi 0, %s53
      %s73 = sphi 0, %s75
      %s76 = sphi 0, %s73
      %s77 = sphi 0, %s76
      %s93 = sphi 0, %s77
      %s99 = sphi 0, %s101
      %s102 = sphi 0, %s99
      %s103 = sphi 0, %s102
      %s119 = sphi 0, %s103
    $region4: #{tpu_custom_call.1} parent=1 // loop_header_branch
      %19 = sbr.rel (%p17) target = $region8
    $region5: #{tpu_custom_call.1} parent=1 // loop_body
      %s21 = ssub.s32 %s16, 1
      %s22 = ssub.s32 %s16, 2
      %s23 = sadd.s32 %s16, 1
      %s24 = ssub.s32 %s16, %s23
      %p25 = scmp.eq.s32.totalorder %s24, 0
      %s27 = sadd.s32 %s26, 1
      %s28 = scalar_select %p25, %s26, %s27
      %p31 = pneg %p25
      %p32 = scmp.eq.s32.totalorder %s16, 1
      %p33 = por %p31, %p32
      %p34 = scmp.ne.s32.totalorder %s26, %s29
      %p35 = scmp.eq.s32.totalorder %s16, 0
      %p36 = por %p34, %p35
      %p37 = scmp.ne.s32.totalorder %s26, %s29
      %p38 = scmp.eq.s32.totalorder %s21, 1
      %p39 = por %p37, %p38
      %p40 = scmp.ne.s32.totalorder %s29, %s30
      %p41 = scmp.eq.s32.totalorder %s21, 0
      %p42 = por %p40, %p41
      %p43 = scmp.ne.s32.totalorder %s29, %s30
      %p44 = scmp.eq.s32.totalorder %s22, 1
      %p45 = por %p43, %p44
      %p47 = scmp.ne.s32.totalorder %s30, %s46
      %p48 = scmp.eq.s32.totalorder %s22, 0
      %p49 = por %p47, %p48
      %s51 = sadd.s32 %s50, 1
      %p54 = scmp.eq.s32.totalorder %s16, 1
      %p55 = scmp.ne.s32.totalorder %s50, %s52
      %p56 = scmp.eq.s32.totalorder %s16, 0
      %p57 = por %p55, %p56
      %p58 = scmp.ne.s32.totalorder %s50, %s52
      %p59 = scmp.eq.s32.totalorder %s21, 1
      %p60 = por %p58, %p59
      %p61 = scmp.ne.s32.totalorder %s52, %s53
      %p62 = scmp.eq.s32.totalorder %s21, 0
      %p63 = por %p61, %p62
      %p64 = scmp.ne.s32.totalorder %s52, %s53
      %p65 = scmp.eq.s32.totalorder %s22, 1
      %p66 = por %p64, %p65
      %p68 = scmp.ne.s32.totalorder %s53, %s67
      %p69 = scmp.eq.s32.totalorder %s22, 0
      %p70 = por %p68, %p69
      %s71 = ssub.s32 %s16, %s23
      %p72 = scmp.eq.s32.totalorder %s71, 0
      %s74 = sadd.s32 %s73, 1
      %s75 = scalar_select %p72, %s73, %s74
      %p78 = pneg %p72
      %p79 = scmp.eq.s32.totalorder %s16, 1
      %p80 = por %p78, %p79
      %p81 = scmp.ne.s32.totalorder %s73, %s76
      %p82 = scmp.eq.s32.totalorder %s16, 0
      %p83 = por %p81, %p82
      %p84 = scmp.ne.s32.totalorder %s73, %s76
      %p85 = scmp.eq.s32.totalorder %s21, 1
      %p86 = por %p84, %p85
      %p87 = scmp.ne.s32.totalorder %s76, %s77
      %p88 = scmp.eq.s32.totalorder %s21, 0
      %p89 = por %p87, %p88
      %p90 = scmp.ne.s32.totalorder %s76, %s77
      %p91 = scmp.eq.s32.totalorder %s22, 1
      %p92 = por %p90, %p91
      %p94 = scmp.ne.s32.totalorder %s77, %s93
      %p95 = scmp.eq.s32.totalorder %s22, 0
      %p96 = por %p94, %p95
      %s97 = ssub.s32 %s16, %s23
      %p98 = scmp.eq.s32.totalorder %s97, 0
      %s100 = sadd.s32 %s99, 1
      %s101 = scalar_select %p98, %s99, %s100
      %p104 = pneg %p98
      %p105 = scmp.eq.s32.totalorder %s16, 1
      %p106 = por %p104, %p105
      %p107 = scmp.ne.s32.totalorder %s99, %s102
      %p108 = scmp.eq.s32.totalorder %s16, 0
      %p109 = por %p107, %p108
      %p110 = scmp.ne.s32.totalorder %s99, %s102
      %p111 = scmp.eq.s32.totalorder %s21, 1
      %p112 = por %p110, %p111
      %p113 = scmp.ne.s32.totalorder %s102, %s103
      %p114 = scmp.eq.s32.totalorder %s21, 0
      %p115 = por %p113, %p114
      %p116 = scmp.ne.s32.totalorder %s102, %s103
      %p117 = scmp.eq.s32.totalorder %s22, 1
      %p118 = por %p116, %p117
      %p120 = scmp.ne.s32.totalorder %s103, %s119
      %p121 = scmp.eq.s32.totalorder %s22, 0
      %p122 = por %p120, %p121
      %p123 = scmp.le.s32.totalorder 1, %s16
      %p124 = scmp.lt.s32.totalorder %s16, 3
      %p125 = pnand %p123, %p124
      %p126 = pneg %p125
      // Predicated region
      $region9: #{tpu_custom_call.1} parent=5 // pred_check
        _
      $region10: #{tpu_custom_call.1} parent=5 // pred_check_branch
        %128 = sbr.rel (%p125) target = $region12
      $region11: #{tpu_custom_call.1} parent=5 // pred_region
        %s129 = ssub.s32 %s16, 1
        // Predicated region
        $region13: #{tpu_custom_call.1} parent=11 // pred_check
          %p130 = pneg %p63
        $region14: #{tpu_custom_call.1} parent=11 // pred_check_branch
          %132 = sbr.rel (%p130) target = $region16
        $region15: #{tpu_custom_call.1} parent=11 // pred_region
          _
        $region16: #{tpu_custom_call.1} parent=11 // pred_fallthru
          _
      $region12: #{tpu_custom_call.1} parent=5 // pred_fallthru
        _
      %p133 = scmp.lt.s32.totalorder %s16, 2
      // Predicated region
      $region17: #{tpu_custom_call.1} parent=5 // pred_check
        %p134 = pneg %p133
      $region18: #{tpu_custom_call.1} parent=5 // pred_check_branch
        %136 = sbr.rel (%p134) target = $region20
      $region19: #{tpu_custom_call.1} parent=5 // pred_region
        // Predicated region
        $region21: #{tpu_custom_call.1} parent=19 // pred_check
          %p137 = pneg %p36
        $region22: #{tpu_custom_call.1} parent=19 // pred_check_branch
          %139 = sbr.rel (%p137) target = $region24
        $region23: #{tpu_custom_call.1} parent=19 // pred_region
          %p140 = scmp.lt.s32.totalorder %s16, 1
          %s141 = scalar_select %p140, %s16, 1
          %s142 = smul.addr %s141, 54
          %s143 = smul.addr %s142, 4
          %s144 = scalar_lea.vmem %s0, %s143
        $region24: #{tpu_custom_call.1} parent=19 // pred_fallthru
          _
      $region20: #{tpu_custom_call.1} parent=5 // pred_fallthru
        _
      %p145 = scmp.le.s32.totalorder 1, %s16
      %p146 = scmp.lt.s32.totalorder %s16, 3
      %p147 = pnand %p145, %p146
      %p148 = pneg %p147
      // Predicated region
      $region25: #{tpu_custom_call.1} parent=5 // pred_check
        _
      $region26: #{tpu_custom_call.1} parent=5 // pred_check_branch
        %150 = sbr.rel (%p147) target = $region28
      $region27: #{tpu_custom_call.1} parent=5 // pred_region
        %s151 = ssub.s32 %s16, 1
        %p152 = scmp.lt.s32.totalorder %s21, 1
        %s153 = scalar_select %p152, %s21, 1
        %s154 = smul.addr %s153, 54
        %s155 = smul.addr %s154, 4
        %s156 = scalar_lea.vmem %s0, %s155
        %p157 = pneg %p42
        %p158 = pneg %p39
        %p159 = pneg %p63
        %p160 = pneg %p60
        %p161 = pneg %p89
        %p162 = pneg %p86
        %s163 = sand.u32 %s76, 1
        %s164 = scalar_lea.sflag [#allocation3], %s163
        %s165 = sand.u32 %s76, 1
        %s166 = smul.addr %s165, 256
        %s167 = scalar_lea.vmem [#allocation2], %s166
        %p168 = pneg %p115
        %p169 = pneg %p112
        %s170 = sand.u32 %s102, 1
        %s171 = scalar_lea.sflag [#allocation5], %s170
        %s172 = sand.u32 %s102, 1
        %s173 = smul.addr %s172, 8
        %s174 = scalar_lea.vmem [#allocation4], %s173
        %p175 = scmp.lt.s32.totalorder %s21, 1
        %s176 = scalar_select %p175, %s21, 1
        %s177 = smul.addr %s176, 54
        %s178 = smul.addr %s177, 4
        %s179 = scalar_lea.vmem %s0, %s178
        %v180 = vld [vmem:[%s179] sm:$0xf]
        %v181 = vld [vmem:[%s179 + $0x4] sm:$0xf]
        %v182 = vld [vmem:[%s179 + $0xc] sm:$0xf]
        %v183 = vld [vmem:[%s179 + $0x10] sm:$0xf]
        %v184 = vld [vmem:[%s179 + $0x18] sm:$0xf]
        %v185 = vld [vmem:[%s179 + $0x1c] sm:$0xf]
        %v186 = vld [vmem:[%s179 + $0x24] sm:$0xf]
        %v187 = vld [vmem:[%s179 + $0x28] sm:$0xf]
        %v188 = vld [vmem:[%s179 + $0x30] sm:$0xf]
        %v189 = vld [vmem:[%s179 + $0x34] sm:$0xf]
        %v190 = vld [vmem:[%s179 + $0x3c] sm:$0xf]
        %v191 = vld [vmem:[%s179 + $0x40] sm:$0xf]
        %v192 = vld [vmem:[%s179 + $0x48] sm:$0xf]
        %v193 = vld [vmem:[%s179 + $0x4c] sm:$0xf]
        %v194 = vld [vmem:[%s179 + $0x54] sm:$0xf]
        %v195 = vld [vmem:[%s179 + $0x58] sm:$0xf]
        %v196 = vld [vmem:[%s179 + $0x60] sm:$0xf]
        %v197 = vld [vmem:[%s179 + $0x64] sm:$0xf]
        %v198 = vld [vmem:[%s179 + $0x6c] sm:$0xf]
        %v199 = vld [vmem:[%s179 + $0x70] sm:$0xf]
        %v200 = vld [vmem:[%s179 + $0x78] sm:$0xf]
        %v201 = vld [vmem:[%s179 + $0x7c] sm:$0xf]
        %v202 = vld [vmem:[%s179 + $0x84] sm:$0xf]
        %v203 = vld [vmem:[%s179 + $0x88] sm:$0xf]
        %v204 = vld [vmem:[%s179 + $0x90] sm:$0xf]
        %v205 = vld [vmem:[%s179 + $0x94] sm:$0xf]
        %v206 = vld [vmem:[%s179 + $0x9c] sm:$0xf]
        %v207 = vld [vmem:[%s179 + $0xa0] sm:$0xf]
        %v208 = vld [vmem:[%s179 + $0xa8] sm:$0xf]
        %v209 = vld [vmem:[%s179 + $0xac] sm:$0xf]
        %v210 = vld [vmem:[%s179 + $0xb4] sm:$0xf]
        %v211 = vld [vmem:[%s179 + $0xb8] sm:$0xf]
        %v212 = vld [vmem:[%s1] sm:$0xf]
        %v213 = vld [vmem:[%s1 + $0x4] sm:$0xf]
        %v214 = vld [vmem:[%s1 + $0x8] sm:$0xf]
        %v215 = vld [vmem:[%s1 + $0xc] sm:$0xf]
        %v216 = vld [vmem:[%s1 + $0x10] sm:$0xf]
        %v217 = vld [vmem:[%s1 + $0x14] sm:$0xf]
        %v218 = vld [vmem:[%s1 + $0x18] sm:$0xf]
        %v219 = vld [vmem:[%s1 + $0x1c] sm:$0xf]
        %v220 = vld [vmem:[%s1 + $0x20] sm:$0xf]
        %v221 = vld [vmem:[%s1 + $0x24] sm:$0xf]
        %v222 = vld [vmem:[%s1 + $0x28] sm:$0xf]
        %v223 = vld [vmem:[%s1 + $0x2c] sm:$0xf]
        %v224 = vld [vmem:[%s1 + $0x30] sm:$0xf]
        %v225 = vld [vmem:[%s1 + $0x34] sm:$0xf]
        %v226 = vld [vmem:[%s1 + $0x38] sm:$0xf]
        %v227 = vld [vmem:[%s1 + $0x3c] sm:$0xf]
        %v260 = vunpack.c.l.b16 %v180
        %v261 = vunpack.c.l.b16 %v181
        %v262 = vunpack.c.l.b16 %v182
        %v263 = vunpack.c.l.b16 %v183
        %v264 = vunpack.c.l.b16 %v184
        %v265 = vunpack.c.l.b16 %v185
        %v266 = vunpack.c.l.b16 %v186
        %v267 = vunpack.c.l.b16 %v187
        %v268 = vunpack.c.l.b16 %v188
        %v269 = vunpack.c.l.b16 %v189
        %v270 = vunpack.c.l.b16 %v190
        %v271 = vunpack.c.l.b16 %v191
        %v272 = vunpack.c.l.b16 %v192
        %v273 = vunpack.c.l.b16 %v193
        %v274 = vunpack.c.l.b16 %v194
        %v275 = vunpack.c.l.b16 %v195
        %v276 = vunpack.c.l.b16 %v196
        %v277 = vunpack.c.l.b16 %v197
        %v278 = vunpack.c.l.b16 %v198
        %v279 = vunpack.c.l.b16 %v199
        %v280 = vunpack.c.l.b16 %v200
        %v281 = vunpack.c.l.b16 %v201
        %v282 = vunpack.c.l.b16 %v202
        %v283 = vunpack.c.l.b16 %v203
        %v284 = vunpack.c.l.b16 %v204
        %v285 = vunpack.c.l.b16 %v205
        %v286 = vunpack.c.l.b16 %v206
        %v287 = vunpack.c.l.b16 %v207
        %v288 = vunpack.c.l.b16 %v208
        %v289 = vunpack.c.l.b16 %v209
        %v290 = vunpack.c.l.b16 %v210
        %v291 = vunpack.c.l.b16 %v211
        %v292 = vpack.c.b16 %v261, %v260
        %v293 = vpack.c.b16 %v263, %v262
        %v294 = vpack.c.b16 %v265, %v264
        %v295 = vpack.c.b16 %v267, %v266
        %v296 = vpack.c.b16 %v269, %v268
        %v297 = vpack.c.b16 %v271, %v270
        %v298 = vpack.c.b16 %v273, %v272
        %v299 = vpack.c.b16 %v275, %v274
        %v300 = vpack.c.b16 %v277, %v276
        %v301 = vpack.c.b16 %v279, %v278
        %v302 = vpack.c.b16 %v281, %v280
        %v303 = vpack.c.b16 %v283, %v282
        %v304 = vpack.c.b16 %v285, %v284
        %v305 = vpack.c.b16 %v287, %v286
        %v306 = vpack.c.b16 %v289, %v288
        %v307 = vpack.c.b16 %v291, %v290
        %v340 = vunpack.c.l.b16 %v212
        %v341 = vunpack.c.l.b16 %v213
        %v342 = vunpack.c.l.b16 %v214
        %v343 = vunpack.c.l.b16 %v215
        %v344 = vunpack.c.l.b16 %v216
        %v345 = vunpack.c.l.b16 %v217
        %v346 = vunpack.c.l.b16 %v218
        %v347 = vunpack.c.l.b16 %v219
        %v348 = vunpack.c.l.b16 %v220
        %v349 = vunpack.c.l.b16 %v221
        %v350 = vunpack.c.l.b16 %v222
        %v351 = vunpack.c.l.b16 %v223
        %v352 = vunpack.c.l.b16 %v224
        %v353 = vunpack.c.l.b16 %v225
        %v354 = vunpack.c.l.b16 %v226
        %v355 = vunpack.c.l.b16 %v227
        %v356 = vpack.c.b16 %v341, %v340
        %v357 = vpack.c.b16 %v343, %v342
        %v358 = vpack.c.b16 %v345, %v344
        %v359 = vpack.c.b16 %v347, %v346
        %v360 = vpack.c.b16 %v349, %v348
        %v361 = vpack.c.b16 %v351, %v350
        %v362 = vpack.c.b16 %v353, %v352
        %v363 = vpack.c.b16 %v355, %v354
        %372 = vmatpush.bf16.msra.mxu0 %v363
        %373 = vmatpush.bf16.msra.mxu0 %v362
        %374 = vmatpush.bf16.msra.mxu0 %v361
        %375 = vmatpush.bf16.msra.mxu0 %v360
        %376 = vmatpush.bf16.msra.mxu0 %v359
        %377 = vmatpush.bf16.msra.mxu0 %v358
        %378 = vmatpush.bf16.msra.mxu0 %v357
        %379 = vmatpush.bf16.msra.mxu0 %v356
        %380 = vmatmul.bf16.gmra.mxu0 %v292
        %v381 = vpop.f32.mrf.mxu0
        %v382 = vadd.f32 0.0, %v381
        %v383 = vpop.f32.mrf.mxu0
        %v384 = vadd.f32 0.0, %v383
        %385 = vmatmul.bf16.gmra.mxu0 %v293
        %v386 = vpop.f32.mrf.mxu0
        %v387 = vadd.f32 0.0, %v386
        %v388 = vpop.f32.mrf.mxu0
        %v389 = vadd.f32 0.0, %v388
        %390 = vmatmul.bf16.gmra.mxu0 %v294
        %v391 = vpop.f32.mrf.mxu0
        %v392 = vadd.f32 0.0, %v391
        %v393 = vpop.f32.mrf.mxu0
        %v394 = vadd.f32 0.0, %v393
        %395 = vmatmul.bf16.gmra.mxu0 %v295
        %v396 = vpop.f32.mrf.mxu0
        %v397 = vadd.f32 0.0, %v396
        %v398 = vpop.f32.mrf.mxu0
        %v399 = vadd.f32 0.0, %v398
        %400 = vmatmul.bf16.gmra.mxu0 %v296
        %v401 = vpop.f32.mrf.mxu0
        %v402 = vadd.f32 0.0, %v401
        %v403 = vpop.f32.mrf.mxu0
        %v404 = vadd.f32 0.0, %v403
        %405 = vmatmul.bf16.gmra.mxu0 %v297
        %v406 = vpop.f32.mrf.mxu0
        %v407 = vadd.f32 0.0, %v406
        %v408 = vpop.f32.mrf.mxu0
        %v409 = vadd.f32 0.0, %v408
        %410 = vmatmul.bf16.gmra.mxu0 %v298
        %v411 = vpop.f32.mrf.mxu0
        %v412 = vadd.f32 0.0, %v411
        %v413 = vpop.f32.mrf.mxu0
        %v414 = vadd.f32 0.0, %v413
        %415 = vmatmul.bf16.gmra.mxu0 %v299
        %v416 = vpop.f32.mrf.mxu0
        %v417 = vadd.f32 0.0, %v416
        %v418 = vpop.f32.mrf.mxu0
        %v419 = vadd.f32 0.0, %v418
        %420 = vmatmul.bf16.gmra.mxu0 %v300
        %v421 = vpop.f32.mrf.mxu0
        %v422 = vadd.f32 0.0, %v421
        %v423 = vpop.f32.mrf.mxu0
        %v424 = vadd.f32 0.0, %v423
        %425 = vmatmul.bf16.gmra.mxu0 %v301
        %v426 = vpop.f32.mrf.mxu0
        %v427 = vadd.f32 0.0, %v426
        %v428 = vpop.f32.mrf.mxu0
        %v429 = vadd.f32 0.0, %v428
        %430 = vmatmul.bf16.gmra.mxu0 %v302
        %v431 = vpop.f32.mrf.mxu0
        %v432 = vadd.f32 0.0, %v431
        %v433 = vpop.f32.mrf.mxu0
        %v434 = vadd.f32 0.0, %v433
        %435 = vmatmul.bf16.gmra.mxu0 %v303
        %v436 = vpop.f32.mrf.mxu0
        %v437 = vadd.f32 0.0, %v436
        %v438 = vpop.f32.mrf.mxu0
        %v439 = vadd.f32 0.0, %v438
        %440 = vmatmul.bf16.gmra.mxu0 %v304
        %v441 = vpop.f32.mrf.mxu0
        %v442 = vadd.f32 0.0, %v441
        %v443 = vpop.f32.mrf.mxu0
        %v444 = vadd.f32 0.0, %v443
        %445 = vmatmul.bf16.gmra.mxu0 %v305
        %v446 = vpop.f32.mrf.mxu0
        %v447 = vadd.f32 0.0, %v446
        %v448 = vpop.f32.mrf.mxu0
        %v449 = vadd.f32 0.0, %v448
        %450 = vmatmul.bf16.gmra.mxu0 %v306
        %v451 = vpop.f32.mrf.mxu0
        %v452 = vadd.f32 0.0, %v451
        %v453 = vpop.f32.mrf.mxu0
        %v454 = vadd.f32 0.0, %v453
        %455 = vmatmul.bf16.gmra.mxu0 %v307
        %v456 = vpop.f32.mrf.mxu0
        %v457 = vadd.f32 0.0, %v456
        %v458 = vpop.f32.mrf.mxu0
        %v459 = vadd.f32 0.0, %v458
        %460 = vdwg.mxu0
        %461 = vst [vmem:[%s167] sm:$0xff] %v382
        %462 = vst [vmem:[%s167 + $0x8] sm:$0xff] %v384
        %463 = vst [vmem:[%s167 + $0x10] sm:$0xff] %v387
        %464 = vst [vmem:[%s167 + $0x18] sm:$0xff] %v389
        %465 = vst [vmem:[%s167 + $0x20] sm:$0xff] %v392
        %466 = vst [vmem:[%s167 + $0x28] sm:$0xff] %v394
        %467 = vst [vmem:[%s167 + $0x30] sm:$0xff] %v397
        %468 = vst [vmem:[%s167 + $0x38] sm:$0xff] %v399
        %469 = vst [vmem:[%s167 + $0x40] sm:$0xff] %v402
        %470 = vst [vmem:[%s167 + $0x48] sm:$0xff] %v404
        %471 = vst [vmem:[%s167 + $0x50] sm:$0xff] %v407
        %472 = vst [vmem:[%s167 + $0x58] sm:$0xff] %v409
        %473 = vst [vmem:[%s167 + $0x60] sm:$0xff] %v412
        %474 = vst [vmem:[%s167 + $0x68] sm:$0xff] %v414
        %475 = vst [vmem:[%s167 + $0x70] sm:$0xff] %v417
        %476 = vst [vmem:[%s167 + $0x78] sm:$0xff] %v419
        %477 = vst [vmem:[%s167 + $0x80] sm:$0xff] %v422
        %478 = vst [vmem:[%s167 + $0x88] sm:$0xff] %v424
        %479 = vst [vmem:[%s167 + $0x90] sm:$0xff] %v427
        %480 = vst [vmem:[%s167 + $0x98] sm:$0xff] %v429
        %481 = vst [vmem:[%s167 + $0xa0] sm:$0xff] %v432
        %482 = vst [vmem:[%s167 + $0xa8] sm:$0xff] %v434
        %483 = vst [vmem:[%s167 + $0xb0] sm:$0xff] %v437
        %484 = vst [vmem:[%s167 + $0xb8] sm:$0xff] %v439
        %485 = vst [vmem:[%s167 + $0xc0] sm:$0xff] %v442
        %486 = vst [vmem:[%s167 + $0xc8] sm:$0xff] %v444
        %487 = vst [vmem:[%s167 + $0xd0] sm:$0xff] %v447
        %488 = vst [vmem:[%s167 + $0xd8] sm:$0xff] %v449
        %489 = vst [vmem:[%s167 + $0xe0] sm:$0xff] %v452
        %490 = vst [vmem:[%s167 + $0xe8] sm:$0xff] %v454
        %491 = vst [vmem:[%s167 + $0xf0] sm:$0xff] %v457
        %492 = vst [vmem:[%s167 + $0xf8] sm:$0xff] %v459
        %v493 = vld [vmem:[%s179] sm:$0xf]
        %v494 = vld [vmem:[%s179 + $0x4] sm:$0xf]
        %v495 = vld [vmem:[%s179 + $0x8] sm:$0x1]
        %v496 = vld [vmem:[%s179 + $0xc] sm:$0xf]
        %v497 = vld [vmem:[%s179 + $0x10] sm:$0xf]
        %v498 = vld [vmem:[%s179 + $0x14] sm:$0x1]
        %v499 = vld [vmem:[%s179 + $0x18] sm:$0xf]
        %v500 = vld [vmem:[%s179 + $0x1c] sm:$0xf]
        %v501 = vld [vmem:[%s179 + $0x20] sm:$0x1]
        %v502 = vld [vmem:[%s179 + $0x24] sm:$0xf]
        %v503 = vld [vmem:[%s179 + $0x28] sm:$0xf]
        %v504 = vld [vmem:[%s179 + $0x2c] sm:$0x1]
        %v505 = vld [vmem:[%s179 + $0x30] sm:$0xf]
        %v506 = vld [vmem:[%s179 + $0x34] sm:$0xf]
        %v507 = vld [vmem:[%s179 + $0x38] sm:$0x1]
        %v508 = vld [vmem:[%s179 + $0x3c] sm:$0xf]
        %v509 = vld [vmem:[%s179 + $0x40] sm:$0xf]
        %v510 = vld [vmem:[%s179 + $0x44] sm:$0x1]
        %v511 = vld [vmem:[%s179 + $0x48] sm:$0xf]
        %v512 = vld [vmem:[%s179 + $0x4c] sm:$0xf]
        %v513 = vld [vmem:[%s179 + $0x50] sm:$0x1]
        %v514 = vld [vmem:[%s179 + $0x54] sm:$0xf]
        %v515 = vld [vmem:[%s179 + $0x58] sm:$0xf]
        %v516 = vld [vmem:[%s179 + $0x5c] sm:$0x1]
        %v517 = vld [vmem:[%s179 + $0x60] sm:$0xf]
        %v518 = vld [vmem:[%s179 + $0x64] sm:$0xf]
        %v519 = vld [vmem:[%s179 + $0x68] sm:$0x1]
        %v520 = vld [vmem:[%s179 + $0x6c] sm:$0xf]
        %v521 = vld [vmem:[%s179 + $0x70] sm:$0xf]
        %v522 = vld [vmem:[%s179 + $0x74] sm:$0x1]
        %v523 = vld [vmem:[%s179 + $0x78] sm:$0xf]
        %v524 = vld [vmem:[%s179 + $0x7c] sm:$0xf]
        %v525 = vld [vmem:[%s179 + $0x80] sm:$0x1]
        %v526 = vld [vmem:[%s179 + $0x84] sm:$0xf]
        %v527 = vld [vmem:[%s179 + $0x88] sm:$0xf]
        %v528 = vld [vmem:[%s179 + $0x8c] sm:$0x1]
        %v529 = vld [vmem:[%s179 + $0x90] sm:$0xf]
        %v530 = vld [vmem:[%s179 + $0x94] sm:$0xf]
        %v531 = vld [vmem:[%s179 + $0x98] sm:$0x1]
        %v532 = vld [vmem:[%s179 + $0x9c] sm:$0xf]
        %v533 = vld [vmem:[%s179 + $0xa0] sm:$0xf]
        %v534 = vld [vmem:[%s179 + $0xa4] sm:$0x1]
        %v535 = vld [vmem:[%s179 + $0xa8] sm:$0xf]
        %v536 = vld [vmem:[%s179 + $0xac] sm:$0xf]
        %v537 = vld [vmem:[%s179 + $0xb0] sm:$0x1]
        %v538 = vld [vmem:[%s179 + $0xb4] sm:$0xf]
        %v539 = vld [vmem:[%s179 + $0xb8] sm:$0xf]
        %v540 = vld [vmem:[%s179 + $0xbc] sm:$0x1]
        %vm541 = vsmask.f32 3328
        %vm542 = vsmask.f32 7440
        %vm543 = vmor %vm541, %vm542
        %v545 = vshrl.u32 %v493, 16
        %v547 = vrot.slane %v545, 4
        %v548 = vshll.u32 %v493, 16
        %v550 = vrot.slane %v548, 5
        %v551 = vor.u32 %v547, %v550
        %v552 = vrot.slane %v551, 4
        %v554 = vshll.u32 %v494, 16
        %v556 = vrot.slane %v554, 5
        %v557 = vsel %vm543, %v552, %v556
        %v558 = vshrl.u32 %v494, 16
        %v560 = vrot.slane %v558, 4
        %v561 = vor.u32 %v560, %v556
        %v562 = vrot.slane %v561, 4
        %v564 = vshll.u32 %v495, 16
        %v566 = vrot.slane %v564, 5
        %v567 = vsel %vm543, %v562, %v566
        %v569 = vshrl.u32 %v496, 16
        %v571 = vrot.slane %v569, 4
        %v572 = vshll.u32 %v496, 16
        %v574 = vrot.slane %v572, 5
        %v575 = vor.u32 %v571, %v574
        %v576 = vrot.slane %v575, 4
        %v578 = vshll.u32 %v497, 16
        %v580 = vrot.slane %v578, 5
        %v581 = vsel %vm543, %v576, %v580
        %v582 = vshrl.u32 %v497, 16
        %v584 = vrot.slane %v582, 4
        %v585 = vor.u32 %v584, %v580
        %v586 = vrot.slane %v585, 4
        %v588 = vshll.u32 %v498, 16
        %v590 = vrot.slane %v588, 5
        %v591 = vsel %vm543, %v586, %v590
        %v593 = vshrl.u32 %v499, 16
        %v595 = vrot.slane %v593, 4
        %v596 = vshll.u32 %v499, 16
        %v598 = vrot.slane %v596, 5
        %v599 = vor.u32 %v595, %v598
        %v600 = vrot.slane %v599, 4
        %v602 = vshll.u32 %v500, 16
        %v604 = vrot.slane %v602, 5
        %v605 = vsel %vm543, %v600, %v604
        %v606 = vshrl.u32 %v500, 16
        %v608 = vrot.slane %v606, 4
        %v609 = vor.u32 %v608, %v604
        %v610 = vrot.slane %v609, 4
        %v612 = vshll.u32 %v501, 16
        %v614 = vrot.slane %v612, 5
        %v615 = vsel %vm543, %v610, %v614
        %v617 = vshrl.u32 %v502, 16
        %v619 = vrot.slane %v617, 4
        %v620 = vshll.u32 %v502, 16
        %v622 = vrot.slane %v620, 5
        %v623 = vor.u32 %v619, %v622
        %v624 = vrot.slane %v623, 4
        %v626 = vshll.u32 %v503, 16
        %v628 = vrot.slane %v626, 5
        %v629 = vsel %vm543, %v624, %v628
        %v630 = vshrl.u32 %v503, 16
        %v632 = vrot.slane %v630, 4
        %v633 = vor.u32 %v632, %v628
        %v634 = vrot.slane %v633, 4
        %v636 = vshll.u32 %v504, 16
        %v638 = vrot.slane %v636, 5
        %v639 = vsel %vm543, %v634, %v638
        %v641 = vshrl.u32 %v505, 16
        %v643 = vrot.slane %v641, 4
        %v644 = vshll.u32 %v505, 16
        %v646 = vrot.slane %v644, 5
        %v647 = vor.u32 %v643, %v646
        %v648 = vrot.slane %v647, 4
        %v650 = vshll.u32 %v506, 16
        %v652 = vrot.slane %v650, 5
        %v653 = vsel %vm543, %v648, %v652
        %v654 = vshrl.u32 %v506, 16
        %v656 = vrot.slane %v654, 4
        %v657 = vor.u32 %v656, %v652
        %v658 = vrot.slane %v657, 4
        %v660 = vshll.u32 %v507, 16
        %v662 = vrot.slane %v660, 5
        %v663 = vsel %vm543, %v658, %v662
        %v665 = vshrl.u32 %v508, 16
        %v667 = vrot.slane %v665, 4
        %v668 = vshll.u32 %v508, 16
        %v670 = vrot.slane %v668, 5
        %v671 = vor.u32 %v667, %v670
        %v672 = vrot.slane %v671, 4
        %v674 = vshll.u32 %v509, 16
        %v676 = vrot.slane %v674, 5
        %v677 = vsel %vm543, %v672, %v676
        %v678 = vshrl.u32 %v509, 16
        %v680 = vrot.slane %v678, 4
        %v681 = vor.u32 %v680, %v676
        %v682 = vrot.slane %v681, 4
        %v684 = vshll.u32 %v510, 16
        %v686 = vrot.slane %v684, 5
        %v687 = vsel %vm543, %v682, %v686
        %v689 = vshrl.u32 %v511, 16
        %v691 = vrot.slane %v689, 4
        %v692 = vshll.u32 %v511, 16
        %v694 = vrot.slane %v692, 5
        %v695 = vor.u32 %v691, %v694
        %v696 = vrot.slane %v695, 4
        %v698 = vshll.u32 %v512, 16
        %v700 = vrot.slane %v698, 5
        %v701 = vsel %vm543, %v696, %v700
        %v702 = vshrl.u32 %v512, 16
        %v704 = vrot.slane %v702, 4
        %v705 = vor.u32 %v704, %v700
        %v706 = vrot.slane %v705, 4
        %v708 = vshll.u32 %v513, 16
        %v710 = vrot.slane %v708, 5
        %v711 = vsel %vm543, %v706, %v710
        %v713 = vshrl.u32 %v514, 16
        %v715 = vrot.slane %v713, 4
        %v716 = vshll.u32 %v514, 16
        %v718 = vrot.slane %v716, 5
        %v719 = vor.u32 %v715, %v718
        %v720 = vrot.slane %v719, 4
        %v722 = vshll.u32 %v515, 16
        %v724 = vrot.slane %v722, 5
        %v725 = vsel %vm543, %v720, %v724
        %v726 = vshrl.u32 %v515, 16
        %v728 = vrot.slane %v726, 4
        %v729 = vor.u32 %v728, %v724
        %v730 = vrot.slane %v729, 4
        %v732 = vshll.u32 %v516, 16
        %v734 = vrot.slane %v732, 5
        %v735 = vsel %vm543, %v730, %v734
        %v737 = vshrl.u32 %v517, 16
        %v739 = vrot.slane %v737, 4
        %v740 = vshll.u32 %v517, 16
        %v742 = vrot.slane %v740, 5
        %v743 = vor.u32 %v739, %v742
        %v744 = vrot.slane %v743, 4
        %v746 = vshll.u32 %v518, 16
        %v748 = vrot.slane %v746, 5
        %v749 = vsel %vm543, %v744, %v748
        %v750 = vshrl.u32 %v518, 16
        %v752 = vrot.slane %v750, 4
        %v753 = vor.u32 %v752, %v748
        %v754 = vrot.slane %v753, 4
        %v756 = vshll.u32 %v519, 16
        %v758 = vrot.slane %v756, 5
        %v759 = vsel %vm543, %v754, %v758
        %v761 = vshrl.u32 %v520, 16
        %v763 = vrot.slane %v761, 4
        %v764 = vshll.u32 %v520, 16
        %v766 = vrot.slane %v764, 5
        %v767 = vor.u32 %v763, %v766
        %v768 = vrot.slane %v767, 4
        %v770 = vshll.u32 %v521, 16
        %v772 = vrot.slane %v770, 5
        %v773 = vsel %vm543, %v768, %v772
        %v774 = vshrl.u32 %v521, 16
        %v776 = vrot.slane %v774, 4
        %v777 = vor.u32 %v776, %v772
        %v778 = vrot.slane %v777, 4
        %v780 = vshll.u32 %v522, 16
        %v782 = vrot.slane %v780, 5
        %v783 = vsel %vm543, %v778, %v782
        %v785 = vshrl.u32 %v523, 16
        %v787 = vrot.slane %v785, 4
        %v788 = vshll.u32 %v523, 16
        %v790 = vrot.slane %v788, 5
        %v791 = vor.u32 %v787, %v790
        %v792 = vrot.slane %v791, 4
        %v794 = vshll.u32 %v524, 16
        %v796 = vrot.slane %v794, 5
        %v797 = vsel %vm543, %v792, %v796
        %v798 = vshrl.u32 %v524, 16
        %v800 = vrot.slane %v798, 4
        %v801 = vor.u32 %v800, %v796
        %v802 = vrot.slane %v801, 4
        %v804 = vshll.u32 %v525, 16
        %v806 = vrot.slane %v804, 5
        %v807 = vsel %vm543, %v802, %v806
        %v809 = vshrl.u32 %v526, 16
        %v811 = vrot.slane %v809, 4
        %v812 = vshll.u32 %v526, 16
        %v814 = vrot.slane %v812, 5
        %v815 = vor.u32 %v811, %v814
        %v816 = vrot.slane %v815, 4
        %v818 = vshll.u32 %v527, 16
        %v820 = vrot.slane %v818, 5
        %v821 = vsel %vm543, %v816, %v820
        %v822 = vshrl.u32 %v527, 16
        %v824 = vrot.slane %v822, 4
        %v825 = vor.u32 %v824, %v820
        %v826 = vrot.slane %v825, 4
        %v828 = vshll.u32 %v528, 16
        %v830 = vrot.slane %v828, 5
        %v831 = vsel %vm543, %v826, %v830
        %v833 = vshrl.u32 %v529, 16
        %v835 = vrot.slane %v833, 4
        %v836 = vshll.u32 %v529, 16
        %v838 = vrot.slane %v836, 5
        %v839 = vor.u32 %v835, %v838
        %v840 = vrot.slane %v839, 4
        %v842 = vshll.u32 %v530, 16
        %v844 = vrot.slane %v842, 5
        %v845 = vsel %vm543, %v840, %v844
        %v846 = vshrl.u32 %v530, 16
        %v848 = vrot.slane %v846, 4
        %v849 = vor.u32 %v848, %v844
        %v850 = vrot.slane %v849, 4
        %v852 = vshll.u32 %v531, 16
        %v854 = vrot.slane %v852, 5
        %v855 = vsel %vm543, %v850, %v854
        %v857 = vshrl.u32 %v532, 16
        %v859 = vrot.slane %v857, 4
        %v860 = vshll.u32 %v532, 16
        %v862 = vrot.slane %v860, 5
        %v863 = vor.u32 %v859, %v862
        %v864 = vrot.slane %v863, 4
        %v866 = vshll.u32 %v533, 16
        %v868 = vrot.slane %v866, 5
        %v869 = vsel %vm543, %v864, %v868
        %v870 = vshrl.u32 %v533, 16
        %v872 = vrot.slane %v870, 4
        %v873 = vor.u32 %v872, %v868
        %v874 = vrot.slane %v873, 4
        %v876 = vshll.u32 %v534, 16
        %v878 = vrot.slane %v876, 5
        %v879 = vsel %vm543, %v874, %v878
        %v881 = vshrl.u32 %v535, 16
        %v883 = vrot.slane %v881, 4
        %v884 = vshll.u32 %v535, 16
        %v886 = vrot.slane %v884, 5
        %v887 = vor.u32 %v883, %v886
        %v888 = vrot.slane %v887, 4
        %v890 = vshll.u32 %v536, 16
        %v892 = vrot.slane %v890, 5
        %v893 = vsel %vm543, %v888, %v892
        %v894 = vshrl.u32 %v536, 16
        %v896 = vrot.slane %v894, 4
        %v897 = vor.u32 %v896, %v892
        %v898 = vrot.slane %v897, 4
        %v900 = vshll.u32 %v537, 16
        %v902 = vrot.slane %v900, 5
        %v903 = vsel %vm543, %v898, %v902
        %v905 = vshrl.u32 %v538, 16
        %v907 = vrot.slane %v905, 4
        %v908 = vshll.u32 %v538, 16
        %v910 = vrot.slane %v908, 5
        %v911 = vor.u32 %v907, %v910
        %v912 = vrot.slane %v911, 4
        %v914 = vshll.u32 %v539, 16
        %v916 = vrot.slane %v914, 5
        %v917 = vsel %vm543, %v912, %v916
        %v918 = vshrl.u32 %v539, 16
        %v920 = vrot.slane %v918, 4
        %v921 = vor.u32 %v920, %v916
        %v922 = vrot.slane %v921, 4
        %v924 = vshll.u32 %v540, 16
        %v926 = vrot.slane %v924, 5
        %v927 = vsel %vm543, %v922, %v926
        %s928 = scalar_lea.vmem %s1, 64
        %v929 = vld [vmem:[%s928] sm:$0xf]
        %v930 = vld [vmem:[%s928 + $0x4] sm:$0xf]
        %v931 = vld [vmem:[%s928 + $0x8] sm:$0xf]
        %v932 = vld [vmem:[%s928 + $0xc] sm:$0xf]
        %v933 = vld [vmem:[%s928 + $0x10] sm:$0xf]
        %v934 = vld [vmem:[%s928 + $0x14] sm:$0xf]
        %v935 = vld [vmem:[%s928 + $0x18] sm:$0xf]
        %v936 = vld [vmem:[%s928 + $0x1c] sm:$0xf]
        %v937 = vld [vmem:[%s928 + $0x20] sm:$0xf]
        %v938 = vld [vmem:[%s928 + $0x24] sm:$0xf]
        %v939 = vld [vmem:[%s928 + $0x28] sm:$0xf]
        %v940 = vld [vmem:[%s928 + $0x2c] sm:$0xf]
        %v941 = vld [vmem:[%s928 + $0x30] sm:$0xf]
        %v942 = vld [vmem:[%s928 + $0x34] sm:$0xf]
        %v943 = vld [vmem:[%s928 + $0x38] sm:$0xf]
        %v944 = vld [vmem:[%s928 + $0x3c] sm:$0xf]
        %v945 = vunpack.c.l.b16 %v557
        %v946 = vunpack.c.l.b16 %v567
        %v947 = vunpack.c.l.b16 %v581
        %v948 = vunpack.c.l.b16 %v591
        %v949 = vunpack.c.l.b16 %v605
        %v950 = vunpack.c.l.b16 %v615
        %v951 = vunpack.c.l.b16 %v629
        %v952 = vunpack.c.l.b16 %v639
        %v953 = vunpack.c.l.b16 %v653
        %v954 = vunpack.c.l.b16 %v663
        %v955 = vunpack.c.l.b16 %v677
        %v956 = vunpack.c.l.b16 %v687
        %v957 = vunpack.c.l.b16 %v701
        %v958 = vunpack.c.l.b16 %v711
        %v959 = vunpack.c.l.b16 %v725
        %v960 = vunpack.c.l.b16 %v735
        %v961 = vunpack.c.l.b16 %v749
        %v962 = vunpack.c.l.b16 %v759
        %v963 = vunpack.c.l.b16 %v773
        %v964 = vunpack.c.l.b16 %v783
        %v965 = vunpack.c.l.b16 %v797
        %v966 = vunpack.c.l.b16 %v807
        %v967 = vunpack.c.l.b16 %v821
        %v968 = vunpack.c.l.b16 %v831
        %v969 = vunpack.c.l.b16 %v845
        %v970 = vunpack.c.l.b16 %v855
        %v971 = vunpack.c.l.b16 %v869
        %v972 = vunpack.c.l.b16 %v879
        %v973 = vunpack.c.l.b16 %v893
        %v974 = vunpack.c.l.b16 %v903
        %v975 = vunpack.c.l.b16 %v917
        %v976 = vunpack.c.l.b16 %v927
        %v977 = vpack.c.b16 %v946, %v945
        %v978 = vpack.c.b16 %v948, %v947
        %v979 = vpack.c.b16 %v950, %v949
        %v980 = vpack.c.b16 %v952, %v951
        %v981 = vpack.c.b16 %v954, %v953
        %v982 = vpack.c.b16 %v956, %v955
        %v983 = vpack.c.b16 %v958, %v957
        %v984 = vpack.c.b16 %v960, %v959
        %v985 = vpack.c.b16 %v962, %v961
        %v986 = vpack.c.b16 %v964, %v963
        %v987 = vpack.c.b16 %v966, %v965
        %v988 = vpack.c.b16 %v968, %v967
        %v989 = vpack.c.b16 %v970, %v969
        %v990 = vpack.c.b16 %v972, %v971
        %v991 = vpack.c.b16 %v974, %v973
        %v992 = vpack.c.b16 %v976, %v975
        %v1025 = vunpack.c.l.b16 %v929
        %v1026 = vunpack.c.l.b16 %v930
        %v1027 = vunpack.c.l.b16 %v931
        %v1028 = vunpack.c.l.b16 %v932
        %v1029 = vunpack.c.l.b16 %v933
        %v1030 = vunpack.c.l.b16 %v934
        %v1031 = vunpack.c.l.b16 %v935
        %v1032 = vunpack.c.l.b16 %v936
        %v1033 = vunpack.c.l.b16 %v937
        %v1034 = vunpack.c.l.b16 %v938
        %v1035 = vunpack.c.l.b16 %v939
        %v1036 = vunpack.c.l.b16 %v940
        %v1037 = vunpack.c.l.b16 %v941
        %v1038 = vunpack.c.l.b16 %v942
        %v1039 = vunpack.c.l.b16 %v943
        %v1040 = vunpack.c.l.b16 %v944
        %v1041 = vpack.c.b16 %v1026, %v1025
        %v1042 = vpack.c.b16 %v1028, %v1027
        %v1043 = vpack.c.b16 %v1030, %v1029
        %v1044 = vpack.c.b16 %v1032, %v1031
        %v1045 = vpack.c.b16 %v1034, %v1033
        %v1046 = vpack.c.b16 %v1036, %v1035
        %v1047 = vpack.c.b16 %v1038, %v1037
        %v1048 = vpack.c.b16 %v1040, %v1039
        %1057 = vmatpush.bf16.msra.mxu0 %v1048
        %1058 = vmatpush.bf16.msra.mxu0 %v1047
        %1059 = vmatpush.bf16.msra.mxu0 %v1046
        %1060 = vmatpush.bf16.msra.mxu0 %v1045
        %1061 = vmatpush.bf16.msra.mxu0 %v1044
        %1062 = vmatpush.bf16.msra.mxu0 %v1043
        %1063 = vmatpush.bf16.msra.mxu0 %v1042
        %1064 = vmatpush.bf16.msra.mxu0 %v1041
        %1065 = vmatmul.bf16.gmra.mxu0 %v977
        %v1066 = vpop.f32.mrf.mxu0
        %v1067 = vadd.f32 0.0, %v1066
        %v1068 = vpop.f32.mrf.mxu0
        %v1069 = vadd.f32 0.0, %v1068
        %1070 = vmatmul.bf16.gmra.mxu0 %v978
        %v1071 = vpop.f32.mrf.mxu0
        %v1072 = vadd.f32 0.0, %v1071
        %v1073 = vpop.f32.mrf.mxu0
        %v1074 = vadd.f32 0.0, %v1073
        %1075 = vmatmul.bf16.gmra.mxu0 %v979
        %v1076 = vpop.f32.mrf.mxu0
        %v1077 = vadd.f32 0.0, %v1076
        %v1078 = vpop.f32.mrf.mxu0
        %v1079 = vadd.f32 0.0, %v1078
        %1080 = vmatmul.bf16.gmra.mxu0 %v980
        %v1081 = vpop.f32.mrf.mxu0
        %v1082 = vadd.f32 0.0, %v1081
        %v1083 = vpop.f32.mrf.mxu0
        %v1084 = vadd.f32 0.0, %v1083
        %1085 = vmatmul.bf16.gmra.mxu0 %v981
        %v1086 = vpop.f32.mrf.mxu0
        %v1087 = vadd.f32 0.0, %v1086
        %v1088 = vpop.f32.mrf.mxu0
        %v1089 = vadd.f32 0.0, %v1088
        %1090 = vmatmul.bf16.gmra.mxu0 %v982
        %v1091 = vpop.f32.mrf.mxu0
        %v1092 = vadd.f32 0.0, %v1091
        %v1093 = vpop.f32.mrf.mxu0
        %v1094 = vadd.f32 0.0, %v1093
        %1095 = vmatmul.bf16.gmra.mxu0 %v983
        %v1096 = vpop.f32.mrf.mxu0
        %v1097 = vadd.f32 0.0, %v1096
        %v1098 = vpop.f32.mrf.mxu0
        %v1099 = vadd.f32 0.0, %v1098
        %1100 = vmatmul.bf16.gmra.mxu0 %v984
        %v1101 = vpop.f32.mrf.mxu0
        %v1102 = vadd.f32 0.0, %v1101
        %v1103 = vpop.f32.mrf.mxu0
        %v1104 = vadd.f32 0.0, %v1103
        %1105 = vmatmul.bf16.gmra.mxu0 %v985
        %v1106 = vpop.f32.mrf.mxu0
        %v1107 = vadd.f32 0.0, %v1106
        %v1108 = vpop.f32.mrf.mxu0
        %v1109 = vadd.f32 0.0, %v1108
        %1110 = vmatmul.bf16.gmra.mxu0 %v986
        %v1111 = vpop.f32.mrf.mxu0
        %v1112 = vadd.f32 0.0, %v1111
        %v1113 = vpop.f32.mrf.mxu0
        %v1114 = vadd.f32 0.0, %v1113
        %1115 = vmatmul.bf16.gmra.mxu0 %v987
        %v1116 = vpop.f32.mrf.mxu0
        %v1117 = vadd.f32 0.0, %v1116
        %v1118 = vpop.f32.mrf.mxu0
        %v1119 = vadd.f32 0.0, %v1118
        %1120 = vmatmul.bf16.gmra.mxu0 %v988
        %v1121 = vpop.f32.mrf.mxu0
        %v1122 = vadd.f32 0.0, %v1121
        %v1123 = vpop.f32.mrf.mxu0
        %v1124 = vadd.f32 0.0, %v1123
        %1125 = vmatmul.bf16.gmra.mxu0 %v989
        %v1126 = vpop.f32.mrf.mxu0
        %v1127 = vadd.f32 0.0, %v1126
        %v1128 = vpop.f32.mrf.mxu0
        %v1129 = vadd.f32 0.0, %v1128
        %1130 = vmatmul.bf16.gmra.mxu0 %v990
        %v1131 = vpop.f32.mrf.mxu0
        %v1132 = vadd.f32 0.0, %v1131
        %v1133 = vpop.f32.mrf.mxu0
        %v1134 = vadd.f32 0.0, %v1133
        %1135 = vmatmul.bf16.gmra.mxu0 %v991
        %v1136 = vpop.f32.mrf.mxu0
        %v1137 = vadd.f32 0.0, %v1136
        %v1138 = vpop.f32.mrf.mxu0
        %v1139 = vadd.f32 0.0, %v1138
        %1140 = vmatmul.bf16.gmra.mxu0 %v992
        %v1141 = vpop.f32.mrf.mxu0
        %v1142 = vadd.f32 0.0, %v1141
        %v1143 = vpop.f32.mrf.mxu0
        %v1144 = vadd.f32 0.0, %v1143
        %1145 = vdwg.mxu0
        %v1146 = vld [vmem:[%s167] sm:$0xff]
        %v1147 = vld [vmem:[%s167 + $0x8] sm:$0xff]
        %v1148 = vld [vmem:[%s167 + $0x10] sm:$0xff]
        %v1149 = vld [vmem:[%s167 + $0x18] sm:$0xff]
        %v1150 = vld [vmem:[%s167 + $0x20] sm:$0xff]
        %v1151 = vld [vmem:[%s167 + $0x28] sm:$0xff]
        %v1152 = vld [vmem:[%s167 + $0x30] sm:$0xff]
        %v1153 = vld [vmem:[%s167 + $0x38] sm:$0xff]
        %v1154 = vld [vmem:[%s167 + $0x40] sm:$0xff]
        %v1155 = vld [vmem:[%s167 + $0x48] sm:$0xff]
        %v1156 = vld [vmem:[%s167 + $0x50] sm:$0xff]
        %v1157 = vld [vmem:[%s167 + $0x58] sm:$0xff]
        %v1158 = vld [vmem:[%s167 + $0x60] sm:$0xff]
        %v1159 = vld [vmem:[%s167 + $0x68] sm:$0xff]
        %v1160 = vld [vmem:[%s167 + $0x70] sm:$0xff]
        %v1161 = vld [vmem:[%s167 + $0x78] sm:$0xff]
        %v1162 = vld [vmem:[%s167 + $0x80] sm:$0xff]
        %v1163 = vld [vmem:[%s167 + $0x88] sm:$0xff]
        %v1164 = vld [vmem:[%s167 + $0x90] sm:$0xff]
        %v1165 = vld [vmem:[%s167 + $0x98] sm:$0xff]
        %v1166 = vld [vmem:[%s167 + $0xa0] sm:$0xff]
        %v1167 = vld [vmem:[%s167 + $0xa8] sm:$0xff]
        %v1168 = vld [vmem:[%s167 + $0xb0] sm:$0xff]
        %v1169 = vld [vmem:[%s167 + $0xb8] sm:$0xff]
        %v1170 = vld [vmem:[%s167 + $0xc0] sm:$0xff]
        %v1171 = vld [vmem:[%s167 + $0xc8] sm:$0xff]
        %v1172 = vld [vmem:[%s167 + $0xd0] sm:$0xff]
        %v1173 = vld [vmem:[%s167 + $0xd8] sm:$0xff]
        %v1174 = vld [vmem:[%s167 + $0xe0] sm:$0xff]
        %v1175 = vld [vmem:[%s167 + $0xe8] sm:$0xff]
        %v1176 = vld [vmem:[%s167 + $0xf0] sm:$0xff]
        %v1177 = vld [vmem:[%s167 + $0xf8] sm:$0xff]
        %v1178 = vadd.f32 %v1146, %v1067
        %v1179 = vadd.f32 %v1147, %v1069
        %v1180 = vadd.f32 %v1148, %v1072
        %v1181 = vadd.f32 %v1149, %v1074
        %v1182 = vadd.f32 %v1150, %v1077
        %v1183 = vadd.f32 %v1151, %v1079
        %v1184 = vadd.f32 %v1152, %v1082
        %v1185 = vadd.f32 %v1153, %v1084
        %v1186 = vadd.f32 %v1154, %v1087
        %v1187 = vadd.f32 %v1155, %v1089
        %v1188 = vadd.f32 %v1156, %v1092
        %v1189 = vadd.f32 %v1157, %v1094
        %v1190 = vadd.f32 %v1158, %v1097
        %v1191 = vadd.f32 %v1159, %v1099
        %v1192 = vadd.f32 %v1160, %v1102
        %v1193 = vadd.f32 %v1161, %v1104
        %v1194 = vadd.f32 %v1162, %v1107
        %v1195 = vadd.f32 %v1163, %v1109
        %v1196 = vadd.f32 %v1164, %v1112
        %v1197 = vadd.f32 %v1165, %v1114
        %v1198 = vadd.f32 %v1166, %v1117
        %v1199 = vadd.f32 %v1167, %v1119
        %v1200 = vadd.f32 %v1168, %v1122
        %v1201 = vadd.f32 %v1169, %v1124
        %v1202 = vadd.f32 %v1170, %v1127
        %v1203 = vadd.f32 %v1171, %v1129
        %v1204 = vadd.f32 %v1172, %v1132
        %v1205 = vadd.f32 %v1173, %v1134
        %v1206 = vadd.f32 %v1174, %v1137
        %v1207 = vadd.f32 %v1175, %v1139
        %v1208 = vadd.f32 %v1176, %v1142
        %v1209 = vadd.f32 %v1177, %v1144
        %1210 = vst [vmem:[%s167] sm:$0xff] %v1178
        %1211 = vst [vmem:[%s167 + $0x8] sm:$0xff] %v1179
        %1212 = vst [vmem:[%s167 + $0x10] sm:$0xff] %v1180
        %1213 = vst [vmem:[%s167 + $0x18] sm:$0xff] %v1181
        %1214 = vst [vmem:[%s167 + $0x20] sm:$0xff] %v1182
        %1215 = vst [vmem:[%s167 + $0x28] sm:$0xff] %v1183
        %1216 = vst [vmem:[%s167 + $0x30] sm:$0xff] %v1184
        %1217 = vst [vmem:[%s167 + $0x38] sm:$0xff] %v1185
        %1218 = vst [vmem:[%s167 + $0x40] sm:$0xff] %v1186
        %1219 = vst [vmem:[%s167 + $0x48] sm:$0xff] %v1187
        %1220 = vst [vmem:[%s167 + $0x50] sm:$0xff] %v1188
        %1221 = vst [vmem:[%s167 + $0x58] sm:$0xff] %v1189
        %1222 = vst [vmem:[%s167 + $0x60] sm:$0xff] %v1190
        %1223 = vst [vmem:[%s167 + $0x68] sm:$0xff] %v1191
        %1224 = vst [vmem:[%s167 + $0x70] sm:$0xff] %v1192
        %1225 = vst [vmem:[%s167 + $0x78] sm:$0xff] %v1193
        %1226 = vst [vmem:[%s167 + $0x80] sm:$0xff] %v1194
        %1227 = vst [vmem:[%s167 + $0x88] sm:$0xff] %v1195
        %1228 = vst [vmem:[%s167 + $0x90] sm:$0xff] %v1196
        %1229 = vst [vmem:[%s167 + $0x98] sm:$0xff] %v1197
        %1230 = vst [vmem:[%s167 + $0xa0] sm:$0xff] %v1198
        %1231 = vst [vmem:[%s167 + $0xa8] sm:$0xff] %v1199
        %1232 = vst [vmem:[%s167 + $0xb0] sm:$0xff] %v1200
        %1233 = vst [vmem:[%s167 + $0xb8] sm:$0xff] %v1201
        %1234 = vst [vmem:[%s167 + $0xc0] sm:$0xff] %v1202
        %1235 = vst [vmem:[%s167 + $0xc8] sm:$0xff] %v1203
        %1236 = vst [vmem:[%s167 + $0xd0] sm:$0xff] %v1204
        %1237 = vst [vmem:[%s167 + $0xd8] sm:$0xff] %v1205
        %1238 = vst [vmem:[%s167 + $0xe0] sm:$0xff] %v1206
        %1239 = vst [vmem:[%s167 + $0xe8] sm:$0xff] %v1207
        %1240 = vst [vmem:[%s167 + $0xf0] sm:$0xff] %v1208
        %1241 = vst [vmem:[%s167 + $0xf8] sm:$0xff] %v1209
        %v1242 = vld [vmem:[%s179] sm:$0xe]
        %v1243 = vld [vmem:[%s179 + $0x4] sm:$0xf]
        %v1244 = vld [vmem:[%s179 + $0x8] sm:$0x1]
        %v1245 = vld [vmem:[%s179 + $0xc] sm:$0xe]
        %v1246 = vld [vmem:[%s179 + $0x10] sm:$0xf]
        %v1247 = vld [vmem:[%s179 + $0x14] sm:$0x1]
        %v1248 = vld [vmem:[%s179 + $0x18] sm:$0xe]
        %v1249 = vld [vmem:[%s179 + $0x1c] sm:$0xf]
        %v1250 = vld [vmem:[%s179 + $0x20] sm:$0x1]
        %v1251 = vld [vmem:[%s179 + $0x24] sm:$0xe]
        %v1252 = vld [vmem:[%s179 + $0x28] sm:$0xf]
        %v1253 = vld [vmem:[%s179 + $0x2c] sm:$0x1]
        %v1254 = vld [vmem:[%s179 + $0x30] sm:$0xe]
        %v1255 = vld [vmem:[%s179 + $0x34] sm:$0xf]
        %v1256 = vld [vmem:[%s179 + $0x38] sm:$0x1]
        %v1257 = vld [vmem:[%s179 + $0x3c] sm:$0xe]
        %v1258 = vld [vmem:[%s179 + $0x40] sm:$0xf]
        %v1259 = vld [vmem:[%s179 + $0x44] sm:$0x1]
        %v1260 = vld [vmem:[%s179 + $0x48] sm:$0xe]
        %v1261 = vld [vmem:[%s179 + $0x4c] sm:$0xf]
        %v1262 = vld [vmem:[%s179 + $0x50] sm:$0x1]
        %v1263 = vld [vmem:[%s179 + $0x54] sm:$0xe]
        %v1264 = vld [vmem:[%s179 + $0x58] sm:$0xf]
        %v1265 = vld [vmem:[%s179 + $0x5c] sm:$0x1]
        %v1266 = vld [vmem:[%s179 + $0x60] sm:$0xe]
        %v1267 = vld [vmem:[%s179 + $0x64] sm:$0xf]
        %v1268 = vld [vmem:[%s179 + $0x68] sm:$0x1]
        %v1269 = vld [vmem:[%s179 + $0x6c] sm:$0xe]
        %v1270 = vld [vmem:[%s179 + $0x70] sm:$0xf]
        %v1271 = vld [vmem:[%s179 + $0x74] sm:$0x1]
        %v1272 = vld [vmem:[%s179 + $0x78] sm:$0xe]
        %v1273 = vld [vmem:[%s179 + $0x7c] sm:$0xf]
        %v1274 = vld [vmem:[%s179 + $0x80] sm:$0x1]
        %v1275 = vld [vmem:[%s179 + $0x84] sm:$0xe]
        %v1276 = vld [vmem:[%s179 + $0x88] sm:$0xf]
        %v1277 = vld [vmem:[%s179 + $0x8c] sm:$0x1]
        %v1278 = vld [vmem:[%s179 + $0x90] sm:$0xe]
        %v1279 = vld [vmem:[%s179 + $0x94] sm:$0xf]
        %v1280 = vld [vmem:[%s179 + $0x98] sm:$0x1]
        %v1281 = vld [vmem:[%s179 + $0x9c] sm:$0xe]
        %v1282 = vld [vmem:[%s179 + $0xa0] sm:$0xf]
        %v1283 = vld [vmem:[%s179 + $0xa4] sm:$0x1]
        %v1284 = vld [vmem:[%s179 + $0xa8] sm:$0xe]
        %v1285 = vld [vmem:[%s179 + $0xac] sm:$0xf]
        %v1286 = vld [vmem:[%s179 + $0xb0] sm:$0x1]
        %v1287 = vld [vmem:[%s179 + $0xb4] sm:$0xe]
        %v1288 = vld [vmem:[%s179 + $0xb8] sm:$0xf]
        %v1289 = vld [vmem:[%s179 + $0xbc] sm:$0x1]
        %vm1338 = vcmask 1042432
        %vm1339 = vcmask 1046532
        %vm1340 = vmor %vm1338, %vm1339
        %v1341 = vrot.slane %v1242, 5
        %v1342 = vrot.slane %v1341, 4
        %v1343 = vrot.slane %v1243, 5
        %v1344 = vsel %vm1340, %v1342, %v1343
        %v1345 = vrot.slane %v1343, 4
        %v1346 = vrot.slane %v1244, 5
        %v1347 = vsel %vm1340, %v1345, %v1346
        %v1348 = vrot.slane %v1245, 5
        %v1349 = vrot.slane %v1348, 4
        %v1350 = vrot.slane %v1246, 5
        %v1351 = vsel %vm1340, %v1349, %v1350
        %v1352 = vrot.slane %v1350, 4
        %v1353 = vrot.slane %v1247, 5
        %v1354 = vsel %vm1340, %v1352, %v1353
        %v1355 = vrot.slane %v1248, 5
        %v1356 = vrot.slane %v1355, 4
        %v1357 = vrot.slane %v1249, 5
        %v1358 = vsel %vm1340, %v1356, %v1357
        %v1359 = vrot.slane %v1357, 4
        %v1360 = vrot.slane %v1250, 5
        %v1361 = vsel %vm1340, %v1359, %v1360
        %v1362 = vrot.slane %v1251, 5
        %v1363 = vrot.slane %v1362, 4
        %v1364 = vrot.slane %v1252, 5
        %v1365 = vsel %vm1340, %v1363, %v1364
        %v1366 = vrot.slane %v1364, 4
        %v1367 = vrot.slane %v1253, 5
        %v1368 = vsel %vm1340, %v1366, %v1367
        %v1369 = vrot.slane %v1254, 5
        %v1370 = vrot.slane %v1369, 4
        %v1371 = vrot.slane %v1255, 5
        %v1372 = vsel %vm1340, %v1370, %v1371
        %v1373 = vrot.slane %v1371, 4
        %v1374 = vrot.slane %v1256, 5
        %v1375 = vsel %vm1340, %v1373, %v1374
        %v1376 = vrot.slane %v1257, 5
        %v1377 = vrot.slane %v1376, 4
        %v1378 = vrot.slane %v1258, 5
        %v1379 = vsel %vm1340, %v1377, %v1378
        %v1380 = vrot.slane %v1378, 4
        %v1381 = vrot.slane %v1259, 5
        %v1382 = vsel %vm1340, %v1380, %v1381
        %v1383 = vrot.slane %v1260, 5
        %v1384 = vrot.slane %v1383, 4
        %v1385 = vrot.slane %v1261, 5
        %v1386 = vsel %vm1340, %v1384, %v1385
        %v1387 = vrot.slane %v1385, 4
        %v1388 = vrot.slane %v1262, 5
        %v1389 = vsel %vm1340, %v1387, %v1388
        %v1390 = vrot.slane %v1263, 5
        %v1391 = vrot.slane %v1390, 4
        %v1392 = vrot.slane %v1264, 5
        %v1393 = vsel %vm1340, %v1391, %v1392
        %v1394 = vrot.slane %v1392, 4
        %v1395 = vrot.slane %v1265, 5
        %v1396 = vsel %vm1340, %v1394, %v1395
        %v1397 = vrot.slane %v1266, 5
        %v1398 = vrot.slane %v1397, 4
        %v1399 = vrot.slane %v1267, 5
        %v1400 = vsel %vm1340, %v1398, %v1399
        %v1401 = vrot.slane %v1399, 4
        %v1402 = vrot.slane %v1268, 5
        %v1403 = vsel %vm1340, %v1401, %v1402
        %v1404 = vrot.slane %v1269, 5
        %v1405 = vrot.slane %v1404, 4
        %v1406 = vrot.slane %v1270, 5
        %v1407 = vsel %vm1340, %v1405, %v1406
        %v1408 = vrot.slane %v1406, 4
        %v1409 = vrot.slane %v1271, 5
        %v1410 = vsel %vm1340, %v1408, %v1409
        %v1411 = vrot.slane %v1272, 5
        %v1412 = vrot.slane %v1411, 4
        %v1413 = vrot.slane %v1273, 5
        %v1414 = vsel %vm1340, %v1412, %v1413
        %v1415 = vrot.slane %v1413, 4
        %v1416 = vrot.slane %v1274, 5
        %v1417 = vsel %vm1340, %v1415, %v1416
        %v1418 = vrot.slane %v1275, 5
        %v1419 = vrot.slane %v1418, 4
        %v1420 = vrot.slane %v1276, 5
        %v1421 = vsel %vm1340, %v1419, %v1420
        %v1422 = vrot.slane %v1420, 4
        %v1423 = vrot.slane %v1277, 5
        %v1424 = vsel %vm1340, %v1422, %v1423
        %v1425 = vrot.slane %v1278, 5
        %v1426 = vrot.slane %v1425, 4
        %v1427 = vrot.slane %v1279, 5
        %v1428 = vsel %vm1340, %v1426, %v1427
        %v1429 = vrot.slane %v1427, 4
        %v1430 = vrot.slane %v1280, 5
        %v1431 = vsel %vm1340, %v1429, %v1430
        %v1432 = vrot.slane %v1281, 5
        %v1433 = vrot.slane %v1432, 4
        %v1434 = vrot.slane %v1282, 5
        %v1435 = vsel %vm1340, %v1433, %v1434
        %v1436 = vrot.slane %v1434, 4
        %v1437 = vrot.slane %v1283, 5
        %v1438 = vsel %vm1340, %v1436, %v1437
        %v1439 = vrot.slane %v1284, 5
        %v1440 = vrot.slane %v1439, 4
        %v1441 = vrot.slane %v1285, 5
        %v1442 = vsel %vm1340, %v1440, %v1441
        %v1443 = vrot.slane %v1441, 4
        %v1444 = vrot.slane %v1286, 5
        %v1445 = vsel %vm1340, %v1443, %v1444
        %v1446 = vrot.slane %v1287, 5
        %v1447 = vrot.slane %v1446, 4
        %v1448 = vrot.slane %v1288, 5
        %v1449 = vsel %vm1340, %v1447, %v1448
        %v1450 = vrot.slane %v1448, 4
        %v1451 = vrot.slane %v1289, 5
        %v1452 = vsel %vm1340, %v1450, %v1451
        %s1453 = scalar_lea.vmem %s1, 128
        %v1454 = vld [vmem:[%s1453] sm:$0xf]
        %v1455 = vld [vmem:[%s1453 + $0x4] sm:$0xf]
        %v1456 = vld [vmem:[%s1453 + $0x8] sm:$0xf]
        %v1457 = vld [vmem:[%s1453 + $0xc] sm:$0xf]
        %v1458 = vld [vmem:[%s1453 + $0x10] sm:$0xf]
        %v1459 = vld [vmem:[%s1453 + $0x14] sm:$0xf]
        %v1460 = vld [vmem:[%s1453 + $0x18] sm:$0xf]
        %v1461 = vld [vmem:[%s1453 + $0x1c] sm:$0xf]
        %v1462 = vld [vmem:[%s1453 + $0x20] sm:$0xf]
        %v1463 = vld [vmem:[%s1453 + $0x24] sm:$0xf]
        %v1464 = vld [vmem:[%s1453 + $0x28] sm:$0xf]
        %v1465 = vld [vmem:[%s1453 + $0x2c] sm:$0xf]
        %v1466 = vld [vmem:[%s1453 + $0x30] sm:$0xf]
        %v1467 = vld [vmem:[%s1453 + $0x34] sm:$0xf]
        %v1468 = vld [vmem:[%s1453 + $0x38] sm:$0xf]
        %v1469 = vld [vmem:[%s1453 + $0x3c] sm:$0xf]
        %v1470 = vunpack.c.l.b16 %v1344
        %v1471 = vunpack.c.l.b16 %v1347
        %v1472 = vunpack.c.l.b16 %v1351
        %v1473 = vunpack.c.l.b16 %v1354
        %v1474 = vunpack.c.l.b16 %v1358
        %v1475 = vunpack.c.l.b16 %v1361
        %v1476 = vunpack.c.l.b16 %v1365
        %v1477 = vunpack.c.l.b16 %v1368
        %v1478 = vunpack.c.l.b16 %v1372
        %v1479 = vunpack.c.l.b16 %v1375
        %v1480 = vunpack.c.l.b16 %v1379
        %v1481 = vunpack.c.l.b16 %v1382
        %v1482 = vunpack.c.l.b16 %v1386
        %v1483 = vunpack.c.l.b16 %v1389
        %v1484 = vunpack.c.l.b16 %v1393
        %v1485 = vunpack.c.l.b16 %v1396
        %v1486 = vunpack.c.l.b16 %v1400
        %v1487 = vunpack.c.l.b16 %v1403
        %v1488 = vunpack.c.l.b16 %v1407
        %v1489 = vunpack.c.l.b16 %v1410
        %v1490 = vunpack.c.l.b16 %v1414
        %v1491 = vunpack.c.l.b16 %v1417
        %v1492 = vunpack.c.l.b16 %v1421
        %v1493 = vunpack.c.l.b16 %v1424
        %v1494 = vunpack.c.l.b16 %v1428
        %v1495 = vunpack.c.l.b16 %v1431
        %v1496 = vunpack.c.l.b16 %v1435
        %v1497 = vunpack.c.l.b16 %v1438
        %v1498 = vunpack.c.l.b16 %v1442
        %v1499 = vunpack.c.l.b16 %v1445
        %v1500 = vunpack.c.l.b16 %v1449
        %v1501 = vunpack.c.l.b16 %v1452
        %v1502 = vpack.c.b16 %v1471, %v1470
        %v1503 = vpack.c.b16 %v1473, %v1472
        %v1504 = vpack.c.b16 %v1475, %v1474
        %v1505 = vpack.c.b16 %v1477, %v1476
        %v1506 = vpack.c.b16 %v1479, %v1478
        %v1507 = vpack.c.b16 %v1481, %v1480
        %v1508 = vpack.c.b16 %v1483, %v1482
        %v1509 = vpack.c.b16 %v1485, %v1484
        %v1510 = vpack.c.b16 %v1487, %v1486
        %v1511 = vpack.c.b16 %v1489, %v1488
        %v1512 = vpack.c.b16 %v1491, %v1490
        %v1513 = vpack.c.b16 %v1493, %v1492
        %v1514 = vpack.c.b16 %v1495, %v1494
        %v1515 = vpack.c.b16 %v1497, %v1496
        %v1516 = vpack.c.b16 %v1499, %v1498
        %v1517 = vpack.c.b16 %v1501, %v1500
        %v1550 = vunpack.c.l.b16 %v1454
        %v1551 = vunpack.c.l.b16 %v1455
        %v1552 = vunpack.c.l.b16 %v1456
        %v1553 = vunpack.c.l.b16 %v1457
        %v1554 = vunpack.c.l.b16 %v1458
        %v1555 = vunpack.c.l.b16 %v1459
        %v1556 = vunpack.c.l.b16 %v1460
        %v1557 = vunpack.c.l.b16 %v1461
        %v1558 = vunpack.c.l.b16 %v1462
        %v1559 = vunpack.c.l.b16 %v1463
        %v1560 = vunpack.c.l.b16 %v1464
        %v1561 = vunpack.c.l.b16 %v1465
        %v1562 = vunpack.c.l.b16 %v1466
        %v1563 = vunpack.c.l.b16 %v1467
        %v1564 = vunpack.c.l.b16 %v1468
        %v1565 = vunpack.c.l.b16 %v1469
        %v1566 = vpack.c.b16 %v1551, %v1550
        %v1567 = vpack.c.b16 %v1553, %v1552
        %v1568 = vpack.c.b16 %v1555, %v1554
        %v1569 = vpack.c.b16 %v1557, %v1556
        %v1570 = vpack.c.b16 %v1559, %v1558
        %v1571 = vpack.c.b16 %v1561, %v1560
        %v1572 = vpack.c.b16 %v1563, %v1562
        %v1573 = vpack.c.b16 %v1565, %v1564
        %1582 = vmatpush.bf16.msra.mxu0 %v1573
        %1583 = vmatpush.bf16.msra.mxu0 %v1572
        %1584 = vmatpush.bf16.msra.mxu0 %v1571
        %1585 = vmatpush.bf16.msra.mxu0 %v1570
        %1586 = vmatpush.bf16.msra.mxu0 %v1569
        %1587 = vmatpush.bf16.msra.mxu0 %v1568
        %1588 = vmatpush.bf16.msra.mxu0 %v1567
        %1589 = vmatpush.bf16.msra.mxu0 %v1566
        %1590 = vmatmul.bf16.gmra.mxu0 %v1502
        %v1591 = vpop.f32.mrf.mxu0
        %v1592 = vadd.f32 0.0, %v1591
        %v1593 = vpop.f32.mrf.mxu0
        %v1594 = vadd.f32 0.0, %v1593
        %1595 = vmatmul.bf16.gmra.mxu0 %v1503
        %v1596 = vpop.f32.mrf.mxu0
        %v1597 = vadd.f32 0.0, %v1596
        %v1598 = vpop.f32.mrf.mxu0
        %v1599 = vadd.f32 0.0, %v1598
        %1600 = vmatmul.bf16.gmra.mxu0 %v1504
        %v1601 = vpop.f32.mrf.mxu0
        %v1602 = vadd.f32 0.0, %v1601
        %v1603 = vpop.f32.mrf.mxu0
        %v1604 = vadd.f32 0.0, %v1603
        %1605 = vmatmul.bf16.gmra.mxu0 %v1505
        %v1606 = vpop.f32.mrf.mxu0
        %v1607 = vadd.f32 0.0, %v1606
        %v1608 = vpop.f32.mrf.mxu0
        %v1609 = vadd.f32 0.0, %v1608
        %1610 = vmatmul.bf16.gmra.mxu0 %v1506
        %v1611 = vpop.f32.mrf.mxu0
        %v1612 = vadd.f32 0.0, %v1611
        %v1613 = vpop.f32.mrf.mxu0
        %v1614 = vadd.f32 0.0, %v1613
        %1615 = vmatmul.bf16.gmra.mxu0 %v1507
        %v1616 = vpop.f32.mrf.mxu0
        %v1617 = vadd.f32 0.0, %v1616
        %v1618 = vpop.f32.mrf.mxu0
        %v1619 = vadd.f32 0.0, %v1618
        %1620 = vmatmul.bf16.gmra.mxu0 %v1508
        %v1621 = vpop.f32.mrf.mxu0
        %v1622 = vadd.f32 0.0, %v1621
        %v1623 = vpop.f32.mrf.mxu0
        %v1624 = vadd.f32 0.0, %v1623
        %1625 = vmatmul.bf16.gmra.mxu0 %v1509
        %v1626 = vpop.f32.mrf.mxu0
        %v1627 = vadd.f32 0.0, %v1626
        %v1628 = vpop.f32.mrf.mxu0
        %v1629 = vadd.f32 0.0, %v1628
        %1630 = vmatmul.bf16.gmra.mxu0 %v1510
        %v1631 = vpop.f32.mrf.mxu0
        %v1632 = vadd.f32 0.0, %v1631
        %v1633 = vpop.f32.mrf.mxu0
        %v1634 = vadd.f32 0.0, %v1633
        %1635 = vmatmul.bf16.gmra.mxu0 %v1511
        %v1636 = vpop.f32.mrf.mxu0
        %v1637 = vadd.f32 0.0, %v1636
        %v1638 = vpop.f32.mrf.mxu0
        %v1639 = vadd.f32 0.0, %v1638
        %1640 = vmatmul.bf16.gmra.mxu0 %v1512
        %v1641 = vpop.f32.mrf.mxu0
        %v1642 = vadd.f32 0.0, %v1641
        %v1643 = vpop.f32.mrf.mxu0
        %v1644 = vadd.f32 0.0, %v1643
        %1645 = vmatmul.bf16.gmra.mxu0 %v1513
        %v1646 = vpop.f32.mrf.mxu0
        %v1647 = vadd.f32 0.0, %v1646
        %v1648 = vpop.f32.mrf.mxu0
        %v1649 = vadd.f32 0.0, %v1648
        %1650 = vmatmul.bf16.gmra.mxu0 %v1514
        %v1651 = vpop.f32.mrf.mxu0
        %v1652 = vadd.f32 0.0, %v1651
        %v1653 = vpop.f32.mrf.mxu0
        %v1654 = vadd.f32 0.0, %v1653
        %1655 = vmatmul.bf16.gmra.mxu0 %v1515
        %v1656 = vpop.f32.mrf.mxu0
        %v1657 = vadd.f32 0.0, %v1656
        %v1658 = vpop.f32.mrf.mxu0
        %v1659 = vadd.f32 0.0, %v1658
        %1660 = vmatmul.bf16.gmra.mxu0 %v1516
        %v1661 = vpop.f32.mrf.mxu0
        %v1662 = vadd.f32 0.0, %v1661
        %v1663 = vpop.f32.mrf.mxu0
        %v1664 = vadd.f32 0.0, %v1663
        %1665 = vmatmul.bf16.gmra.mxu0 %v1517
        %v1666 = vpop.f32.mrf.mxu0
        %v1667 = vadd.f32 0.0, %v1666
        %v1668 = vpop.f32.mrf.mxu0
        %v1669 = vadd.f32 0.0, %v1668
        %1670 = vdwg.mxu0
        %v1671 = vld [vmem:[%s167] sm:$0xff]
        %v1672 = vld [vmem:[%s167 + $0x8] sm:$0xff]
        %v1673 = vld [vmem:[%s167 + $0x10] sm:$0xff]
        %v1674 = vld [vmem:[%s167 + $0x18] sm:$0xff]
        %v1675 = vld [vmem:[%s167 + $0x20] sm:$0xff]
        %v1676 = vld [vmem:[%s167 + $0x28] sm:$0xff]
        %v1677 = vld [vmem:[%s167 + $0x30] sm:$0xff]
        %v1678 = vld [vmem:[%s167 + $0x38] sm:$0xff]
        %v1679 = vld [vmem:[%s167 + $0x40] sm:$0xff]
        %v1680 = vld [vmem:[%s167 + $0x48] sm:$0xff]
        %v1681 = vld [vmem:[%s167 + $0x50] sm:$0xff]
        %v1682 = vld [vmem:[%s167 + $0x58] sm:$0xff]
        %v1683 = vld [vmem:[%s167 + $0x60] sm:$0xff]
        %v1684 = vld [vmem:[%s167 + $0x68] sm:$0xff]
        %v1685 = vld [vmem:[%s167 + $0x70] sm:$0xff]
        %v1686 = vld [vmem:[%s167 + $0x78] sm:$0xff]
        %v1687 = vld [vmem:[%s167 + $0x80] sm:$0xff]
        %v1688 = vld [vmem:[%s167 + $0x88] sm:$0xff]
        %v1689 = vld [vmem:[%s167 + $0x90] sm:$0xff]
        %v1690 = vld [vmem:[%s167 + $0x98] sm:$0xff]
        %v1691 = vld [vmem:[%s167 + $0xa0] sm:$0xff]
        %v1692 = vld [vmem:[%s167 + $0xa8] sm:$0xff]
        %v1693 = vld [vmem:[%s167 + $0xb0] sm:$0xff]
        %v1694 = vld [vmem:[%s167 + $0xb8] sm:$0xff]
        %v1695 = vld [vmem:[%s167 + $0xc0] sm:$0xff]
        %v1696 = vld [vmem:[%s167 + $0xc8] sm:$0xff]
        %v1697 = vld [vmem:[%s167 + $0xd0] sm:$0xff]
        %v1698 = vld [vmem:[%s167 + $0xd8] sm:$0xff]
        %v1699 = vld [vmem:[%s167 + $0xe0] sm:$0xff]
        %v1700 = vld [vmem:[%s167 + $0xe8] sm:$0xff]
        %v1701 = vld [vmem:[%s167 + $0xf0] sm:$0xff]
        %v1702 = vld [vmem:[%s167 + $0xf8] sm:$0xff]
        %v1703 = vadd.f32 %v1671, %v1592
        %v1704 = vadd.f32 %v1672, %v1594
        %v1705 = vadd.f32 %v1673, %v1597
        %v1706 = vadd.f32 %v1674, %v1599
        %v1707 = vadd.f32 %v1675, %v1602
        %v1708 = vadd.f32 %v1676, %v1604
        %v1709 = vadd.f32 %v1677, %v1607
        %v1710 = vadd.f32 %v1678, %v1609
        %v1711 = vadd.f32 %v1679, %v1612
        %v1712 = vadd.f32 %v1680, %v1614
        %v1713 = vadd.f32 %v1681, %v1617
        %v1714 = vadd.f32 %v1682, %v1619
        %v1715 = vadd.f32 %v1683, %v1622
        %v1716 = vadd.f32 %v1684, %v1624
        %v1717 = vadd.f32 %v1685, %v1627
        %v1718 = vadd.f32 %v1686, %v1629
        %v1719 = vadd.f32 %v1687, %v1632
        %v1720 = vadd.f32 %v1688, %v1634
        %v1721 = vadd.f32 %v1689, %v1637
        %v1722 = vadd.f32 %v1690, %v1639
        %v1723 = vadd.f32 %v1691, %v1642
        %v1724 = vadd.f32 %v1692, %v1644
        %v1725 = vadd.f32 %v1693, %v1647
        %v1726 = vadd.f32 %v1694, %v1649
        %v1727 = vadd.f32 %v1695, %v1652
        %v1728 = vadd.f32 %v1696, %v1654
        %v1729 = vadd.f32 %v1697, %v1657
        %v1730 = vadd.f32 %v1698, %v1659
        %v1731 = vadd.f32 %v1699, %v1662
        %v1732 = vadd.f32 %v1700, %v1664
        %v1733 = vadd.f32 %v1701, %v1667
        %v1734 = vadd.f32 %v1702, %v1669
        %1735 = vst [vmem:[%s167] sm:$0xff] %v1703
        %1736 = vst [vmem:[%s167 + $0x8] sm:$0xff] %v1704
        %1737 = vst [vmem:[%s167 + $0x10] sm:$0xff] %v1705
        %1738 = vst [vmem:[%s167 + $0x18] sm:$0xff] %v1706
        %1739 = vst [vmem:[%s167 + $0x20] sm:$0xff] %v1707
        %1740 = vst [vmem:[%s167 + $0x28] sm:$0xff] %v1708
        %1741 = vst [vmem:[%s167 + $0x30] sm:$0xff] %v1709
        %1742 = vst [vmem:[%s167 + $0x38] sm:$0xff] %v1710
        %1743 = vst [vmem:[%s167 + $0x40] sm:$0xff] %v1711
        %1744 = vst [vmem:[%s167 + $0x48] sm:$0xff] %v1712
        %1745 = vst [vmem:[%s167 + $0x50] sm:$0xff] %v1713
        %1746 = vst [vmem:[%s167 + $0x58] sm:$0xff] %v1714
        %1747 = vst [vmem:[%s167 + $0x60] sm:$0xff] %v1715
        %1748 = vst [vmem:[%s167 + $0x68] sm:$0xff] %v1716
        %1749 = vst [vmem:[%s167 + $0x70] sm:$0xff] %v1717
        %1750 = vst [vmem:[%s167 + $0x78] sm:$0xff] %v1718
        %1751 = vst [vmem:[%s167 + $0x80] sm:$0xff] %v1719
        %1752 = vst [vmem:[%s167 + $0x88] sm:$0xff] %v1720
        %1753 = vst [vmem:[%s167 + $0x90] sm:$0xff] %v1721
        %1754 = vst [vmem:[%s167 + $0x98] sm:$0xff] %v1722
        %1755 = vst [vmem:[%s167 + $0xa0] sm:$0xff] %v1723
        %1756 = vst [vmem:[%s167 + $0xa8] sm:$0xff] %v1724
        %1757 = vst [vmem:[%s167 + $0xb0] sm:$0xff] %v1725
        %1758 = vst [vmem:[%s167 + $0xb8] sm:$0xff] %v1726
        %1759 = vst [vmem:[%s167 + $0xc0] sm:$0xff] %v1727
        %1760 = vst [vmem:[%s167 + $0xc8] sm:$0xff] %v1728
        %1761 = vst [vmem:[%s167 + $0xd0] sm:$0xff] %v1729
        %1762 = vst [vmem:[%s167 + $0xd8] sm:$0xff] %v1730
        %1763 = vst [vmem:[%s167 + $0xe0] sm:$0xff] %v1731
        %1764 = vst [vmem:[%s167 + $0xe8] sm:$0xff] %v1732
        %1765 = vst [vmem:[%s167 + $0xf0] sm:$0xff] %v1733
        %1766 = vst [vmem:[%s167 + $0xf8] sm:$0xff] %v1734
        %s1767 = scalar_lea.vmem %s179, 12
        %v1768 = vld [vmem:[%s1767] sm:$0xf]
        %v1769 = vld [vmem:[%s1767 + $0x4] sm:$0xf]
        %v1770 = vld [vmem:[%s1767 + $0xc] sm:$0xf]
        %v1771 = vld [vmem:[%s1767 + $0x10] sm:$0xf]
        %v1772 = vld [vmem:[%s1767 + $0x18] sm:$0xf]
        %v1773 = vld [vmem:[%s1767 + $0x1c] sm:$0xf]
        %v1774 = vld [vmem:[%s1767 + $0x24] sm:$0xf]
        %v1775 = vld [vmem:[%s1767 + $0x28] sm:$0xf]
        %v1776 = vld [vmem:[%s1767 + $0x30] sm:$0xf]
        %v1777 = vld [vmem:[%s1767 + $0x34] sm:$0xf]
        %v1778 = vld [vmem:[%s1767 + $0x3c] sm:$0xf]
        %v1779 = vld [vmem:[%s1767 + $0x40] sm:$0xf]
        %v1780 = vld [vmem:[%s1767 + $0x48] sm:$0xf]
        %v1781 = vld [vmem:[%s1767 + $0x4c] sm:$0xf]
        %v1782 = vld [vmem:[%s1767 + $0x54] sm:$0xf]
        %v1783 = vld [vmem:[%s1767 + $0x58] sm:$0xf]
        %v1784 = vld [vmem:[%s1767 + $0x60] sm:$0xf]
        %v1785 = vld [vmem:[%s1767 + $0x64] sm:$0xf]
        %v1786 = vld [vmem:[%s1767 + $0x6c] sm:$0xf]
        %v1787 = vld [vmem:[%s1767 + $0x70] sm:$0xf]
        %v1788 = vld [vmem:[%s1767 + $0x78] sm:$0xf]
        %v1789 = vld [vmem:[%s1767 + $0x7c] sm:$0xf]
        %v1790 = vld [vmem:[%s1767 + $0x84] sm:$0xf]
        %v1791 = vld [vmem:[%s1767 + $0x88] sm:$0xf]
        %v1792 = vld [vmem:[%s1767 + $0x90] sm:$0xf]
        %v1793 = vld [vmem:[%s1767 + $0x94] sm:$0xf]
        %v1794 = vld [vmem:[%s1767 + $0x9c] sm:$0xf]
        %v1795 = vld [vmem:[%s1767 + $0xa0] sm:$0xf]
        %v1796 = vld [vmem:[%s1767 + $0xa8] sm:$0xf]
        %v1797 = vld [vmem:[%s1767 + $0xac] sm:$0xf]
        %v1798 = vld [vmem:[%s1767 + $0xb4] sm:$0xf]
        %v1799 = vld [vmem:[%s1767 + $0xb8] sm:$0xf]
        %s1800 = scalar_lea.vmem %s1, 192
        %v1801 = vld [vmem:[%s1800] sm:$0xf]
        %v1802 = vld [vmem:[%s1800 + $0x4] sm:$0xf]
        %v1803 = vld [vmem:[%s1800 + $0x8] sm:$0xf]
        %v1804 = vld [vmem:[%s1800 + $0xc] sm:$0xf]
        %v1805 = vld [vmem:[%s1800 + $0x10] sm:$0xf]
        %v1806 = vld [vmem:[%s1800 + $0x14] sm:$0xf]
        %v1807 = vld [vmem:[%s1800 + $0x18] sm:$0xf]
        %v1808 = vld [vmem:[%s1800 + $0x1c] sm:$0xf]
        %v1809 = vld [vmem:[%s1800 + $0x20] sm:$0xf]
        %v1810 = vld [vmem:[%s1800 + $0x24] sm:$0xf]
        %v1811 = vld [vmem:[%s1800 + $0x28] sm:$0xf]
        %v1812 = vld [vmem:[%s1800 + $0x2c] sm:$0xf]
        %v1813 = vld [vmem:[%s1800 + $0x30] sm:$0xf]
        %v1814 = vld [vmem:[%s1800 + $0x34] sm:$0xf]
        %v1815 = vld [vmem:[%s1800 + $0x38] sm:$0xf]
        %v1816 = vld [vmem:[%s1800 + $0x3c] sm:$0xf]
        %v1849 = vunpack.c.l.b16 %v1768
        %v1850 = vunpack.c.l.b16 %v1769
        %v1851 = vunpack.c.l.b16 %v1770
        %v1852 = vunpack.c.l.b16 %v1771
        %v1853 = vunpack.c.l.b16 %v1772
        %v1854 = vunpack.c.l.b16 %v1773
        %v1855 = vunpack.c.l.b16 %v1774
        %v1856 = vunpack.c.l.b16 %v1775
        %v1857 = vunpack.c.l.b16 %v1776
        %v1858 = vunpack.c.l.b16 %v1777
        %v1859 = vunpack.c.l.b16 %v1778
        %v1860 = vunpack.c.l.b16 %v1779
        %v1861 = vunpack.c.l.b16 %v1780
        %v1862 = vunpack.c.l.b16 %v1781
        %v1863 = vunpack.c.l.b16 %v1782
        %v1864 = vunpack.c.l.b16 %v1783
        %v1865 = vunpack.c.l.b16 %v1784
        %v1866 = vunpack.c.l.b16 %v1785
        %v1867 = vunpack.c.l.b16 %v1786
        %v1868 = vunpack.c.l.b16 %v1787
        %v1869 = vunpack.c.l.b16 %v1788
        %v1870 = vunpack.c.l.b16 %v1789
        %v1871 = vunpack.c.l.b16 %v1790
        %v1872 = vunpack.c.l.b16 %v1791
        %v1873 = vunpack.c.l.b16 %v1792
        %v1874 = vunpack.c.l.b16 %v1793
        %v1875 = vunpack.c.l.b16 %v1794
        %v1876 = vunpack.c.l.b16 %v1795
        %v1877 = vunpack.c.l.b16 %v1796
        %v1878 = vunpack.c.l.b16 %v1797
        %v1879 = vunpack.c.l.b16 %v1798
        %v1880 = vunpack.c.l.b16 %v1799
        %v1881 = vpack.c.b16 %v1850, %v1849
        %v1882 = vpack.c.b16 %v1852, %v1851
        %v1883 = vpack.c.b16 %v1854, %v1853
        %v1884 = vpack.c.b16 %v1856, %v1855
        %v1885 = vpack.c.b16 %v1858, %v1857
        %v1886 = vpack.c.b16 %v1860, %v1859
        %v1887 = vpack.c.b16 %v1862, %v1861
        %v1888 = vpack.c.b16 %v1864, %v1863
        %v1889 = vpack.c.b16 %v1866, %v1865
        %v1890 = vpack.c.b16 %v1868, %v1867
        %v1891 = vpack.c.b16 %v1870, %v1869
        %v1892 = vpack.c.b16 %v1872, %v1871
        %v1893 = vpack.c.b16 %v1874, %v1873
        %v1894 = vpack.c.b16 %v1876, %v1875
        %v1895 = vpack.c.b16 %v1878, %v1877
        %v1896 = vpack.c.b16 %v1880, %v1879
        %v1929 = vunpack.c.l.b16 %v1801
        %v1930 = vunpack.c.l.b16 %v1802
        %v1931 = vunpack.c.l.b16 %v1803
        %v1932 = vunpack.c.l.b16 %v1804
        %v1933 = vunpack.c.l.b16 %v1805
        %v1934 = vunpack.c.l.b16 %v1806
        %v1935 = vunpack.c.l.b16 %v1807
        %v1936 = vunpack.c.l.b16 %v1808
        %v1937 = vunpack.c.l.b16 %v1809
        %v1938 = vunpack.c.l.b16 %v1810
        %v1939 = vunpack.c.l.b16 %v1811
        %v1940 = vunpack.c.l.b16 %v1812
        %v1941 = vunpack.c.l.b16 %v1813
        %v1942 = vunpack.c.l.b16 %v1814
        %v1943 = vunpack.c.l.b16 %v1815
        %v1944 = vunpack.c.l.b16 %v1816
        %v1945 = vpack.c.b16 %v1930, %v1929
        %v1946 = vpack.c.b16 %v1932, %v1931
        %v1947 = vpack.c.b16 %v1934, %v1933
        %v1948 = vpack.c.b16 %v1936, %v1935
        %v1949 = vpack.c.b16 %v1938, %v1937
        %v1950 = vpack.c.b16 %v1940, %v1939
        %v1951 = vpack.c.b16 %v1942, %v1941
        %v1952 = vpack.c.b16 %v1944, %v1943
        %1961 = vmatpush.bf16.msra.mxu0 %v1952
        %1962 = vmatpush.bf16.msra.mxu0 %v1951
        %1963 = vmatpush.bf16.msra.mxu0 %v1950
        %1964 = vmatpush.bf16.msra.mxu0 %v1949
        %1965 = vmatpush.bf16.msra.mxu0 %v1948
        %1966 = vmatpush.bf16.msra.mxu0 %v1947
        %1967 = vmatpush.bf16.msra.mxu0 %v1946
        %1968 = vmatpush.bf16.msra.mxu0 %v1945
        %1969 = vmatmul.bf16.gmra.mxu0 %v1881
        %v1970 = vpop.f32.mrf.mxu0
        %v1971 = vadd.f32 0.0, %v1970
        %v1972 = vpop.f32.mrf.mxu0
        %v1973 = vadd.f32 0.0, %v1972
        %1974 = vmatmul.bf16.gmra.mxu0 %v1882
        %v1975 = vpop.f32.mrf.mxu0
        %v1976 = vadd.f32 0.0, %v1975
        %v1977 = vpop.f32.mrf.mxu0
        %v1978 = vadd.f32 0.0, %v1977
        %1979 = vmatmul.bf16.gmra.mxu0 %v1883
        %v1980 = vpop.f32.mrf.mxu0
        %v1981 = vadd.f32 0.0, %v1980
        %v1982 = vpop.f32.mrf.mxu0
        %v1983 = vadd.f32 0.0, %v1982
        %1984 = vmatmul.bf16.gmra.mxu0 %v1884
        %v1985 = vpop.f32.mrf.mxu0
        %v1986 = vadd.f32 0.0, %v1985
        %v1987 = vpop.f32.mrf.mxu0
        %v1988 = vadd.f32 0.0, %v1987
        %1989 = vmatmul.bf16.gmra.mxu0 %v1885
        %v1990 = vpop.f32.mrf.mxu0
        %v1991 = vadd.f32 0.0, %v1990
        %v1992 = vpop.f32.mrf.mxu0
        %v1993 = vadd.f32 0.0, %v1992
        %1994 = vmatmul.bf16.gmra.mxu0 %v1886
        %v1995 = vpop.f32.mrf.mxu0
        %v1996 = vadd.f32 0.0, %v1995
        %v1997 = vpop.f32.mrf.mxu0
        %v1998 = vadd.f32 0.0, %v1997
        %1999 = vmatmul.bf16.gmra.mxu0 %v1887
        %v2000 = vpop.f32.mrf.mxu0
        %v2001 = vadd.f32 0.0, %v2000
        %v2002 = vpop.f32.mrf.mxu0
        %v2003 = vadd.f32 0.0, %v2002
        %2004 = vmatmul.bf16.gmra.mxu0 %v1888
        %v2005 = vpop.f32.mrf.mxu0
        %v2006 = vadd.f32 0.0, %v2005
        %v2007 = vpop.f32.mrf.mxu0
        %v2008 = vadd.f32 0.0, %v2007
        %2009 = vmatmul.bf16.gmra.mxu0 %v1889
        %v2010 = vpop.f32.mrf.mxu0
        %v2011 = vadd.f32 0.0, %v2010
        %v2012 = vpop.f32.mrf.mxu0
        %v2013 = vadd.f32 0.0, %v2012
        %2014 = vmatmul.bf16.gmra.mxu0 %v1890
        %v2015 = vpop.f32.mrf.mxu0
        %v2016 = vadd.f32 0.0, %v2015
        %v2017 = vpop.f32.mrf.mxu0
        %v2018 = vadd.f32 0.0, %v2017
        %2019 = vmatmul.bf16.gmra.mxu0 %v1891
        %v2020 = vpop.f32.mrf.mxu0
        %v2021 = vadd.f32 0.0, %v2020
        %v2022 = vpop.f32.mrf.mxu0
        %v2023 = vadd.f32 0.0, %v2022
        %2024 = vmatmul.bf16.gmra.mxu0 %v1892
        %v2025 = vpop.f32.mrf.mxu0
        %v2026 = vadd.f32 0.0, %v2025
        %v2027 = vpop.f32.mrf.mxu0
        %v2028 = vadd.f32 0.0, %v2027
        %2029 = vmatmul.bf16.gmra.mxu0 %v1893
        %v2030 = vpop.f32.mrf.mxu0
        %v2031 = vadd.f32 0.0, %v2030
        %v2032 = vpop.f32.mrf.mxu0
        %v2033 = vadd.f32 0.0, %v2032
        %2034 = vmatmul.bf16.gmra.mxu0 %v1894
        %v2035 = vpop.f32.mrf.mxu0
        %v2036 = vadd.f32 0.0, %v2035
        %v2037 = vpop.f32.mrf.mxu0
        %v2038 = vadd.f32 0.0, %v2037
        %2039 = vmatmul.bf16.gmra.mxu0 %v1895
        %v2040 = vpop.f32.mrf.mxu0
        %v2041 = vadd.f32 0.0, %v2040
        %v2042 = vpop.f32.mrf.mxu0
        %v2043 = vadd.f32 0.0, %v2042
        %2044 = vmatmul.bf16.gmra.mxu0 %v1896
        %v2045 = vpop.f32.mrf.mxu0
        %v2046 = vadd.f32 0.0, %v2045
        %v2047 = vpop.f32.mrf.mxu0
        %v2048 = vadd.f32 0.0, %v2047
        %2049 = vdwg.mxu0
        %v2050 = vld [vmem:[%s167] sm:$0xff]
        %v2051 = vld [vmem:[%s167 + $0x8] sm:$0xff]
        %v2052 = vld [vmem:[%s167 + $0x10] sm:$0xff]
        %v2053 = vld [vmem:[%s167 + $0x18] sm:$0xff]
        %v2054 = vld [vmem:[%s167 + $0x20] sm:$0xff]
        %v2055 = vld [vmem:[%s167 + $0x28] sm:$0xff]
        %v2056 = vld [vmem:[%s167 + $0x30] sm:$0xff]
        %v2057 = vld [vmem:[%s167 + $0x38] sm:$0xff]
        %v2058 = vld [vmem:[%s167 + $0x40] sm:$0xff]
        %v2059 = vld [vmem:[%s167 + $0x48] sm:$0xff]
        %v2060 = vld [vmem:[%s167 + $0x50] sm:$0xff]
        %v2061 = vld [vmem:[%s167 + $0x58] sm:$0xff]
        %v2062 = vld [vmem:[%s167 + $0x60] sm:$0xff]
        %v2063 = vld [vmem:[%s167 + $0x68] sm:$0xff]
        %v2064 = vld [vmem:[%s167 + $0x70] sm:$0xff]
        %v2065 = vld [vmem:[%s167 + $0x78] sm:$0xff]
        %v2066 = vld [vmem:[%s167 + $0x80] sm:$0xff]
        %v2067 = vld [vmem:[%s167 + $0x88] sm:$0xff]
        %v2068 = vld [vmem:[%s167 + $0x90] sm:$0xff]
        %v2069 = vld [vmem:[%s167 + $0x98] sm:$0xff]
        %v2070 = vld [vmem:[%s167 + $0xa0] sm:$0xff]
        %v2071 = vld [vmem:[%s167 + $0xa8] sm:$0xff]
        %v2072 = vld [vmem:[%s167 + $0xb0] sm:$0xff]
        %v2073 = vld [vmem:[%s167 + $0xb8] sm:$0xff]
        %v2074 = vld [vmem:[%s167 + $0xc0] sm:$0xff]
        %v2075 = vld [vmem:[%s167 + $0xc8] sm:$0xff]
        %v2076 = vld [vmem:[%s167 + $0xd0] sm:$0xff]
        %v2077 = vld [vmem:[%s167 + $0xd8] sm:$0xff]
        %v2078 = vld [vmem:[%s167 + $0xe0] sm:$0xff]
        %v2079 = vld [vmem:[%s167 + $0xe8] sm:$0xff]
        %v2080 = vld [vmem:[%s167 + $0xf0] sm:$0xff]
        %v2081 = vld [vmem:[%s167 + $0xf8] sm:$0xff]
        %v2082 = vadd.f32 %v2050, %v1971
        %v2083 = vadd.f32 %v2051, %v1973
        %v2084 = vadd.f32 %v2052, %v1976
        %v2085 = vadd.f32 %v2053, %v1978
        %v2086 = vadd.f32 %v2054, %v1981
        %v2087 = vadd.f32 %v2055, %v1983
        %v2088 = vadd.f32 %v2056, %v1986
        %v2089 = vadd.f32 %v2057, %v1988
        %v2090 = vadd.f32 %v2058, %v1991
        %v2091 = vadd.f32 %v2059, %v1993
        %v2092 = vadd.f32 %v2060, %v1996
        %v2093 = vadd.f32 %v2061, %v1998
        %v2094 = vadd.f32 %v2062, %v2001
        %v2095 = vadd.f32 %v2063, %v2003
        %v2096 = vadd.f32 %v2064, %v2006
        %v2097 = vadd.f32 %v2065, %v2008
        %v2098 = vadd.f32 %v2066, %v2011
        %v2099 = vadd.f32 %v2067, %v2013
        %v2100 = vadd.f32 %v2068, %v2016
        %v2101 = vadd.f32 %v2069, %v2018
        %v2102 = vadd.f32 %v2070, %v2021
        %v2103 = vadd.f32 %v2071, %v2023
        %v2104 = vadd.f32 %v2072, %v2026
        %v2105 = vadd.f32 %v2073, %v2028
        %v2106 = vadd.f32 %v2074, %v2031
        %v2107 = vadd.f32 %v2075, %v2033
        %v2108 = vadd.f32 %v2076, %v2036
        %v2109 = vadd.f32 %v2077, %v2038
        %v2110 = vadd.f32 %v2078, %v2041
        %v2111 = vadd.f32 %v2079, %v2043
        %v2112 = vadd.f32 %v2080, %v2046
        %v2113 = vadd.f32 %v2081, %v2048
        %2114 = vst [vmem:[%s167] sm:$0xff] %v2082
        %2115 = vst [vmem:[%s167 + $0x8] sm:$0xff] %v2083
        %2116 = vst [vmem:[%s167 + $0x10] sm:$0xff] %v2084
        %2117 = vst [vmem:[%s167 + $0x18] sm:$0xff] %v2085
        %2118 = vst [vmem:[%s167 + $0x20] sm:$0xff] %v2086
        %2119 = vst [vmem:[%s167 + $0x28] sm:$0xff] %v2087
        %2120 = vst [vmem:[%s167 + $0x30] sm:$0xff] %v2088
        %2121 = vst [vmem:[%s167 + $0x38] sm:$0xff] %v2089
        %2122 = vst [vmem:[%s167 + $0x40] sm:$0xff] %v2090
        %2123 = vst [vmem:[%s167 + $0x48] sm:$0xff] %v2091
        %2124 = vst [vmem:[%s167 + $0x50] sm:$0xff] %v2092
        %2125 = vst [vmem:[%s167 + $0x58] sm:$0xff] %v2093
        %2126 = vst [vmem:[%s167 + $0x60] sm:$0xff] %v2094
        %2127 = vst [vmem:[%s167 + $0x68] sm:$0xff] %v2095
        %2128 = vst [vmem:[%s167 + $0x70] sm:$0xff] %v2096
        %2129 = vst [vmem:[%s167 + $0x78] sm:$0xff] %v2097
        %2130 = vst [vmem:[%s167 + $0x80] sm:$0xff] %v2098
        %2131 = vst [vmem:[%s167 + $0x88] sm:$0xff] %v2099
        %2132 = vst [vmem:[%s167 + $0x90] sm:$0xff] %v2100
        %2133 = vst [vmem:[%s167 + $0x98] sm:$0xff] %v2101
        %2134 = vst [vmem:[%s167 + $0xa0] sm:$0xff] %v2102
        %2135 = vst [vmem:[%s167 + $0xa8] sm:$0xff] %v2103
        %2136 = vst [vmem:[%s167 + $0xb0] sm:$0xff] %v2104
        %2137 = vst [vmem:[%s167 + $0xb8] sm:$0xff] %v2105
        %2138 = vst [vmem:[%s167 + $0xc0] sm:$0xff] %v2106
        %2139 = vst [vmem:[%s167 + $0xc8] sm:$0xff] %v2107
        %2140 = vst [vmem:[%s167 + $0xd0] sm:$0xff] %v2108
        %2141 = vst [vmem:[%s167 + $0xd8] sm:$0xff] %v2109
        %2142 = vst [vmem:[%s167 + $0xe0] sm:$0xff] %v2110
        %2143 = vst [vmem:[%s167 + $0xe8] sm:$0xff] %v2111
        %2144 = vst [vmem:[%s167 + $0xf0] sm:$0xff] %v2112
        %2145 = vst [vmem:[%s167 + $0xf8] sm:$0xff] %v2113
        %v2146 = vld [vmem:[%s1767] sm:$0xf]
        %v2147 = vld [vmem:[%s1767 + $0x4] sm:$0xf]
        %v2148 = vld [vmem:[%s1767 + $0x8] sm:$0x1]
        %v2149 = vld [vmem:[%s1767 + $0xc] sm:$0xf]
        %v2150 = vld [vmem:[%s1767 + $0x10] sm:$0xf]
        %v2151 = vld [vmem:[%s1767 + $0x14] sm:$0x1]
        %v2152 = vld [vmem:[%s1767 + $0x18] sm:$0xf]
        %v2153 = vld [vmem:[%s1767 + $0x1c] sm:$0xf]
        %v2154 = vld [vmem:[%s1767 + $0x20] sm:$0x1]
        %v2155 = vld [vmem:[%s1767 + $0x24] sm:$0xf]
        %v2156 = vld [vmem:[%s1767 + $0x28] sm:$0xf]
        %v2157 = vld [vmem:[%s1767 + $0x2c] sm:$0x1]
        %v2158 = vld [vmem:[%s1767 + $0x30] sm:$0xf]
        %v2159 = vld [vmem:[%s1767 + $0x34] sm:$0xf]
        %v2160 = vld [vmem:[%s1767 + $0x38] sm:$0x1]
        %v2161 = vld [vmem:[%s1767 + $0x3c] sm:$0xf]
        %v2162 = vld [vmem:[%s1767 + $0x40] sm:$0xf]
        %v2163 = vld [vmem:[%s1767 + $0x44] sm:$0x1]
        %v2164 = vld [vmem:[%s1767 + $0x48] sm:$0xf]
        %v2165 = vld [vmem:[%s1767 + $0x4c] sm:$0xf]
        %v2166 = vld [vmem:[%s1767 + $0x50] sm:$0x1]
        %v2167 = vld [vmem:[%s1767 + $0x54] sm:$0xf]
        %v2168 = vld [vmem:[%s1767 + $0x58] sm:$0xf]
        %v2169 = vld [vmem:[%s1767 + $0x5c] sm:$0x1]
        %v2170 = vld [vmem:[%s1767 + $0x60] sm:$0xf]
        %v2171 = vld [vmem:[%s1767 + $0x64] sm:$0xf]
        %v2172 = vld [vmem:[%s1767 + $0x68] sm:$0x1]
        %v2173 = vld [vmem:[%s1767 + $0x6c] sm:$0xf]
        %v2174 = vld [vmem:[%s1767 + $0x70] sm:$0xf]
        %v2175 = vld [vmem:[%s1767 + $0x74] sm:$0x1]
        %v2176 = vld [vmem:[%s1767 + $0x78] sm:$0xf]
        %v2177 = vld [vmem:[%s1767 + $0x7c] sm:$0xf]
        %v2178 = vld [vmem:[%s1767 + $0x80] sm:$0x1]
        %v2179 = vld [vmem:[%s1767 + $0x84] sm:$0xf]
        %v2180 = vld [vmem:[%s1767 + $0x88] sm:$0xf]
        %v2181 = vld [vmem:[%s1767 + $0x8c] sm:$0x1]
        %v2182 = vld [vmem:[%s1767 + $0x90] sm:$0xf]
        %v2183 = vld [vmem:[%s1767 + $0x94] sm:$0xf]
        %v2184 = vld [vmem:[%s1767 + $0x98] sm:$0x1]
        %v2185 = vld [vmem:[%s1767 + $0x9c] sm:$0xf]
        %v2186 = vld [vmem:[%s1767 + $0xa0] sm:$0xf]
        %v2187 = vld [vmem:[%s1767 + $0xa4] sm:$0x1]
        %v2188 = vld [vmem:[%s1767 + $0xa8] sm:$0xf]
        %v2189 = vld [vmem:[%s1767 + $0xac] sm:$0xf]
        %v2190 = vld [vmem:[%s1767 + $0xb0] sm:$0x1]
        %v2191 = vld [vmem:[%s1767 + $0xb4] sm:$0xf]
        %v2192 = vld [vmem:[%s1767 + $0xb8] sm:$0xf]
        %v2193 = vld [vmem:[%s1767 + $0xbc] sm:$0x1]
        %v2195 = vshrl.u32 %v2146, 16
        %v2197 = vrot.slane %v2195, 4
        %v2198 = vshll.u32 %v2146, 16
        %v2200 = vrot.slane %v2198, 5
        %v2201 = vor.u32 %v2197, %v2200
        %v2202 = vrot.slane %v2201, 4
        %v2204 = vshll.u32 %v2147, 16
        %v2206 = vrot.slane %v2204, 5
        %v2207 = vsel %vm543, %v2202, %v2206
        %v2208 = vshrl.u32 %v2147, 16
        %v2210 = vrot.slane %v2208, 4
        %v2211 = vor.u32 %v2210, %v2206
        %v2212 = vrot.slane %v2211, 4
        %v2214 = vshll.u32 %v2148, 16
        %v2216 = vrot.slane %v2214, 5
        %v2217 = vsel %vm543, %v2212, %v2216
        %v2219 = vshrl.u32 %v2149, 16
        %v2221 = vrot.slane %v2219, 4
        %v2222 = vshll.u32 %v2149, 16
        %v2224 = vrot.slane %v2222, 5
        %v2225 = vor.u32 %v2221, %v2224
        %v2226 = vrot.slane %v2225, 4
        %v2228 = vshll.u32 %v2150, 16
        %v2230 = vrot.slane %v2228, 5
        %v2231 = vsel %vm543, %v2226, %v2230
        %v2232 = vshrl.u32 %v2150, 16
        %v2234 = vrot.slane %v2232, 4
        %v2235 = vor.u32 %v2234, %v2230
        %v2236 = vrot.slane %v2235, 4
        %v2238 = vshll.u32 %v2151, 16
        %v2240 = vrot.slane %v2238, 5
        %v2241 = vsel %vm543, %v2236, %v2240
        %v2243 = vshrl.u32 %v2152, 16
        %v2245 = vrot.slane %v2243, 4
        %v2246 = vshll.u32 %v2152, 16
        %v2248 = vrot.slane %v2246, 5
        %v2249 = vor.u32 %v2245, %v2248
        %v2250 = vrot.slane %v2249, 4
        %v2252 = vshll.u32 %v2153, 16
        %v2254 = vrot.slane %v2252, 5
        %v2255 = vsel %vm543, %v2250, %v2254
        %v2256 = vshrl.u32 %v2153, 16
        %v2258 = vrot.slane %v2256, 4
        %v2259 = vor.u32 %v2258, %v2254
        %v2260 = vrot.slane %v2259, 4
        %v2262 = vshll.u32 %v2154, 16
        %v2264 = vrot.slane %v2262, 5
        %v2265 = vsel %vm543, %v2260, %v2264
        %v2267 = vshrl.u32 %v2155, 16
        %v2269 = vrot.slane %v2267, 4
        %v2270 = vshll.u32 %v2155, 16
        %v2272 = vrot.slane %v2270, 5
        %v2273 = vor.u32 %v2269, %v2272
        %v2274 = vrot.slane %v2273, 4
        %v2276 = vshll.u32 %v2156, 16
        %v2278 = vrot.slane %v2276, 5
        %v2279 = vsel %vm543, %v2274, %v2278
        %v2280 = vshrl.u32 %v2156, 16
        %v2282 = vrot.slane %v2280, 4
        %v2283 = vor.u32 %v2282, %v2278
        %v2284 = vrot.slane %v2283, 4
        %v2286 = vshll.u32 %v2157, 16
        %v2288 = vrot.slane %v2286, 5
        %v2289 = vsel %vm543, %v2284, %v2288
        %v2291 = vshrl.u32 %v2158, 16
        %v2293 = vrot.slane %v2291, 4
        %v2294 = vshll.u32 %v2158, 16
        %v2296 = vrot.slane %v2294, 5
        %v2297 = vor.u32 %v2293, %v2296
        %v2298 = vrot.slane %v2297, 4
        %v2300 = vshll.u32 %v2159, 16
        %v2302 = vrot.slane %v2300, 5
        %v2303 = vsel %vm543, %v2298, %v2302
        %v2304 = vshrl.u32 %v2159, 16
        %v2306 = vrot.slane %v2304, 4
        %v2307 = vor.u32 %v2306, %v2302
        %v2308 = vrot.slane %v2307, 4
        %v2310 = vshll.u32 %v2160, 16
        %v2312 = vrot.slane %v2310, 5
        %v2313 = vsel %vm543, %v2308, %v2312
        %v2315 = vshrl.u32 %v2161, 16
        %v2317 = vrot.slane %v2315, 4
        %v2318 = vshll.u32 %v2161, 16
        %v2320 = vrot.slane %v2318, 5
        %v2321 = vor.u32 %v2317, %v2320
        %v2322 = vrot.slane %v2321, 4
        %v2324 = vshll.u32 %v2162, 16
        %v2326 = vrot.slane %v2324, 5
        %v2327 = vsel %vm543, %v2322, %v2326
        %v2328 = vshrl.u32 %v2162, 16
        %v2330 = vrot.slane %v2328, 4
        %v2331 = vor.u32 %v2330, %v2326
        %v2332 = vrot.slane %v2331, 4
        %v2334 = vshll.u32 %v2163, 16
        %v2336 = vrot.slane %v2334, 5
        %v2337 = vsel %vm543, %v2332, %v2336
        %v2339 = vshrl.u32 %v2164, 16
        %v2341 = vrot.slane %v2339, 4
        %v2342 = vshll.u32 %v2164, 16
        %v2344 = vrot.slane %v2342, 5
        %v2345 = vor.u32 %v2341, %v2344
        %v2346 = vrot.slane %v2345, 4
        %v2348 = vshll.u32 %v2165, 16
        %v2350 = vrot.slane %v2348, 5
        %v2351 = vsel %vm543, %v2346, %v2350
        %v2352 = vshrl.u32 %v2165, 16
        %v2354 = vrot.slane %v2352, 4
        %v2355 = vor.u32 %v2354, %v2350
        %v2356 = vrot.slane %v2355, 4
        %v2358 = vshll.u32 %v2166, 16
        %v2360 = vrot.slane %v2358, 5
        %v2361 = vsel %vm543, %v2356, %v2360
        %v2363 = vshrl.u32 %v2167, 16
        %v2365 = vrot.slane %v2363, 4
        %v2366 = vshll.u32 %v2167, 16
        %v2368 = vrot.slane %v2366, 5
        %v2369 = vor.u32 %v2365, %v2368
        %v2370 = vrot.slane %v2369, 4
        %v2372 = vshll.u32 %v2168, 16
        %v2374 = vrot.slane %v2372, 5
        %v2375 = vsel %vm543, %v2370, %v2374
        %v2376 = vshrl.u32 %v2168, 16
        %v2378 = vrot.slane %v2376, 4
        %v2379 = vor.u32 %v2378, %v2374
        %v2380 = vrot.slane %v2379, 4
        %v2382 = vshll.u32 %v2169, 16
        %v2384 = vrot.slane %v2382, 5
        %v2385 = vsel %vm543, %v2380, %v2384
        %v2387 = vshrl.u32 %v2170, 16
        %v2389 = vrot.slane %v2387, 4
        %v2390 = vshll.u32 %v2170, 16
        %v2392 = vrot.slane %v2390, 5
        %v2393 = vor.u32 %v2389, %v2392
        %v2394 = vrot.slane %v2393, 4
        %v2396 = vshll.u32 %v2171, 16
        %v2398 = vrot.slane %v2396, 5
        %v2399 = vsel %vm543, %v2394, %v2398
        %v2400 = vshrl.u32 %v2171, 16
        %v2402 = vrot.slane %v2400, 4
        %v2403 = vor.u32 %v2402, %v2398
        %v2404 = vrot.slane %v2403, 4
        %v2406 = vshll.u32 %v2172, 16
        %v2408 = vrot.slane %v2406, 5
        %v2409 = vsel %vm543, %v2404, %v2408
        %v2411 = vshrl.u32 %v2173, 16
        %v2413 = vrot.slane %v2411, 4
        %v2414 = vshll.u32 %v2173, 16
        %v2416 = vrot.slane %v2414, 5
        %v2417 = vor.u32 %v2413, %v2416
        %v2418 = vrot.slane %v2417, 4
        %v2420 = vshll.u32 %v2174, 16
        %v2422 = vrot.slane %v2420, 5
        %v2423 = vsel %vm543, %v2418, %v2422
        %v2424 = vshrl.u32 %v2174, 16
        %v2426 = vrot.slane %v2424, 4
        %v2427 = vor.u32 %v2426, %v2422
        %v2428 = vrot.slane %v2427, 4
        %v2430 = vshll.u32 %v2175, 16
        %v2432 = vrot.slane %v2430, 5
        %v2433 = vsel %vm543, %v2428, %v2432
        %v2435 = vshrl.u32 %v2176, 16
        %v2437 = vrot.slane %v2435, 4
        %v2438 = vshll.u32 %v2176, 16
        %v2440 = vrot.slane %v2438, 5
        %v2441 = vor.u32 %v2437, %v2440
        %v2442 = vrot.slane %v2441, 4
        %v2444 = vshll.u32 %v2177, 16
        %v2446 = vrot.slane %v2444, 5
        %v2447 = vsel %vm543, %v2442, %v2446
        %v2448 = vshrl.u32 %v2177, 16
        %v2450 = vrot.slane %v2448, 4
        %v2451 = vor.u32 %v2450, %v2446
        %v2452 = vrot.slane %v2451, 4
        %v2454 = vshll.u32 %v2178, 16
        %v2456 = vrot.slane %v2454, 5
        %v2457 = vsel %vm543, %v2452, %v2456
        %v2459 = vshrl.u32 %v2179, 16
        %v2461 = vrot.slane %v2459, 4
        %v2462 = vshll.u32 %v2179, 16
        %v2464 = vrot.slane %v2462, 5
        %v2465 = vor.u32 %v2461, %v2464
        %v2466 = vrot.slane %v2465, 4
        %v2468 = vshll.u32 %v2180, 16
        %v2470 = vrot.slane %v2468, 5
        %v2471 = vsel %vm543, %v2466, %v2470
        %v2472 = vshrl.u32 %v2180, 16
        %v2474 = vrot.slane %v2472, 4
        %v2475 = vor.u32 %v2474, %v2470
        %v2476 = vrot.slane %v2475, 4
        %v2478 = vshll.u32 %v2181, 16
        %v2480 = vrot.slane %v2478, 5
        %v2481 = vsel %vm543, %v2476, %v2480
        %v2483 = vshrl.u32 %v2182, 16
        %v2485 = vrot.slane %v2483, 4
        %v2486 = vshll.u32 %v2182, 16
        %v2488 = vrot.slane %v2486, 5
        %v2489 = vor.u32 %v2485, %v2488
        %v2490 = vrot.slane %v2489, 4
        %v2492 = vshll.u32 %v2183, 16
        %v2494 = vrot.slane %v2492, 5
        %v2495 = vsel %vm543, %v2490, %v2494
        %v2496 = vshrl.u32 %v2183, 16
        %v2498 = vrot.slane %v2496, 4
        %v2499 = vor.u32 %v2498, %v2494
        %v2500 = vrot.slane %v2499, 4
        %v2502 = vshll.u32 %v2184, 16
        %v2504 = vrot.slane %v2502, 5
        %v2505 = vsel %vm543, %v2500, %v2504
        %v2507 = vshrl.u32 %v2185, 16
        %v2509 = vrot.slane %v2507, 4
        %v2510 = vshll.u32 %v2185, 16
        %v2512 = vrot.slane %v2510, 5
        %v2513 = vor.u32 %v2509, %v2512
        %v2514 = vrot.slane %v2513, 4
        %v2516 = vshll.u32 %v2186, 16
        %v2518 = vrot.slane %v2516, 5
        %v2519 = vsel %vm543, %v2514, %v2518
        %v2520 = vshrl.u32 %v2186, 16
        %v2522 = vrot.slane %v2520, 4
        %v2523 = vor.u32 %v2522, %v2518
        %v2524 = vrot.slane %v2523, 4
        %v2526 = vshll.u32 %v2187, 16
        %v2528 = vrot.slane %v2526, 5
        %v2529 = vsel %vm543, %v2524, %v2528
        %v2531 = vshrl.u32 %v2188, 16
        %v2533 = vrot.slane %v2531, 4
        %v2534 = vshll.u32 %v2188, 16
        %v2536 = vrot.slane %v2534, 5
        %v2537 = vor.u32 %v2533, %v2536
        %v2538 = vrot.slane %v2537, 4
        %v2540 = vshll.u32 %v2189, 16
        %v2542 = vrot.slane %v2540, 5
        %v2543 = vsel %vm543, %v2538, %v2542
        %v2544 = vshrl.u32 %v2189, 16
        %v2546 = vrot.slane %v2544, 4
        %v2547 = vor.u32 %v2546, %v2542
        %v2548 = vrot.slane %v2547, 4
        %v2550 = vshll.u32 %v2190, 16
        %v2552 = vrot.slane %v2550, 5
        %v2553 = vsel %vm543, %v2548, %v2552
        %v2555 = vshrl.u32 %v2191, 16
        %v2557 = vrot.slane %v2555, 4
        %v2558 = vshll.u32 %v2191, 16
        %v2560 = vrot.slane %v2558, 5
        %v2561 = vor.u32 %v2557, %v2560
        %v2562 = vrot.slane %v2561, 4
        %v2564 = vshll.u32 %v2192, 16
        %v2566 = vrot.slane %v2564, 5
        %v2567 = vsel %vm543, %v2562, %v2566
        %v2568 = vshrl.u32 %v2192, 16
        %v2570 = vrot.slane %v2568, 4
        %v2571 = vor.u32 %v2570, %v2566
        %v2572 = vrot.slane %v2571, 4
        %v2574 = vshll.u32 %v2193, 16
        %v2576 = vrot.slane %v2574, 5
        %v2577 = vsel %vm543, %v2572, %v2576
        %s2578 = scalar_lea.vmem %s1, 256
        %v2579 = vld [vmem:[%s2578] sm:$0xf]
        %v2580 = vld [vmem:[%s2578 + $0x4] sm:$0xf]
        %v2581 = vld [vmem:[%s2578 + $0x8] sm:$0xf]
        %v2582 = vld [vmem:[%s2578 + $0xc] sm:$0xf]
        %v2583 = vld [vmem:[%s2578 + $0x10] sm:$0xf]
        %v2584 = vld [vmem:[%s2578 + $0x14] sm:$0xf]
        %v2585 = vld [vmem:[%s2578 + $0x18] sm:$0xf]
        %v2586 = vld [vmem:[%s2578 + $0x1c] sm:$0xf]
        %v2587 = vld [vmem:[%s2578 + $0x20] sm:$0xf]
        %v2588 = vld [vmem:[%s2578 + $0x24] sm:$0xf]
        %v2589 = vld [vmem:[%s2578 + $0x28] sm:$0xf]
        %v2590 = vld [vmem:[%s2578 + $0x2c] sm:$0xf]
        %v2591 = vld [vmem:[%s2578 + $0x30] sm:$0xf]
        %v2592 = vld [vmem:[%s2578 + $0x34] sm:$0xf]
        %v2593 = vld [vmem:[%s2578 + $0x38] sm:$0xf]
        %v2594 = vld [vmem:[%s2578 + $0x3c] sm:$0xf]
        %v2595 = vunpack.c.l.b16 %v2207
        %v2596 = vunpack.c.l.b16 %v2217
        %v2597 = vunpack.c.l.b16 %v2231
        %v2598 = vunpack.c.l.b16 %v2241
        %v2599 = vunpack.c.l.b16 %v2255
        %v2600 = vunpack.c.l.b16 %v2265
        %v2601 = vunpack.c.l.b16 %v2279
        %v2602 = vunpack.c.l.b16 %v2289
        %v2603 = vunpack.c.l.b16 %v2303
        %v2604 = vunpack.c.l.b16 %v2313
        %v2605 = vunpack.c.l.b16 %v2327
        %v2606 = vunpack.c.l.b16 %v2337
        %v2607 = vunpack.c.l.b16 %v2351
        %v2608 = vunpack.c.l.b16 %v2361
        %v2609 = vunpack.c.l.b16 %v2375
        %v2610 = vunpack.c.l.b16 %v2385
        %v2611 = vunpack.c.l.b16 %v2399
        %v2612 = vunpack.c.l.b16 %v2409
        %v2613 = vunpack.c.l.b16 %v2423
        %v2614 = vunpack.c.l.b16 %v2433
        %v2615 = vunpack.c.l.b16 %v2447
        %v2616 = vunpack.c.l.b16 %v2457
        %v2617 = vunpack.c.l.b16 %v2471
        %v2618 = vunpack.c.l.b16 %v2481
        %v2619 = vunpack.c.l.b16 %v2495
        %v2620 = vunpack.c.l.b16 %v2505
        %v2621 = vunpack.c.l.b16 %v2519
        %v2622 = vunpack.c.l.b16 %v2529
        %v2623 = vunpack.c.l.b16 %v2543
        %v2624 = vunpack.c.l.b16 %v2553
        %v2625 = vunpack.c.l.b16 %v2567
        %v2626 = vunpack.c.l.b16 %v2577
        %v2627 = vpack.c.b16 %v2596, %v2595
        %v2628 = vpack.c.b16 %v2598, %v2597
        %v2629 = vpack.c.b16 %v2600, %v2599
        %v2630 = vpack.c.b16 %v2602, %v2601
        %v2631 = vpack.c.b16 %v2604, %v2603
        %v2632 = vpack.c.b16 %v2606, %v2605
        %v2633 = vpack.c.b16 %v2608, %v2607
        %v2634 = vpack.c.b16 %v2610, %v2609
        %v2635 = vpack.c.b16 %v2612, %v2611
        %v2636 = vpack.c.b16 %v2614, %v2613
        %v2637 = vpack.c.b16 %v2616, %v2615
        %v2638 = vpack.c.b16 %v2618, %v2617
        %v2639 = vpack.c.b16 %v2620, %v2619
        %v2640 = vpack.c.b16 %v2622, %v2621
        %v2641 = vpack.c.b16 %v2624, %v2623
        %v2642 = vpack.c.b16 %v2626, %v2625
        %v2675 = vunpack.c.l.b16 %v2579
        %v2676 = vunpack.c.l.b16 %v2580
        %v2677 = vunpack.c.l.b16 %v2581
        %v2678 = vunpack.c.l.b16 %v2582
        %v2679 = vunpack.c.l.b16 %v2583
        %v2680 = vunpack.c.l.b16 %v2584
        %v2681 = vunpack.c.l.b16 %v2585
        %v2682 = vunpack.c.l.b16 %v2586
        %v2683 = vunpack.c.l.b16 %v2587
        %v2684 = vunpack.c.l.b16 %v2588
        %v2685 = vunpack.c.l.b16 %v2589
        %v2686 = vunpack.c.l.b16 %v2590
        %v2687 = vunpack.c.l.b16 %v2591
        %v2688 = vunpack.c.l.b16 %v2592
        %v2689 = vunpack.c.l.b16 %v2593
        %v2690 = vunpack.c.l.b16 %v2594
        %v2691 = vpack.c.b16 %v2676, %v2675
        %v2692 = vpack.c.b16 %v2678, %v2677
        %v2693 = vpack.c.b16 %v2680, %v2679
        %v2694 = vpack.c.b16 %v2682, %v2681
        %v2695 = vpack.c.b16 %v2684, %v2683
        %v2696 = vpack.c.b16 %v2686, %v2685
        %v2697 = vpack.c.b16 %v2688, %v2687
        %v2698 = vpack.c.b16 %v2690, %v2689
        %2707 = vmatpush.bf16.msra.mxu0 %v2698
        %2708 = vmatpush.bf16.msra.mxu0 %v2697
        %2709 = vmatpush.bf16.msra.mxu0 %v2696
        %2710 = vmatpush.bf16.msra.mxu0 %v2695
        %2711 = vmatpush.bf16.msra.mxu0 %v2694
        %2712 = vmatpush.bf16.msra.mxu0 %v2693
        %2713 = vmatpush.bf16.msra.mxu0 %v2692
        %2714 = vmatpush.bf16.msra.mxu0 %v2691
        %2715 = vmatmul.bf16.gmra.mxu0 %v2627
        %v2716 = vpop.f32.mrf.mxu0
        %v2717 = vadd.f32 0.0, %v2716
        %v2718 = vpop.f32.mrf.mxu0
        %v2719 = vadd.f32 0.0, %v2718
        %2720 = vmatmul.bf16.gmra.mxu0 %v2628
        %v2721 = vpop.f32.mrf.mxu0
        %v2722 = vadd.f32 0.0, %v2721
        %v2723 = vpop.f32.mrf.mxu0
        %v2724 = vadd.f32 0.0, %v2723
        %2725 = vmatmul.bf16.gmra.mxu0 %v2629
        %v2726 = vpop.f32.mrf.mxu0
        %v2727 = vadd.f32 0.0, %v2726
        %v2728 = vpop.f32.mrf.mxu0
        %v2729 = vadd.f32 0.0, %v2728
        %2730 = vmatmul.bf16.gmra.mxu0 %v2630
        %v2731 = vpop.f32.mrf.mxu0
        %v2732 = vadd.f32 0.0, %v2731
        %v2733 = vpop.f32.mrf.mxu0
        %v2734 = vadd.f32 0.0, %v2733
        %2735 = vmatmul.bf16.gmra.mxu0 %v2631
        %v2736 = vpop.f32.mrf.mxu0
        %v2737 = vadd.f32 0.0, %v2736
        %v2738 = vpop.f32.mrf.mxu0
        %v2739 = vadd.f32 0.0, %v2738
        %2740 = vmatmul.bf16.gmra.mxu0 %v2632
        %v2741 = vpop.f32.mrf.mxu0
        %v2742 = vadd.f32 0.0, %v2741
        %v2743 = vpop.f32.mrf.mxu0
        %v2744 = vadd.f32 0.0, %v2743
        %2745 = vmatmul.bf16.gmra.mxu0 %v2633
        %v2746 = vpop.f32.mrf.mxu0
        %v2747 = vadd.f32 0.0, %v2746
        %v2748 = vpop.f32.mrf.mxu0
        %v2749 = vadd.f32 0.0, %v2748
        %2750 = vmatmul.bf16.gmra.mxu0 %v2634
        %v2751 = vpop.f32.mrf.mxu0
        %v2752 = vadd.f32 0.0, %v2751
        %v2753 = vpop.f32.mrf.mxu0
        %v2754 = vadd.f32 0.0, %v2753
        %2755 = vmatmul.bf16.gmra.mxu0 %v2635
        %v2756 = vpop.f32.mrf.mxu0
        %v2757 = vadd.f32 0.0, %v2756
        %v2758 = vpop.f32.mrf.mxu0
        %v2759 = vadd.f32 0.0, %v2758
        %2760 = vmatmul.bf16.gmra.mxu0 %v2636
        %v2761 = vpop.f32.mrf.mxu0
        %v2762 = vadd.f32 0.0, %v2761
        %v2763 = vpop.f32.mrf.mxu0
        %v2764 = vadd.f32 0.0, %v2763
        %2765 = vmatmul.bf16.gmra.mxu0 %v2637
        %v2766 = vpop.f32.mrf.mxu0
        %v2767 = vadd.f32 0.0, %v2766
        %v2768 = vpop.f32.mrf.mxu0
        %v2769 = vadd.f32 0.0, %v2768
        %2770 = vmatmul.bf16.gmra.mxu0 %v2638
        %v2771 = vpop.f32.mrf.mxu0
        %v2772 = vadd.f32 0.0, %v2771
        %v2773 = vpop.f32.mrf.mxu0
        %v2774 = vadd.f32 0.0, %v2773
        %2775 = vmatmul.bf16.gmra.mxu0 %v2639
        %v2776 = vpop.f32.mrf.mxu0
        %v2777 = vadd.f32 0.0, %v2776
        %v2778 = vpop.f32.mrf.mxu0
        %v2779 = vadd.f32 0.0, %v2778
        %2780 = vmatmul.bf16.gmra.mxu0 %v2640
        %v2781 = vpop.f32.mrf.mxu0
        %v2782 = vadd.f32 0.0, %v2781
        %v2783 = vpop.f32.mrf.mxu0
        %v2784 = vadd.f32 0.0, %v2783
        %2785 = vmatmul.bf16.gmra.mxu0 %v2641
        %v2786 = vpop.f32.mrf.mxu0
        %v2787 = vadd.f32 0.0, %v2786
        %v2788 = vpop.f32.mrf.mxu0
        %v2789 = vadd.f32 0.0, %v2788
        %2790 = vmatmul.bf16.gmra.mxu0 %v2642
        %v2791 = vpop.f32.mrf.mxu0
        %v2792 = vadd.f32 0.0, %v2791
        %v2793 = vpop.f32.mrf.mxu0
        %v2794 = vadd.f32 0.0, %v2793
        %2795 = vdwg.mxu0
        %v2796 = vld [vmem:[%s167] sm:$0xff]
        %v2797 = vld [vmem:[%s167 + $0x8] sm:$0xff]
        %v2798 = vld [vmem:[%s167 + $0x10] sm:$0xff]
        %v2799 = vld [vmem:[%s167 + $0x18] sm:$0xff]
        %v2800 = vld [vmem:[%s167 + $0x20] sm:$0xff]
        %v2801 = vld [vmem:[%s167 + $0x28] sm:$0xff]
        %v2802 = vld [vmem:[%s167 + $0x30] sm:$0xff]
        %v2803 = vld [vmem:[%s167 + $0x38] sm:$0xff]
        %v2804 = vld [vmem:[%s167 + $0x40] sm:$0xff]
        %v2805 = vld [vmem:[%s167 + $0x48] sm:$0xff]
        %v2806 = vld [vmem:[%s167 + $0x50] sm:$0xff]
        %v2807 = vld [vmem:[%s167 + $0x58] sm:$0xff]
        %v2808 = vld [vmem:[%s167 + $0x60] sm:$0xff]
        %v2809 = vld [vmem:[%s167 + $0x68] sm:$0xff]
        %v2810 = vld [vmem:[%s167 + $0x70] sm:$0xff]
        %v2811 = vld [vmem:[%s167 + $0x78] sm:$0xff]
        %v2812 = vld [vmem:[%s167 + $0x80] sm:$0xff]
        %v2813 = vld [vmem:[%s167 + $0x88] sm:$0xff]
        %v2814 = vld [vmem:[%s167 + $0x90] sm:$0xff]
        %v2815 = vld [vmem:[%s167 + $0x98] sm:$0xff]
        %v2816 = vld [vmem:[%s167 + $0xa0] sm:$0xff]
        %v2817 = vld [vmem:[%s167 + $0xa8] sm:$0xff]
        %v2818 = vld [vmem:[%s167 + $0xb0] sm:$0xff]
        %v2819 = vld [vmem:[%s167 + $0xb8] sm:$0xff]
        %v2820 = vld [vmem:[%s167 + $0xc0] sm:$0xff]
        %v2821 = vld [vmem:[%s167 + $0xc8] sm:$0xff]
        %v2822 = vld [vmem:[%s167 + $0xd0] sm:$0xff]
        %v2823 = vld [vmem:[%s167 + $0xd8] sm:$0xff]
        %v2824 = vld [vmem:[%s167 + $0xe0] sm:$0xff]
        %v2825 = vld [vmem:[%s167 + $0xe8] sm:$0xff]
        %v2826 = vld [vmem:[%s167 + $0xf0] sm:$0xff]
        %v2827 = vld [vmem:[%s167 + $0xf8] sm:$0xff]
        %v2828 = vadd.f32 %v2796, %v2717
        %v2829 = vadd.f32 %v2797, %v2719
        %v2830 = vadd.f32 %v2798, %v2722
        %v2831 = vadd.f32 %v2799, %v2724
        %v2832 = vadd.f32 %v2800, %v2727
        %v2833 = vadd.f32 %v2801, %v2729
        %v2834 = vadd.f32 %v2802, %v2732
        %v2835 = vadd.f32 %v2803, %v2734
        %v2836 = vadd.f32 %v2804, %v2737
        %v2837 = vadd.f32 %v2805, %v2739
        %v2838 = vadd.f32 %v2806, %v2742
        %v2839 = vadd.f32 %v2807, %v2744
        %v2840 = vadd.f32 %v2808, %v2747
        %v2841 = vadd.f32 %v2809, %v2749
        %v2842 = vadd.f32 %v2810, %v2752
        %v2843 = vadd.f32 %v2811, %v2754
        %v2844 = vadd.f32 %v2812, %v2757
        %v2845 = vadd.f32 %v2813, %v2759
        %v2846 = vadd.f32 %v2814, %v2762
        %v2847 = vadd.f32 %v2815, %v2764
        %v2848 = vadd.f32 %v2816, %v2767
        %v2849 = vadd.f32 %v2817, %v2769
        %v2850 = vadd.f32 %v2818, %v2772
        %v2851 = vadd.f32 %v2819, %v2774
        %v2852 = vadd.f32 %v2820, %v2777
        %v2853 = vadd.f32 %v2821, %v2779
        %v2854 = vadd.f32 %v2822, %v2782
        %v2855 = vadd.f32 %v2823, %v2784
        %v2856 = vadd.f32 %v2824, %v2787
        %v2857 = vadd.f32 %v2825, %v2789
        %v2858 = vadd.f32 %v2826, %v2792
        %v2859 = vadd.f32 %v2827, %v2794
        %2860 = vst [vmem:[%s167] sm:$0xff] %v2828
        %2861 = vst [vmem:[%s167 + $0x8] sm:$0xff] %v2829
        %2862 = vst [vmem:[%s167 + $0x10] sm:$0xff] %v2830
        %2863 = vst [vmem:[%s167 + $0x18] sm:$0xff] %v2831
        %2864 = vst [vmem:[%s167 + $0x20] sm:$0xff] %v2832
        %2865 = vst [vmem:[%s167 + $0x28] sm:$0xff] %v2833
        %2866 = vst [vmem:[%s167 + $0x30] sm:$0xff] %v2834
        %2867 = vst [vmem:[%s167 + $0x38] sm:$0xff] %v2835
        %2868 = vst [vmem:[%s167 + $0x40] sm:$0xff] %v2836
        %2869 = vst [vmem:[%s167 + $0x48] sm:$0xff] %v2837
        %2870 = vst [vmem:[%s167 + $0x50] sm:$0xff] %v2838
        %2871 = vst [vmem:[%s167 + $0x58] sm:$0xff] %v2839
        %2872 = vst [vmem:[%s167 + $0x60] sm:$0xff] %v2840
        %2873 = vst [vmem:[%s167 + $0x68] sm:$0xff] %v2841
        %2874 = vst [vmem:[%s167 + $0x70] sm:$0xff] %v2842
        %2875 = vst [vmem:[%s167 + $0x78] sm:$0xff] %v2843
        %2876 = vst [vmem:[%s167 + $0x80] sm:$0xff] %v2844
        %2877 = vst [vmem:[%s167 + $0x88] sm:$0xff] %v2845
        %2878 = vst [vmem:[%s167 + $0x90] sm:$0xff] %v2846
        %2879 = vst [vmem:[%s167 + $0x98] sm:$0xff] %v2847
        %2880 = vst [vmem:[%s167 + $0xa0] sm:$0xff] %v2848
        %2881 = vst [vmem:[%s167 + $0xa8] sm:$0xff] %v2849
        %2882 = vst [vmem:[%s167 + $0xb0] sm:$0xff] %v2850
        %2883 = vst [vmem:[%s167 + $0xb8] sm:$0xff] %v2851
        %2884 = vst [vmem:[%s167 + $0xc0] sm:$0xff] %v2852
        %2885 = vst [vmem:[%s167 + $0xc8] sm:$0xff] %v2853
        %2886 = vst [vmem:[%s167 + $0xd0] sm:$0xff] %v2854
        %2887 = vst [vmem:[%s167 + $0xd8] sm:$0xff] %v2855
        %2888 = vst [vmem:[%s167 + $0xe0] sm:$0xff] %v2856
        %2889 = vst [vmem:[%s167 + $0xe8] sm:$0xff] %v2857
        %2890 = vst [vmem:[%s167 + $0xf0] sm:$0xff] %v2858
        %2891 = vst [vmem:[%s167 + $0xf8] sm:$0xff] %v2859
        %v2892 = vld [vmem:[%s1767] sm:$0xe]
        %v2893 = vld [vmem:[%s1767 + $0x4] sm:$0xf]
        %v2894 = vld [vmem:[%s1767 + $0x8] sm:$0x1]
        %v2895 = vld [vmem:[%s1767 + $0xc] sm:$0xe]
        %v2896 = vld [vmem:[%s1767 + $0x10] sm:$0xf]
        %v2897 = vld [vmem:[%s1767 + $0x14] sm:$0x1]
        %v2898 = vld [vmem:[%s1767 + $0x18] sm:$0xe]
        %v2899 = vld [vmem:[%s1767 + $0x1c] sm:$0xf]
        %v2900 = vld [vmem:[%s1767 + $0x20] sm:$0x1]
        %v2901 = vld [vmem:[%s1767 + $0x24] sm:$0xe]
        %v2902 = vld [vmem:[%s1767 + $0x28] sm:$0xf]
        %v2903 = vld [vmem:[%s1767 + $0x2c] sm:$0x1]
        %v2904 = vld [vmem:[%s1767 + $0x30] sm:$0xe]
        %v2905 = vld [vmem:[%s1767 + $0x34] sm:$0xf]
        %v2906 = vld [vmem:[%s1767 + $0x38] sm:$0x1]
        %v2907 = vld [vmem:[%s1767 + $0x3c] sm:$0xe]
        %v2908 = vld [vmem:[%s1767 + $0x40] sm:$0xf]
        %v2909 = vld [vmem:[%s1767 + $0x44] sm:$0x1]
        %v2910 = vld [vmem:[%s1767 + $0x48] sm:$0xe]
        %v2911 = vld [vmem:[%s1767 + $0x4c] sm:$0xf]
        %v2912 = vld [vmem:[%s1767 + $0x50] sm:$0x1]
        %v2913 = vld [vmem:[%s1767 + $0x54] sm:$0xe]
        %v2914 = vld [vmem:[%s1767 + $0x58] sm:$0xf]
        %v2915 = vld [vmem:[%s1767 + $0x5c] sm:$0x1]
        %v2916 = vld [vmem:[%s1767 + $0x60] sm:$0xe]
        %v2917 = vld [vmem:[%s1767 + $0x64] sm:$0xf]
        %v2918 = vld [vmem:[%s1767 + $0x68] sm:$0x1]
        %v2919 = vld [vmem:[%s1767 + $0x6c] sm:$0xe]
        %v2920 = vld [vmem:[%s1767 + $0x70] sm:$0xf]
        %v2921 = vld [vmem:[%s1767 + $0x74] sm:$0x1]
        %v2922 = vld [vmem:[%s1767 + $0x78] sm:$0xe]
        %v2923 = vld [vmem:[%s1767 + $0x7c] sm:$0xf]
        %v2924 = vld [vmem:[%s1767 + $0x80] sm:$0x1]
        %v2925 = vld [vmem:[%s1767 + $0x84] sm:$0xe]
        %v2926 = vld [vmem:[%s1767 + $0x88] sm:$0xf]
        %v2927 = vld [vmem:[%s1767 + $0x8c] sm:$0x1]
        %v2928 = vld [vmem:[%s1767 + $0x90] sm:$0xe]
        %v2929 = vld [vmem:[%s1767 + $0x94] sm:$0xf]
        %v2930 = vld [vmem:[%s1767 + $0x98] sm:$0x1]
        %v2931 = vld [vmem:[%s1767 + $0x9c] sm:$0xe]
        %v2932 = vld [vmem:[%s1767 + $0xa0] sm:$0xf]
        %v2933 = vld [vmem:[%s1767 + $0xa4] sm:$0x1]
        %v2934 = vld [vmem:[%s1767 + $0xa8] sm:$0xe]
        %v2935 = vld [vmem:[%s1767 + $0xac] sm:$0xf]
        %v2936 = vld [vmem:[%s1767 + $0xb0] sm:$0x1]
        %v2937 = vld [vmem:[%s1767 + $0xb4] sm:$0xe]
        %v2938 = vld [vmem:[%s1767 + $0xb8] sm:$0xf]
        %v2939 = vld [vmem:[%s1767 + $0xbc] sm:$0x1]
        %v2988 = vrot.slane %v2892, 5
        %v2989 = vrot.slane %v2988, 4
        %v2990 = vrot.slane %v2893, 5
        %v2991 = vsel %vm1340, %v2989, %v2990
        %v2992 = vrot.slane %v2990, 4
        %v2993 = vrot.slane %v2894, 5
        %v2994 = vsel %vm1340, %v2992, %v2993
        %v2995 = vrot.slane %v2895, 5
        %v2996 = vrot.slane %v2995, 4
        %v2997 = vrot.slane %v2896, 5
        %v2998 = vsel %vm1340, %v2996, %v2997
        %v2999 = vrot.slane %v2997, 4
        %v3000 = vrot.slane %v2897, 5
        %v3001 = vsel %vm1340, %v2999, %v3000
        %v3002 = vrot.slane %v2898, 5
        %v3003 = vrot.slane %v3002, 4
        %v3004 = vrot.slane %v2899, 5
        %v3005 = vsel %vm1340, %v3003, %v3004
        %v3006 = vrot.slane %v3004, 4
        %v3007 = vrot.slane %v2900, 5
        %v3008 = vsel %vm1340, %v3006, %v3007
        %v3009 = vrot.slane %v2901, 5
        %v3010 = vrot.slane %v3009, 4
        %v3011 = vrot.slane %v2902, 5
        %v3012 = vsel %vm1340, %v3010, %v3011
        %v3013 = vrot.slane %v3011, 4
        %v3014 = vrot.slane %v2903, 5
        %v3015 = vsel %vm1340, %v3013, %v3014
        %v3016 = vrot.slane %v2904, 5
        %v3017 = vrot.slane %v3016, 4
        %v3018 = vrot.slane %v2905, 5
        %v3019 = vsel %vm1340, %v3017, %v3018
        %v3020 = vrot.slane %v3018, 4
        %v3021 = vrot.slane %v2906, 5
        %v3022 = vsel %vm1340, %v3020, %v3021
        %v3023 = vrot.slane %v2907, 5
        %v3024 = vrot.slane %v3023, 4
        %v3025 = vrot.slane %v2908, 5
        %v3026 = vsel %vm1340, %v3024, %v3025
        %v3027 = vrot.slane %v3025, 4
        %v3028 = vrot.slane %v2909, 5
        %v3029 = vsel %vm1340, %v3027, %v3028
        %v3030 = vrot.slane %v2910, 5
        %v3031 = vrot.slane %v3030, 4
        %v3032 = vrot.slane %v2911, 5
        %v3033 = vsel %vm1340, %v3031, %v3032
        %v3034 = vrot.slane %v3032, 4
        %v3035 = vrot.slane %v2912, 5
        %v3036 = vsel %vm1340, %v3034, %v3035
        %v3037 = vrot.slane %v2913, 5
        %v3038 = vrot.slane %v3037, 4
        %v3039 = vrot.slane %v2914, 5
        %v3040 = vsel %vm1340, %v3038, %v3039
        %v3041 = vrot.slane %v3039, 4
        %v3042 = vrot.slane %v2915, 5
        %v3043 = vsel %vm1340, %v3041, %v3042
        %v3044 = vrot.slane %v2916, 5
        %v3045 = vrot.slane %v3044, 4
        %v3046 = vrot.slane %v2917, 5
        %v3047 = vsel %vm1340, %v3045, %v3046
        %v3048 = vrot.slane %v3046, 4
        %v3049 = vrot.slane %v2918, 5
        %v3050 = vsel %vm1340, %v3048, %v3049
        %v3051 = vrot.slane %v2919, 5
        %v3052 = vrot.slane %v3051, 4
        %v3053 = vrot.slane %v2920, 5
        %v3054 = vsel %vm1340, %v3052, %v3053
        %v3055 = vrot.slane %v3053, 4
        %v3056 = vrot.slane %v2921, 5
        %v3057 = vsel %vm1340, %v3055, %v3056
        %v3058 = vrot.slane %v2922, 5
        %v3059 = vrot.slane %v3058, 4
        %v3060 = vrot.slane %v2923, 5
        %v3061 = vsel %vm1340, %v3059, %v3060
        %v3062 = vrot.slane %v3060, 4
        %v3063 = vrot.slane %v2924, 5
        %v3064 = vsel %vm1340, %v3062, %v3063
        %v3065 = vrot.slane %v2925, 5
        %v3066 = vrot.slane %v3065, 4
        %v3067 = vrot.slane %v2926, 5
        %v3068 = vsel %vm1340, %v3066, %v3067
        %v3069 = vrot.slane %v3067, 4
        %v3070 = vrot.slane %v2927, 5
        %v3071 = vsel %vm1340, %v3069, %v3070
        %v3072 = vrot.slane %v2928, 5
        %v3073 = vrot.slane %v3072, 4
        %v3074 = vrot.slane %v2929, 5
        %v3075 = vsel %vm1340, %v3073, %v3074
        %v3076 = vrot.slane %v3074, 4
        %v3077 = vrot.slane %v2930, 5
        %v3078 = vsel %vm1340, %v3076, %v3077
        %v3079 = vrot.slane %v2931, 5
        %v3080 = vrot.slane %v3079, 4
        %v3081 = vrot.slane %v2932, 5
        %v3082 = vsel %vm1340, %v3080, %v3081
        %v3083 = vrot.slane %v3081, 4
        %v3084 = vrot.slane %v2933, 5
        %v3085 = vsel %vm1340, %v3083, %v3084
        %v3086 = vrot.slane %v2934, 5
        %v3087 = vrot.slane %v3086, 4
        %v3088 = vrot.slane %v2935, 5
        %v3089 = vsel %vm1340, %v3087, %v3088
        %v3090 = vrot.slane %v3088, 4
        %v3091 = vrot.slane %v2936, 5
        %v3092 = vsel %vm1340, %v3090, %v3091
        %v3093 = vrot.slane %v2937, 5
        %v3094 = vrot.slane %v3093, 4
        %v3095 = vrot.slane %v2938, 5
        %v3096 = vsel %vm1340, %v3094, %v3095
        %v3097 = vrot.slane %v3095, 4
        %v3098 = vrot.slane %v2939, 5
        %v3099 = vsel %vm1340, %v3097, %v3098
        %s3100 = scalar_lea.vmem %s1, 320
        %v3101 = vld [vmem:[%s3100] sm:$0xf]
        %v3102 = vld [vmem:[%s3100 + $0x4] sm:$0xf]
        %v3103 = vld [vmem:[%s3100 + $0x8] sm:$0xf]
        %v3104 = vld [vmem:[%s3100 + $0xc] sm:$0xf]
        %v3105 = vld [vmem:[%s3100 + $0x10] sm:$0xf]
        %v3106 = vld [vmem:[%s3100 + $0x14] sm:$0xf]
        %v3107 = vld [vmem:[%s3100 + $0x18] sm:$0xf]
        %v3108 = vld [vmem:[%s3100 + $0x1c] sm:$0xf]
        %v3109 = vld [vmem:[%s3100 + $0x20] sm:$0xf]
        %v3110 = vld [vmem:[%s3100 + $0x24] sm:$0xf]
        %v3111 = vld [vmem:[%s3100 + $0x28] sm:$0xf]
        %v3112 = vld [vmem:[%s3100 + $0x2c] sm:$0xf]
        %v3113 = vld [vmem:[%s3100 + $0x30] sm:$0xf]
        %v3114 = vld [vmem:[%s3100 + $0x34] sm:$0xf]
        %v3115 = vld [vmem:[%s3100 + $0x38] sm:$0xf]
        %v3116 = vld [vmem:[%s3100 + $0x3c] sm:$0xf]
        %v3117 = vunpack.c.l.b16 %v2991
        %v3118 = vunpack.c.l.b16 %v2994
        %v3119 = vunpack.c.l.b16 %v2998
        %v3120 = vunpack.c.l.b16 %v3001
        %v3121 = vunpack.c.l.b16 %v3005
        %v3122 = vunpack.c.l.b16 %v3008
        %v3123 = vunpack.c.l.b16 %v3012
        %v3124 = vunpack.c.l.b16 %v3015
        %v3125 = vunpack.c.l.b16 %v3019
        %v3126 = vunpack.c.l.b16 %v3022
        %v3127 = vunpack.c.l.b16 %v3026
        %v3128 = vunpack.c.l.b16 %v3029
        %v3129 = vunpack.c.l.b16 %v3033
        %v3130 = vunpack.c.l.b16 %v3036
        %v3131 = vunpack.c.l.b16 %v3040
        %v3132 = vunpack.c.l.b16 %v3043
        %v3133 = vunpack.c.l.b16 %v3047
        %v3134 = vunpack.c.l.b16 %v3050
        %v3135 = vunpack.c.l.b16 %v3054
        %v3136 = vunpack.c.l.b16 %v3057
        %v3137 = vunpack.c.l.b16 %v3061
        %v3138 = vunpack.c.l.b16 %v3064
        %v3139 = vunpack.c.l.b16 %v3068
        %v3140 = vunpack.c.l.b16 %v3071
        %v3141 = vunpack.c.l.b16 %v3075
        %v3142 = vunpack.c.l.b16 %v3078
        %v3143 = vunpack.c.l.b16 %v3082
        %v3144 = vunpack.c.l.b16 %v3085
        %v3145 = vunpack.c.l.b16 %v3089
        %v3146 = vunpack.c.l.b16 %v3092
        %v3147 = vunpack.c.l.b16 %v3096
        %v3148 = vunpack.c.l.b16 %v3099
        %v3149 = vpack.c.b16 %v3118, %v3117
        %v3150 = vpack.c.b16 %v3120, %v3119
        %v3151 = vpack.c.b16 %v3122, %v3121
        %v3152 = vpack.c.b16 %v3124, %v3123
        %v3153 = vpack.c.b16 %v3126, %v3125
        %v3154 = vpack.c.b16 %v3128, %v3127
        %v3155 = vpack.c.b16 %v3130, %v3129
        %v3156 = vpack.c.b16 %v3132, %v3131
        %v3157 = vpack.c.b16 %v3134, %v3133
        %v3158 = vpack.c.b16 %v3136, %v3135
        %v3159 = vpack.c.b16 %v3138, %v3137
        %v3160 = vpack.c.b16 %v3140, %v3139
        %v3161 = vpack.c.b16 %v3142, %v3141
        %v3162 = vpack.c.b16 %v3144, %v3143
        %v3163 = vpack.c.b16 %v3146, %v3145
        %v3164 = vpack.c.b16 %v3148, %v3147
        %v3197 = vunpack.c.l.b16 %v3101
        %v3198 = vunpack.c.l.b16 %v3102
        %v3199 = vunpack.c.l.b16 %v3103
        %v3200 = vunpack.c.l.b16 %v3104
        %v3201 = vunpack.c.l.b16 %v3105
        %v3202 = vunpack.c.l.b16 %v3106
        %v3203 = vunpack.c.l.b16 %v3107
        %v3204 = vunpack.c.l.b16 %v3108
        %v3205 = vunpack.c.l.b16 %v3109
        %v3206 = vunpack.c.l.b16 %v3110
        %v3207 = vunpack.c.l.b16 %v3111
        %v3208 = vunpack.c.l.b16 %v3112
        %v3209 = vunpack.c.l.b16 %v3113
        %v3210 = vunpack.c.l.b16 %v3114
        %v3211 = vunpack.c.l.b16 %v3115
        %v3212 = vunpack.c.l.b16 %v3116
        %v3213 = vpack.c.b16 %v3198, %v3197
        %v3214 = vpack.c.b16 %v3200, %v3199
        %v3215 = vpack.c.b16 %v3202, %v3201
        %v3216 = vpack.c.b16 %v3204, %v3203
        %v3217 = vpack.c.b16 %v3206, %v3205
        %v3218 = vpack.c.b16 %v3208, %v3207
        %v3219 = vpack.c.b16 %v3210, %v3209
        %v3220 = vpack.c.b16 %v3212, %v3211
        %3229 = vmatpush.bf16.msra.mxu0 %v3220
        %3230 = vmatpush.bf16.msra.mxu0 %v3219
        %3231 = vmatpush.bf16.msra.mxu0 %v3218
        %3232 = vmatpush.bf16.msra.mxu0 %v3217
        %3233 = vmatpush.bf16.msra.mxu0 %v3216
        %3234 = vmatpush.bf16.msra.mxu0 %v3215
        %3235 = vmatpush.bf16.msra.mxu0 %v3214
        %3236 = vmatpush.bf16.msra.mxu0 %v3213
        %3237 = vmatmul.bf16.gmra.mxu0 %v3149
        %v3238 = vpop.f32.mrf.mxu0
        %v3239 = vadd.f32 0.0, %v3238
        %v3240 = vpop.f32.mrf.mxu0
        %v3241 = vadd.f32 0.0, %v3240
        %3242 = vmatmul.bf16.gmra.mxu0 %v3150
        %v3243 = vpop.f32.mrf.mxu0
        %v3244 = vadd.f32 0.0, %v3243
        %v3245 = vpop.f32.mrf.mxu0
        %v3246 = vadd.f32 0.0, %v3245
        %3247 = vmatmul.bf16.gmra.mxu0 %v3151
        %v3248 = vpop.f32.mrf.mxu0
        %v3249 = vadd.f32 0.0, %v3248
        %v3250 = vpop.f32.mrf.mxu0
        %v3251 = vadd.f32 0.0, %v3250
        %3252 = vmatmul.bf16.gmra.mxu0 %v3152
        %v3253 = vpop.f32.mrf.mxu0
        %v3254 = vadd.f32 0.0, %v3253
        %v3255 = vpop.f32.mrf.mxu0
        %v3256 = vadd.f32 0.0, %v3255
        %3257 = vmatmul.bf16.gmra.mxu0 %v3153
        %v3258 = vpop.f32.mrf.mxu0
        %v3259 = vadd.f32 0.0, %v3258
        %v3260 = vpop.f32.mrf.mxu0
        %v3261 = vadd.f32 0.0, %v3260
        %3262 = vmatmul.bf16.gmra.mxu0 %v3154
        %v3263 = vpop.f32.mrf.mxu0
        %v3264 = vadd.f32 0.0, %v3263
        %v3265 = vpop.f32.mrf.mxu0
        %v3266 = vadd.f32 0.0, %v3265
        %3267 = vmatmul.bf16.gmra.mxu0 %v3155
        %v3268 = vpop.f32.mrf.mxu0
        %v3269 = vadd.f32 0.0, %v3268
        %v3270 = vpop.f32.mrf.mxu0
        %v3271 = vadd.f32 0.0, %v3270
        %3272 = vmatmul.bf16.gmra.mxu0 %v3156
        %v3273 = vpop.f32.mrf.mxu0
        %v3274 = vadd.f32 0.0, %v3273
        %v3275 = vpop.f32.mrf.mxu0
        %v3276 = vadd.f32 0.0, %v3275
        %3277 = vmatmul.bf16.gmra.mxu0 %v3157
        %v3278 = vpop.f32.mrf.mxu0
        %v3279 = vadd.f32 0.0, %v3278
        %v3280 = vpop.f32.mrf.mxu0
        %v3281 = vadd.f32 0.0, %v3280
        %3282 = vmatmul.bf16.gmra.mxu0 %v3158
        %v3283 = vpop.f32.mrf.mxu0
        %v3284 = vadd.f32 0.0, %v3283
        %v3285 = vpop.f32.mrf.mxu0
        %v3286 = vadd.f32 0.0, %v3285
        %3287 = vmatmul.bf16.gmra.mxu0 %v3159
        %v3288 = vpop.f32.mrf.mxu0
        %v3289 = vadd.f32 0.0, %v3288
        %v3290 = vpop.f32.mrf.mxu0
        %v3291 = vadd.f32 0.0, %v3290
        %3292 = vmatmul.bf16.gmra.mxu0 %v3160
        %v3293 = vpop.f32.mrf.mxu0
        %v3294 = vadd.f32 0.0, %v3293
        %v3295 = vpop.f32.mrf.mxu0
        %v3296 = vadd.f32 0.0, %v3295
        %3297 = vmatmul.bf16.gmra.mxu0 %v3161
        %v3298 = vpop.f32.mrf.mxu0
        %v3299 = vadd.f32 0.0, %v3298
        %v3300 = vpop.f32.mrf.mxu0
        %v3301 = vadd.f32 0.0, %v3300
        %3302 = vmatmul.bf16.gmra.mxu0 %v3162
        %v3303 = vpop.f32.mrf.mxu0
        %v3304 = vadd.f32 0.0, %v3303
        %v3305 = vpop.f32.mrf.mxu0
        %v3306 = vadd.f32 0.0, %v3305
        %3307 = vmatmul.bf16.gmra.mxu0 %v3163
        %v3308 = vpop.f32.mrf.mxu0
        %v3309 = vadd.f32 0.0, %v3308
        %v3310 = vpop.f32.mrf.mxu0
        %v3311 = vadd.f32 0.0, %v3310
        %3312 = vmatmul.bf16.gmra.mxu0 %v3164
        %v3313 = vpop.f32.mrf.mxu0
        %v3314 = vadd.f32 0.0, %v3313
        %v3315 = vpop.f32.mrf.mxu0
        %v3316 = vadd.f32 0.0, %v3315
        %3317 = vdwg.mxu0
        %v3318 = vld [vmem:[%s167] sm:$0xff]
        %v3319 = vld [vmem:[%s167 + $0x8] sm:$0xff]
        %v3320 = vld [vmem:[%s167 + $0x10] sm:$0xff]
        %v3321 = vld [vmem:[%s167 + $0x18] sm:$0xff]
        %v3322 = vld [vmem:[%s167 + $0x20] sm:$0xff]
        %v3323 = vld [vmem:[%s167 + $0x28] sm:$0xff]
        %v3324 = vld [vmem:[%s167 + $0x30] sm:$0xff]
        %v3325 = vld [vmem:[%s167 + $0x38] sm:$0xff]
        %v3326 = vld [vmem:[%s167 + $0x40] sm:$0xff]
        %v3327 = vld [vmem:[%s167 + $0x48] sm:$0xff]
        %v3328 = vld [vmem:[%s167 + $0x50] sm:$0xff]
        %v3329 = vld [vmem:[%s167 + $0x58] sm:$0xff]
        %v3330 = vld [vmem:[%s167 + $0x60] sm:$0xff]
        %v3331 = vld [vmem:[%s167 + $0x68] sm:$0xff]
        %v3332 = vld [vmem:[%s167 + $0x70] sm:$0xff]
        %v3333 = vld [vmem:[%s167 + $0x78] sm:$0xff]
        %v3334 = vld [vmem:[%s167 + $0x80] sm:$0xff]
        %v3335 = vld [vmem:[%s167 + $0x88] sm:$0xff]
        %v3336 = vld [vmem:[%s167 + $0x90] sm:$0xff]
        %v3337 = vld [vmem:[%s167 + $0x98] sm:$0xff]
        %v3338 = vld [vmem:[%s167 + $0xa0] sm:$0xff]
        %v3339 = vld [vmem:[%s167 + $0xa8] sm:$0xff]
        %v3340 = vld [vmem:[%s167 + $0xb0] sm:$0xff]
        %v3341 = vld [vmem:[%s167 + $0xb8] sm:$0xff]
        %v3342 = vld [vmem:[%s167 + $0xc0] sm:$0xff]
        %v3343 = vld [vmem:[%s167 + $0xc8] sm:$0xff]
        %v3344 = vld [vmem:[%s167 + $0xd0] sm:$0xff]
        %v3345 = vld [vmem:[%s167 + $0xd8] sm:$0xff]
        %v3346 = vld [vmem:[%s167 + $0xe0] sm:$0xff]
        %v3347 = vld [vmem:[%s167 + $0xe8] sm:$0xff]
        %v3348 = vld [vmem:[%s167 + $0xf0] sm:$0xff]
        %v3349 = vld [vmem:[%s167 + $0xf8] sm:$0xff]
        %v3350 = vadd.f32 %v3318, %v3239
        %v3351 = vadd.f32 %v3319, %v3241
        %v3352 = vadd.f32 %v3320, %v3244
        %v3353 = vadd.f32 %v3321, %v3246
        %v3354 = vadd.f32 %v3322, %v3249
        %v3355 = vadd.f32 %v3323, %v3251
        %v3356 = vadd.f32 %v3324, %v3254
        %v3357 = vadd.f32 %v3325, %v3256
        %v3358 = vadd.f32 %v3326, %v3259
        %v3359 = vadd.f32 %v3327, %v3261
        %v3360 = vadd.f32 %v3328, %v3264
        %v3361 = vadd.f32 %v3329, %v3266
        %v3362 = vadd.f32 %v3330, %v3269
        %v3363 = vadd.f32 %v3331, %v3271
        %v3364 = vadd.f32 %v3332, %v3274
        %v3365 = vadd.f32 %v3333, %v3276
        %v3366 = vadd.f32 %v3334, %v3279
        %v3367 = vadd.f32 %v3335, %v3281
        %v3368 = vadd.f32 %v3336, %v3284
        %v3369 = vadd.f32 %v3337, %v3286
        %v3370 = vadd.f32 %v3338, %v3289
        %v3371 = vadd.f32 %v3339, %v3291
        %v3372 = vadd.f32 %v3340, %v3294
        %v3373 = vadd.f32 %v3341, %v3296
        %v3374 = vadd.f32 %v3342, %v3299
        %v3375 = vadd.f32 %v3343, %v3301
        %v3376 = vadd.f32 %v3344, %v3304
        %v3377 = vadd.f32 %v3345, %v3306
        %v3378 = vadd.f32 %v3346, %v3309
        %v3379 = vadd.f32 %v3347, %v3311
        %v3380 = vadd.f32 %v3348, %v3314
        %v3381 = vadd.f32 %v3349, %v3316
        %3382 = vst [vmem:[%s167] sm:$0xff] %v3350
        %3383 = vst [vmem:[%s167 + $0x8] sm:$0xff] %v3351
        %3384 = vst [vmem:[%s167 + $0x10] sm:$0xff] %v3352
        %3385 = vst [vmem:[%s167 + $0x18] sm:$0xff] %v3353
        %3386 = vst [vmem:[%s167 + $0x20] sm:$0xff] %v3354
        %3387 = vst [vmem:[%s167 + $0x28] sm:$0xff] %v3355
        %3388 = vst [vmem:[%s167 + $0x30] sm:$0xff] %v3356
        %3389 = vst [vmem:[%s167 + $0x38] sm:$0xff] %v3357
        %3390 = vst [vmem:[%s167 + $0x40] sm:$0xff] %v3358
        %3391 = vst [vmem:[%s167 + $0x48] sm:$0xff] %v3359
        %3392 = vst [vmem:[%s167 + $0x50] sm:$0xff] %v3360
        %3393 = vst [vmem:[%s167 + $0x58] sm:$0xff] %v3361
        %3394 = vst [vmem:[%s167 + $0x60] sm:$0xff] %v3362
        %3395 = vst [vmem:[%s167 + $0x68] sm:$0xff] %v3363
        %3396 = vst [vmem:[%s167 + $0x70] sm:$0xff] %v3364
        %3397 = vst [vmem:[%s167 + $0x78] sm:$0xff] %v3365
        %3398 = vst [vmem:[%s167 + $0x80] sm:$0xff] %v3366
        %3399 = vst [vmem:[%s167 + $0x88] sm:$0xff] %v3367
        %3400 = vst [vmem:[%s167 + $0x90] sm:$0xff] %v3368
        %3401 = vst [vmem:[%s167 + $0x98] sm:$0xff] %v3369
        %3402 = vst [vmem:[%s167 + $0xa0] sm:$0xff] %v3370
        %3403 = vst [vmem:[%s167 + $0xa8] sm:$0xff] %v3371
        %3404 = vst [vmem:[%s167 + $0xb0] sm:$0xff] %v3372
        %3405 = vst [vmem:[%s167 + $0xb8] sm:$0xff] %v3373
        %3406 = vst [vmem:[%s167 + $0xc0] sm:$0xff] %v3374
        %3407 = vst [vmem:[%s167 + $0xc8] sm:$0xff] %v3375
        %3408 = vst [vmem:[%s167 + $0xd0] sm:$0xff] %v3376
        %3409 = vst [vmem:[%s167 + $0xd8] sm:$0xff] %v3377
        %3410 = vst [vmem:[%s167 + $0xe0] sm:$0xff] %v3378
        %3411 = vst [vmem:[%s167 + $0xe8] sm:$0xff] %v3379
        %3412 = vst [vmem:[%s167 + $0xf0] sm:$0xff] %v3380
        %3413 = vst [vmem:[%s167 + $0xf8] sm:$0xff] %v3381
        %s3414 = scalar_lea.vmem %s179, 24
        %v3415 = vld [vmem:[%s3414] sm:$0xf]
        %v3416 = vld [vmem:[%s3414 + $0x4] sm:$0xf]
        %v3417 = vld [vmem:[%s3414 + $0xc] sm:$0xf]
        %v3418 = vld [vmem:[%s3414 + $0x10] sm:$0xf]
        %v3419 = vld [vmem:[%s3414 + $0x18] sm:$0xf]
        %v3420 = vld [vmem:[%s3414 + $0x1c] sm:$0xf]
        %v3421 = vld [vmem:[%s3414 + $0x24] sm:$0xf]
        %v3422 = vld [vmem:[%s3414 + $0x28] sm:$0xf]
        %v3423 = vld [vmem:[%s3414 + $0x30] sm:$0xf]
        %v3424 = vld [vmem:[%s3414 + $0x34] sm:$0xf]
        %v3425 = vld [vmem:[%s3414 + $0x3c] sm:$0xf]
        %v3426 = vld [vmem:[%s3414 + $0x40] sm:$0xf]
        %v3427 = vld [vmem:[%s3414 + $0x48] sm:$0xf]
        %v3428 = vld [vmem:[%s3414 + $0x4c] sm:$0xf]
        %v3429 = vld [vmem:[%s3414 + $0x54] sm:$0xf]
        %v3430 = vld [vmem:[%s3414 + $0x58] sm:$0xf]
        %v3431 = vld [vmem:[%s3414 + $0x60] sm:$0xf]
        %v3432 = vld [vmem:[%s3414 + $0x64] sm:$0xf]
        %v3433 = vld [vmem:[%s3414 + $0x6c] sm:$0xf]
        %v3434 = vld [vmem:[%s3414 + $0x70] sm:$0xf]
        %v3435 = vld [vmem:[%s3414 + $0x78] sm:$0xf]
        %v3436 = vld [vmem:[%s3414 + $0x7c] sm:$0xf]
        %v3437 = vld [vmem:[%s3414 + $0x84] sm:$0xf]
        %v3438 = vld [vmem:[%s3414 + $0x88] sm:$0xf]
        %v3439 = vld [vmem:[%s3414 + $0x90] sm:$0xf]
        %v3440 = vld [vmem:[%s3414 + $0x94] sm:$0xf]
        %v3441 = vld [vmem:[%s3414 + $0x9c] sm:$0xf]
        %v3442 = vld [vmem:[%s3414 + $0xa0] sm:$0xf]
        %v3443 = vld [vmem:[%s3414 + $0xa8] sm:$0xf]
        %v3444 = vld [vmem:[%s3414 + $0xac] sm:$0xf]
        %v3445 = vld [vmem:[%s3414 + $0xb4] sm:$0xf]
        %v3446 = vld [vmem:[%s3414 + $0xb8] sm:$0xf]
        %s3447 = scalar_lea.vmem %s1, 384
        %v3448 = vld [vmem:[%s3447] sm:$0xf]
        %v3449 = vld [vmem:[%s3447 + $0x4] sm:$0xf]
        %v3450 = vld [vmem:[%s3447 + $0x8] sm:$0xf]
        %v3451 = vld [vmem:[%s3447 + $0xc] sm:$0xf]
        %v3452 = vld [vmem:[%s3447 + $0x10] sm:$0xf]
        %v3453 = vld [vmem:[%s3447 + $0x14] sm:$0xf]
        %v3454 = vld [vmem:[%s3447 + $0x18] sm:$0xf]
        %v3455 = vld [vmem:[%s3447 + $0x1c] sm:$0xf]
        %v3456 = vld [vmem:[%s3447 + $0x20] sm:$0xf]
        %v3457 = vld [vmem:[%s3447 + $0x24] sm:$0xf]
        %v3458 = vld [vmem:[%s3447 + $0x28] sm:$0xf]
        %v3459 = vld [vmem:[%s3447 + $0x2c] sm:$0xf]
        %v3460 = vld [vmem:[%s3447 + $0x30] sm:$0xf]
        %v3461 = vld [vmem:[%s3447 + $0x34] sm:$0xf]
        %v3462 = vld [vmem:[%s3447 + $0x38] sm:$0xf]
        %v3463 = vld [vmem:[%s3447 + $0x3c] sm:$0xf]
        %v3496 = vunpack.c.l.b16 %v3415
        %v3497 = vunpack.c.l.b16 %v3416
        %v3498 = vunpack.c.l.b16 %v3417
        %v3499 = vunpack.c.l.b16 %v3418
        %v3500 = vunpack.c.l.b16 %v3419
        %v3501 = vunpack.c.l.b16 %v3420
        %v3502 = vunpack.c.l.b16 %v3421
        %v3503 = vunpack.c.l.b16 %v3422
        %v3504 = vunpack.c.l.b16 %v3423
        %v3505 = vunpack.c.l.b16 %v3424
        %v3506 = vunpack.c.l.b16 %v3425
        %v3507 = vunpack.c.l.b16 %v3426
        %v3508 = vunpack.c.l.b16 %v3427
        %v3509 = vunpack.c.l.b16 %v3428
        %v3510 = vunpack.c.l.b16 %v3429
        %v3511 = vunpack.c.l.b16 %v3430
        %v3512 = vunpack.c.l.b16 %v3431
        %v3513 = vunpack.c.l.b16 %v3432
        %v3514 = vunpack.c.l.b16 %v3433
        %v3515 = vunpack.c.l.b16 %v3434
        %v3516 = vunpack.c.l.b16 %v3435
        %v3517 = vunpack.c.l.b16 %v3436
        %v3518 = vunpack.c.l.b16 %v3437
        %v3519 = vunpack.c.l.b16 %v3438
        %v3520 = vunpack.c.l.b16 %v3439
        %v3521 = vunpack.c.l.b16 %v3440
        %v3522 = vunpack.c.l.b16 %v3441
        %v3523 = vunpack.c.l.b16 %v3442
        %v3524 = vunpack.c.l.b16 %v3443
        %v3525 = vunpack.c.l.b16 %v3444
        %v3526 = vunpack.c.l.b16 %v3445
        %v3527 = vunpack.c.l.b16 %v3446
        %v3528 = vpack.c.b16 %v3497, %v3496
        %v3529 = vpack.c.b16 %v3499, %v3498
        %v3530 = vpack.c.b16 %v3501, %v3500
        %v3531 = vpack.c.b16 %v3503, %v3502
        %v3532 = vpack.c.b16 %v3505, %v3504
        %v3533 = vpack.c.b16 %v3507, %v3506
        %v3534 = vpack.c.b16 %v3509, %v3508
        %v3535 = vpack.c.b16 %v3511, %v3510
        %v3536 = vpack.c.b16 %v3513, %v3512
        %v3537 = vpack.c.b16 %v3515, %v3514
        %v3538 = vpack.c.b16 %v3517, %v3516
        %v3539 = vpack.c.b16 %v3519, %v3518
        %v3540 = vpack.c.b16 %v3521, %v3520
        %v3541 = vpack.c.b16 %v3523, %v3522
        %v3542 = vpack.c.b16 %v3525, %v3524
        %v3543 = vpack.c.b16 %v3527, %v3526
        %v3576 = vunpack.c.l.b16 %v3448
        %v3577 = vunpack.c.l.b16 %v3449
        %v3578 = vunpack.c.l.b16 %v3450
        %v3579 = vunpack.c.l.b16 %v3451
        %v3580 = vunpack.c.l.b16 %v3452
        %v3581 = vunpack.c.l.b16 %v3453
        %v3582 = vunpack.c.l.b16 %v3454
        %v3583 = vunpack.c.l.b16 %v3455
        %v3584 = vunpack.c.l.b16 %v3456
        %v3585 = vunpack.c.l.b16 %v3457
        %v3586 = vunpack.c.l.b16 %v3458
        %v3587 = vunpack.c.l.b16 %v3459
        %v3588 = vunpack.c.l.b16 %v3460
        %v3589 = vunpack.c.l.b16 %v3461
        %v3590 = vunpack.c.l.b16 %v3462
        %v3591 = vunpack.c.l.b16 %v3463
        %v3592 = vpack.c.b16 %v3577, %v3576
        %v3593 = vpack.c.b16 %v3579, %v3578
        %v3594 = vpack.c.b16 %v3581, %v3580
        %v3595 = vpack.c.b16 %v3583, %v3582
        %v3596 = vpack.c.b16 %v3585, %v3584
        %v3597 = vpack.c.b16 %v3587, %v3586
        %v3598 = vpack.c.b16 %v3589, %v3588
        %v3599 = vpack.c.b16 %v3591, %v3590
        %3608 = vmatpush.bf16.msra.mxu0 %v3599
        %3609 = vmatpush.bf16.msra.mxu0 %v3598
        %3610 = vmatpush.bf16.msra.mxu0 %v3597
        %3611 = vmatpush.bf16.msra.mxu0 %v3596
        %3612 = vmatpush.bf16.msra.mxu0 %v3595
        %3613 = vmatpush.bf16.msra.mxu0 %v3594
        %3614 = vmatpush.bf16.msra.mxu0 %v3593
        %3615 = vmatpush.bf16.msra.mxu0 %v3592
        %3616 = vmatmul.bf16.gmra.mxu0 %v3528
        %v3617 = vpop.f32.mrf.mxu0
        %v3618 = vadd.f32 0.0, %v3617
        %v3619 = vpop.f32.mrf.mxu0
        %v3620 = vadd.f32 0.0, %v3619
        %3621 = vmatmul.bf16.gmra.mxu0 %v3529
        %v3622 = vpop.f32.mrf.mxu0
        %v3623 = vadd.f32 0.0, %v3622
        %v3624 = vpop.f32.mrf.mxu0
        %v3625 = vadd.f32 0.0, %v3624
        %3626 = vmatmul.bf16.gmra.mxu0 %v3530
        %v3627 = vpop.f32.mrf.mxu0
        %v3628 = vadd.f32 0.0, %v3627
        %v3629 = vpop.f32.mrf.mxu0
        %v3630 = vadd.f32 0.0, %v3629
        %3631 = vmatmul.bf16.gmra.mxu0 %v3531
        %v3632 = vpop.f32.mrf.mxu0
        %v3633 = vadd.f32 0.0, %v3632
        %v3634 = vpop.f32.mrf.mxu0
        %v3635 = vadd.f32 0.0, %v3634
        %3636 = vmatmul.bf16.gmra.mxu0 %v3532
        %v3637 = vpop.f32.mrf.mxu0
        %v3638 = vadd.f32 0.0, %v3637
        %v3639 = vpop.f32.mrf.mxu0
        %v3640 = vadd.f32 0.0, %v3639
        %3641 = vmatmul.bf16.gmra.mxu0 %v3533
        %v3642 = vpop.f32.mrf.mxu0
        %v3643 = vadd.f32 0.0, %v3642
        %v3644 = vpop.f32.mrf.mxu0
        %v3645 = vadd.f32 0.0, %v3644
        %3646 = vmatmul.bf16.gmra.mxu0 %v3534
        %v3647 = vpop.f32.mrf.mxu0
        %v3648 = vadd.f32 0.0, %v3647
        %v3649 = vpop.f32.mrf.mxu0
        %v3650 = vadd.f32 0.0, %v3649
        %3651 = vmatmul.bf16.gmra.mxu0 %v3535
        %v3652 = vpop.f32.mrf.mxu0
        %v3653 = vadd.f32 0.0, %v3652
        %v3654 = vpop.f32.mrf.mxu0
        %v3655 = vadd.f32 0.0, %v3654
        %3656 = vmatmul.bf16.gmra.mxu0 %v3536
        %v3657 = vpop.f32.mrf.mxu0
        %v3658 = vadd.f32 0.0, %v3657
        %v3659 = vpop.f32.mrf.mxu0
        %v3660 = vadd.f32 0.0, %v3659
        %3661 = vmatmul.bf16.gmra.mxu0 %v3537
        %v3662 = vpop.f32.mrf.mxu0
        %v3663 = vadd.f32 0.0, %v3662
        %v3664 = vpop.f32.mrf.mxu0
        %v3665 = vadd.f32 0.0, %v3664
        %3666 = vmatmul.bf16.gmra.mxu0 %v3538
        %v3667 = vpop.f32.mrf.mxu0
        %v3668 = vadd.f32 0.0, %v3667
        %v3669 = vpop.f32.mrf.mxu0
        %v3670 = vadd.f32 0.0, %v3669
        %3671 = vmatmul.bf16.gmra.mxu0 %v3539
        %v3672 = vpop.f32.mrf.mxu0
        %v3673 = vadd.f32 0.0, %v3672
        %v3674 = vpop.f32.mrf.mxu0
        %v3675 = vadd.f32 0.0, %v3674
        %3676 = vmatmul.bf16.gmra.mxu0 %v3540
        %v3677 = vpop.f32.mrf.mxu0
        %v3678 = vadd.f32 0.0, %v3677
        %v3679 = vpop.f32.mrf.mxu0
        %v3680 = vadd.f32 0.0, %v3679
        %3681 = vmatmul.bf16.gmra.mxu0 %v3541
        %v3682 = vpop.f32.mrf.mxu0
        %v3683 = vadd.f32 0.0, %v3682
        %v3684 = vpop.f32.mrf.mxu0
        %v3685 = vadd.f32 0.0, %v3684
        %3686 = vmatmul.bf16.gmra.mxu0 %v3542
        %v3687 = vpop.f32.mrf.mxu0
        %v3688 = vadd.f32 0.0, %v3687
        %v3689 = vpop.f32.mrf.mxu0
        %v3690 = vadd.f32 0.0, %v3689
        %3691 = vmatmul.bf16.gmra.mxu0 %v3543
        %v3692 = vpop.f32.mrf.mxu0
        %v3693 = vadd.f32 0.0, %v3692
        %v3694 = vpop.f32.mrf.mxu0
        %v3695 = vadd.f32 0.0, %v3694
        %3696 = vdwg.mxu0
        %v3697 = vld [vmem:[%s167] sm:$0xff]
        %v3698 = vld [vmem:[%s167 + $0x8] sm:$0xff]
        %v3699 = vld [vmem:[%s167 + $0x10] sm:$0xff]
        %v3700 = vld [vmem:[%s167 + $0x18] sm:$0xff]
        %v3701 = vld [vmem:[%s167 + $0x20] sm:$0xff]
        %v3702 = vld [vmem:[%s167 + $0x28] sm:$0xff]
        %v3703 = vld [vmem:[%s167 + $0x30] sm:$0xff]
        %v3704 = vld [vmem:[%s167 + $0x38] sm:$0xff]
        %v3705 = vld [vmem:[%s167 + $0x40] sm:$0xff]
        %v3706 = vld [vmem:[%s167 + $0x48] sm:$0xff]
        %v3707 = vld [vmem:[%s167 + $0x50] sm:$0xff]
        %v3708 = vld [vmem:[%s167 + $0x58] sm:$0xff]
        %v3709 = vld [vmem:[%s167 + $0x60] sm:$0xff]
        %v3710 = vld [vmem:[%s167 + $0x68] sm:$0xff]
        %v3711 = vld [vmem:[%s167 + $0x70] sm:$0xff]
        %v3712 = vld [vmem:[%s167 + $0x78] sm:$0xff]
        %v3713 = vld [vmem:[%s167 + $0x80] sm:$0xff]
        %v3714 = vld [vmem:[%s167 + $0x88] sm:$0xff]
        %v3715 = vld [vmem:[%s167 + $0x90] sm:$0xff]
        %v3716 = vld [vmem:[%s167 + $0x98] sm:$0xff]
        %v3717 = vld [vmem:[%s167 + $0xa0] sm:$0xff]
        %v3718 = vld [vmem:[%s167 + $0xa8] sm:$0xff]
        %v3719 = vld [vmem:[%s167 + $0xb0] sm:$0xff]
        %v3720 = vld [vmem:[%s167 + $0xb8] sm:$0xff]
        %v3721 = vld [vmem:[%s167 + $0xc0] sm:$0xff]
        %v3722 = vld [vmem:[%s167 + $0xc8] sm:$0xff]
        %v3723 = vld [vmem:[%s167 + $0xd0] sm:$0xff]
        %v3724 = vld [vmem:[%s167 + $0xd8] sm:$0xff]
        %v3725 = vld [vmem:[%s167 + $0xe0] sm:$0xff]
        %v3726 = vld [vmem:[%s167 + $0xe8] sm:$0xff]
        %v3727 = vld [vmem:[%s167 + $0xf0] sm:$0xff]
        %v3728 = vld [vmem:[%s167 + $0xf8] sm:$0xff]
        %v3729 = vadd.f32 %v3697, %v3618
        %v3730 = vadd.f32 %v3698, %v3620
        %v3731 = vadd.f32 %v3699, %v3623
        %v3732 = vadd.f32 %v3700, %v3625
        %v3733 = vadd.f32 %v3701, %v3628
        %v3734 = vadd.f32 %v3702, %v3630
        %v3735 = vadd.f32 %v3703, %v3633
        %v3736 = vadd.f32 %v3704, %v3635
        %v3737 = vadd.f32 %v3705, %v3638
        %v3738 = vadd.f32 %v3706, %v3640
        %v3739 = vadd.f32 %v3707, %v3643
        %v3740 = vadd.f32 %v3708, %v3645
        %v3741 = vadd.f32 %v3709, %v3648
        %v3742 = vadd.f32 %v3710, %v3650
        %v3743 = vadd.f32 %v3711, %v3653
        %v3744 = vadd.f32 %v3712, %v3655
        %v3745 = vadd.f32 %v3713, %v3658
        %v3746 = vadd.f32 %v3714, %v3660
        %v3747 = vadd.f32 %v3715, %v3663
        %v3748 = vadd.f32 %v3716, %v3665
        %v3749 = vadd.f32 %v3717, %v3668
        %v3750 = vadd.f32 %v3718, %v3670
        %v3751 = vadd.f32 %v3719, %v3673
        %v3752 = vadd.f32 %v3720, %v3675
        %v3753 = vadd.f32 %v3721, %v3678
        %v3754 = vadd.f32 %v3722, %v3680
        %v3755 = vadd.f32 %v3723, %v3683
        %v3756 = vadd.f32 %v3724, %v3685
        %v3757 = vadd.f32 %v3725, %v3688
        %v3758 = vadd.f32 %v3726, %v3690
        %v3759 = vadd.f32 %v3727, %v3693
        %v3760 = vadd.f32 %v3728, %v3695
        %3761 = vst [vmem:[%s167] sm:$0xff] %v3729
        %3762 = vst [vmem:[%s167 + $0x8] sm:$0xff] %v3730
        %3763 = vst [vmem:[%s167 + $0x10] sm:$0xff] %v3731
        %3764 = vst [vmem:[%s167 + $0x18] sm:$0xff] %v3732
        %3765 = vst [vmem:[%s167 + $0x20] sm:$0xff] %v3733
        %3766 = vst [vmem:[%s167 + $0x28] sm:$0xff] %v3734
        %3767 = vst [vmem:[%s167 + $0x30] sm:$0xff] %v3735
        %3768 = vst [vmem:[%s167 + $0x38] sm:$0xff] %v3736
        %3769 = vst [vmem:[%s167 + $0x40] sm:$0xff] %v3737
        %3770 = vst [vmem:[%s167 + $0x48] sm:$0xff] %v3738
        %3771 = vst [vmem:[%s167 + $0x50] sm:$0xff] %v3739
        %3772 = vst [vmem:[%s167 + $0x58] sm:$0xff] %v3740
        %3773 = vst [vmem:[%s167 + $0x60] sm:$0xff] %v3741
        %3774 = vst [vmem:[%s167 + $0x68] sm:$0xff] %v3742
        %3775 = vst [vmem:[%s167 + $0x70] sm:$0xff] %v3743
        %3776 = vst [vmem:[%s167 + $0x78] sm:$0xff] %v3744
        %3777 = vst [vmem:[%s167 + $0x80] sm:$0xff] %v3745
        %3778 = vst [vmem:[%s167 + $0x88] sm:$0xff] %v3746
        %3779 = vst [vmem:[%s167 + $0x90] sm:$0xff] %v3747
        %3780 = vst [vmem:[%s167 + $0x98] sm:$0xff] %v3748
        %3781 = vst [vmem:[%s167 + $0xa0] sm:$0xff] %v3749
        %3782 = vst [vmem:[%s167 + $0xa8] sm:$0xff] %v3750
        %3783 = vst [vmem:[%s167 + $0xb0] sm:$0xff] %v3751
        %3784 = vst [vmem:[%s167 + $0xb8] sm:$0xff] %v3752
        %3785 = vst [vmem:[%s167 + $0xc0] sm:$0xff] %v3753
        %3786 = vst [vmem:[%s167 + $0xc8] sm:$0xff] %v3754
        %3787 = vst [vmem:[%s167 + $0xd0] sm:$0xff] %v3755
        %3788 = vst [vmem:[%s167 + $0xd8] sm:$0xff] %v3756
        %3789 = vst [vmem:[%s167 + $0xe0] sm:$0xff] %v3757
        %3790 = vst [vmem:[%s167 + $0xe8] sm:$0xff] %v3758
        %3791 = vst [vmem:[%s167 + $0xf0] sm:$0xff] %v3759
        %3792 = vst [vmem:[%s167 + $0xf8] sm:$0xff] %v3760
        %v3793 = vld [vmem:[%s3414] sm:$0xf]
        %v3794 = vld [vmem:[%s3414 + $0x4] sm:$0xf]
        %v3795 = vld [vmem:[%s3414 + $0x8] sm:$0x1]
        %v3796 = vld [vmem:[%s3414 + $0xc] sm:$0xf]
        %v3797 = vld [vmem:[%s3414 + $0x10] sm:$0xf]
        %v3798 = vld [vmem:[%s3414 + $0x14] sm:$0x1]
        %v3799 = vld [vmem:[%s3414 + $0x18] sm:$0xf]
        %v3800 = vld [vmem:[%s3414 + $0x1c] sm:$0xf]
        %v3801 = vld [vmem:[%s3414 + $0x20] sm:$0x1]
        %v3802 = vld [vmem:[%s3414 + $0x24] sm:$0xf]
        %v3803 = vld [vmem:[%s3414 + $0x28] sm:$0xf]
        %v3804 = vld [vmem:[%s3414 + $0x2c] sm:$0x1]
        %v3805 = vld [vmem:[%s3414 + $0x30] sm:$0xf]
        %v3806 = vld [vmem:[%s3414 + $0x34] sm:$0xf]
        %v3807 = vld [vmem:[%s3414 + $0x38] sm:$0x1]
        %v3808 = vld [vmem:[%s3414 + $0x3c] sm:$0xf]
        %v3809 = vld [vmem:[%s3414 + $0x40] sm:$0xf]
        %v3810 = vld [vmem:[%s3414 + $0x44] sm:$0x1]
        %v3811 = vld [vmem:[%s3414 + $0x48] sm:$0xf]
        %v3812 = vld [vmem:[%s3414 + $0x4c] sm:$0xf]
        %v3813 = vld [vmem:[%s3414 + $0x50] sm:$0x1]
        %v3814 = vld [vmem:[%s3414 + $0x54] sm:$0xf]
        %v3815 = vld [vmem:[%s3414 + $0x58] sm:$0xf]
        %v3816 = vld [vmem:[%s3414 + $0x5c] sm:$0x1]
        %v3817 = vld [vmem:[%s3414 + $0x60] sm:$0xf]
        %v3818 = vld [vmem:[%s3414 + $0x64] sm:$0xf]
        %v3819 = vld [vmem:[%s3414 + $0x68] sm:$0x1]
        %v3820 = vld [vmem:[%s3414 + $0x6c] sm:$0xf]
        %v3821 = vld [vmem:[%s3414 + $0x70] sm:$0xf]
        %v3822 = vld [vmem:[%s3414 + $0x74] sm:$0x1]
        %v3823 = vld [vmem:[%s3414 + $0x78] sm:$0xf]
        %v3824 = vld [vmem:[%s3414 + $0x7c] sm:$0xf]
        %v3825 = vld [vmem:[%s3414 + $0x80] sm:$0x1]
        %v3826 = vld [vmem:[%s3414 + $0x84] sm:$0xf]
        %v3827 = vld [vmem:[%s3414 + $0x88] sm:$0xf]
        %v3828 = vld [vmem:[%s3414 + $0x8c] sm:$0x1]
        %v3829 = vld [vmem:[%s3414 + $0x90] sm:$0xf]
        %v3830 = vld [vmem:[%s3414 + $0x94] sm:$0xf]
        %v3831 = vld [vmem:[%s3414 + $0x98] sm:$0x1]
        %v3832 = vld [vmem:[%s3414 + $0x9c] sm:$0xf]
        %v3833 = vld [vmem:[%s3414 + $0xa0] sm:$0xf]
        %v3834 = vld [vmem:[%s3414 + $0xa4] sm:$0x1]
        %v3835 = vld [vmem:[%s3414 + $0xa8] sm:$0xf]
        %v3836 = vld [vmem:[%s3414 + $0xac] sm:$0xf]
        %v3837 = vld [vmem:[%s3414 + $0xb0] sm:$0x1]
        %v3838 = vld [vmem:[%s3414 + $0xb4] sm:$0xf]
        %v3839 = vld [vmem:[%s3414 + $0xb8] sm:$0xf]
        %v3840 = vld [vmem:[%s3414 + $0xbc] sm:$0x1]
        %v3842 = vshrl.u32 %v3793, 16
        %v3844 = vrot.slane %v3842, 4
        %v3845 = vshll.u32 %v3793, 16
        %v3847 = vrot.slane %v3845, 5
        %v3848 = vor.u32 %v3844, %v3847
        %v3849 = vrot.slane %v3848, 4
        %v3851 = vshll.u32 %v3794, 16
        %v3853 = vrot.slane %v3851, 5
        %v3854 = vsel %vm543, %v3849, %v3853
        %v3855 = vshrl.u32 %v3794, 16
        %v3857 = vrot.slane %v3855, 4
        %v3858 = vor.u32 %v3857, %v3853
        %v3859 = vrot.slane %v3858, 4
        %v3861 = vshll.u32 %v3795, 16
        %v3863 = vrot.slane %v3861, 5
        %v3864 = vsel %vm543, %v3859, %v3863
        %v3866 = vshrl.u32 %v3796, 16
        %v3868 = vrot.slane %v3866, 4
        %v3869 = vshll.u32 %v3796, 16
        %v3871 = vrot.slane %v3869, 5
        %v3872 = vor.u32 %v3868, %v3871
        %v3873 = vrot.slane %v3872, 4
        %v3875 = vshll.u32 %v3797, 16
        %v3877 = vrot.slane %v3875, 5
        %v3878 = vsel %vm543, %v3873, %v3877
        %v3879 = vshrl.u32 %v3797, 16
        %v3881 = vrot.slane %v3879, 4
        %v3882 = vor.u32 %v3881, %v3877
        %v3883 = vrot.slane %v3882, 4
        %v3885 = vshll.u32 %v3798, 16
        %v3887 = vrot.slane %v3885, 5
        %v3888 = vsel %vm543, %v3883, %v3887
        %v3890 = vshrl.u32 %v3799, 16
        %v3892 = vrot.slane %v3890, 4
        %v3893 = vshll.u32 %v3799, 16
        %v3895 = vrot.slane %v3893, 5
        %v3896 = vor.u32 %v3892, %v3895
        %v3897 = vrot.slane %v3896, 4
        %v3899 = vshll.u32 %v3800, 16
        %v3901 = vrot.slane %v3899, 5
        %v3902 = vsel %vm543, %v3897, %v3901
        %v3903 = vshrl.u32 %v3800, 16
        %v3905 = vrot.slane %v3903, 4
        %v3906 = vor.u32 %v3905, %v3901
        %v3907 = vrot.slane %v3906, 4
        %v3909 = vshll.u32 %v3801, 16
        %v3911 = vrot.slane %v3909, 5
        %v3912 = vsel %vm543, %v3907, %v3911
        %v3914 = vshrl.u32 %v3802, 16
        %v3916 = vrot.slane %v3914, 4
        %v3917 = vshll.u32 %v3802, 16
        %v3919 = vrot.slane %v3917, 5
        %v3920 = vor.u32 %v3916, %v3919
        %v3921 = vrot.slane %v3920, 4
        %v3923 = vshll.u32 %v3803, 16
        %v3925 = vrot.slane %v3923, 5
        %v3926 = vsel %vm543, %v3921, %v3925
        %v3927 = vshrl.u32 %v3803, 16
        %v3929 = vrot.slane %v3927, 4
        %v3930 = vor.u32 %v3929, %v3925
        %v3931 = vrot.slane %v3930, 4
        %v3933 = vshll.u32 %v3804, 16
        %v3935 = vrot.slane %v3933, 5
        %v3936 = vsel %vm543, %v3931, %v3935
        %v3938 = vshrl.u32 %v3805, 16
        %v3940 = vrot.slane %v3938, 4
        %v3941 = vshll.u32 %v3805, 16
        %v3943 = vrot.slane %v3941, 5
        %v3944 = vor.u32 %v3940, %v3943
        %v3945 = vrot.slane %v3944, 4
        %v3947 = vshll.u32 %v3806, 16
        %v3949 = vrot.slane %v3947, 5
        %v3950 = vsel %vm543, %v3945, %v3949
        %v3951 = vshrl.u32 %v3806, 16
        %v3953 = vrot.slane %v3951, 4
        %v3954 = vor.u32 %v3953, %v3949
        %v3955 = vrot.slane %v3954, 4
        %v3957 = vshll.u32 %v3807, 16
        %v3959 = vrot.slane %v3957, 5
        %v3960 = vsel %vm543, %v3955, %v3959
        %v3962 = vshrl.u32 %v3808, 16
        %v3964 = vrot.slane %v3962, 4
        %v3965 = vshll.u32 %v3808, 16
        %v3967 = vrot.slane %v3965, 5
        %v3968 = vor.u32 %v3964, %v3967
        %v3969 = vrot.slane %v3968, 4
        %v3971 = vshll.u32 %v3809, 16
        %v3973 = vrot.slane %v3971, 5
        %v3974 = vsel %vm543, %v3969, %v3973
        %v3975 = vshrl.u32 %v3809, 16
        %v3977 = vrot.slane %v3975, 4
        %v3978 = vor.u32 %v3977, %v3973
        %v3979 = vrot.slane %v3978, 4
        %v3981 = vshll.u32 %v3810, 16
        %v3983 = vrot.slane %v3981, 5
        %v3984 = vsel %vm543, %v3979, %v3983
        %v3986 = vshrl.u32 %v3811, 16
        %v3988 = vrot.slane %v3986, 4
        %v3989 = vshll.u32 %v3811, 16
        %v3991 = vrot.slane %v3989, 5
        %v3992 = vor.u32 %v3988, %v3991
        %v3993 = vrot.slane %v3992, 4
        %v3995 = vshll.u32 %v3812, 16
        %v3997 = vrot.slane %v3995, 5
        %v3998 = vsel %vm543, %v3993, %v3997
        %v3999 = vshrl.u32 %v3812, 16
        %v4001 = vrot.slane %v3999, 4
        %v4002 = vor.u32 %v4001, %v3997
        %v4003 = vrot.slane %v4002, 4
        %v4005 = vshll.u32 %v3813, 16
        %v4007 = vrot.slane %v4005, 5
        %v4008 = vsel %vm543, %v4003, %v4007
        %v4010 = vshrl.u32 %v3814, 16
        %v4012 = vrot.slane %v4010, 4
        %v4013 = vshll.u32 %v3814, 16
        %v4015 = vrot.slane %v4013, 5
        %v4016 = vor.u32 %v4012, %v4015
        %v4017 = vrot.slane %v4016, 4
        %v4019 = vshll.u32 %v3815, 16
        %v4021 = vrot.slane %v4019, 5
        %v4022 = vsel %vm543, %v4017, %v4021
        %v4023 = vshrl.u32 %v3815, 16
        %v4025 = vrot.slane %v4023, 4
        %v4026 = vor.u32 %v4025, %v4021
        %v4027 = vrot.slane %v4026, 4
        %v4029 = vshll.u32 %v3816, 16
        %v4031 = vrot.slane %v4029, 5
        %v4032 = vsel %vm543, %v4027, %v4031
        %v4034 = vshrl.u32 %v3817, 16
        %v4036 = vrot.slane %v4034, 4
        %v4037 = vshll.u32 %v3817, 16
        %v4039 = vrot.slane %v4037, 5
        %v4040 = vor.u32 %v4036, %v4039
        %v4041 = vrot.slane %v4040, 4
        %v4043 = vshll.u32 %v3818, 16
        %v4045 = vrot.slane %v4043, 5
        %v4046 = vsel %vm543, %v4041, %v4045
        %v4047 = vshrl.u32 %v3818, 16
        %v4049 = vrot.slane %v4047, 4
        %v4050 = vor.u32 %v4049, %v4045
        %v4051 = vrot.slane %v4050, 4
        %v4053 = vshll.u32 %v3819, 16
        %v4055 = vrot.slane %v4053, 5
        %v4056 = vsel %vm543, %v4051, %v4055
        %v4058 = vshrl.u32 %v3820, 16
        %v4060 = vrot.slane %v4058, 4
        %v4061 = vshll.u32 %v3820, 16
        %v4063 = vrot.slane %v4061, 5
        %v4064 = vor.u32 %v4060, %v4063
        %v4065 = vrot.slane %v4064, 4
        %v4067 = vshll.u32 %v3821, 16
        %v4069 = vrot.slane %v4067, 5
        %v4070 = vsel %vm543, %v4065, %v4069
        %v4071 = vshrl.u32 %v3821, 16
        %v4073 = vrot.slane %v4071, 4
        %v4074 = vor.u32 %v4073, %v4069
        %v4075 = vrot.slane %v4074, 4
        %v4077 = vshll.u32 %v3822, 16
        %v4079 = vrot.slane %v4077, 5
        %v4080 = vsel %vm543, %v4075, %v4079
        %v4082 = vshrl.u32 %v3823, 16
        %v4084 = vrot.slane %v4082, 4
        %v4085 = vshll.u32 %v3823, 16
        %v4087 = vrot.slane %v4085, 5
        %v4088 = vor.u32 %v4084, %v4087
        %v4089 = vrot.slane %v4088, 4
        %v4091 = vshll.u32 %v3824, 16
        %v4093 = vrot.slane %v4091, 5
        %v4094 = vsel %vm543, %v4089, %v4093
        %v4095 = vshrl.u32 %v3824, 16
        %v4097 = vrot.slane %v4095, 4
        %v4098 = vor.u32 %v4097, %v4093
        %v4099 = vrot.slane %v4098, 4
        %v4101 = vshll.u32 %v3825, 16
        %v4103 = vrot.slane %v4101, 5
        %v4104 = vsel %vm543, %v4099, %v4103
        %v4106 = vshrl.u32 %v3826, 16
        %v4108 = vrot.slane %v4106, 4
        %v4109 = vshll.u32 %v3826, 16
        %v4111 = vrot.slane %v4109, 5
        %v4112 = vor.u32 %v4108, %v4111
        %v4113 = vrot.slane %v4112, 4
        %v4115 = vshll.u32 %v3827, 16
        %v4117 = vrot.slane %v4115, 5
        %v4118 = vsel %vm543, %v4113, %v4117
        %v4119 = vshrl.u32 %v3827, 16
        %v4121 = vrot.slane %v4119, 4
        %v4122 = vor.u32 %v4121, %v4117
        %v4123 = vrot.slane %v4122, 4
        %v4125 = vshll.u32 %v3828, 16
        %v4127 = vrot.slane %v4125, 5
        %v4128 = vsel %vm543, %v4123, %v4127
        %v4130 = vshrl.u32 %v3829, 16
        %v4132 = vrot.slane %v4130, 4
        %v4133 = vshll.u32 %v3829, 16
        %v4135 = vrot.slane %v4133, 5
        %v4136 = vor.u32 %v4132, %v4135
        %v4137 = vrot.slane %v4136, 4
        %v4139 = vshll.u32 %v3830, 16
        %v4141 = vrot.slane %v4139, 5
        %v4142 = vsel %vm543, %v4137, %v4141
        %v4143 = vshrl.u32 %v3830, 16
        %v4145 = vrot.slane %v4143, 4
        %v4146 = vor.u32 %v4145, %v4141
        %v4147 = vrot.slane %v4146, 4
        %v4149 = vshll.u32 %v3831, 16
        %v4151 = vrot.slane %v4149, 5
        %v4152 = vsel %vm543, %v4147, %v4151
        %v4154 = vshrl.u32 %v3832, 16
        %v4156 = vrot.slane %v4154, 4
        %v4157 = vshll.u32 %v3832, 16
        %v4159 = vrot.slane %v4157, 5
        %v4160 = vor.u32 %v4156, %v4159
        %v4161 = vrot.slane %v4160, 4
        %v4163 = vshll.u32 %v3833, 16
        %v4165 = vrot.slane %v4163, 5
        %v4166 = vsel %vm543, %v4161, %v4165
        %v4167 = vshrl.u32 %v3833, 16
        %v4169 = vrot.slane %v4167, 4
        %v4170 = vor.u32 %v4169, %v4165
        %v4171 = vrot.slane %v4170, 4
        %v4173 = vshll.u32 %v3834, 16
        %v4175 = vrot.slane %v4173, 5
        %v4176 = vsel %vm543, %v4171, %v4175
        %v4178 = vshrl.u32 %v3835, 16
        %v4180 = vrot.slane %v4178, 4
        %v4181 = vshll.u32 %v3835, 16
        %v4183 = vrot.slane %v4181, 5
        %v4184 = vor.u32 %v4180, %v4183
        %v4185 = vrot.slane %v4184, 4
        %v4187 = vshll.u32 %v3836, 16
        %v4189 = vrot.slane %v4187, 5
        %v4190 = vsel %vm543, %v4185, %v4189
        %v4191 = vshrl.u32 %v3836, 16
        %v4193 = vrot.slane %v4191, 4
        %v4194 = vor.u32 %v4193, %v4189
        %v4195 = vrot.slane %v4194, 4
        %v4197 = vshll.u32 %v3837, 16
        %v4199 = vrot.slane %v4197, 5
        %v4200 = vsel %vm543, %v4195, %v4199
        %v4202 = vshrl.u32 %v3838, 16
        %v4204 = vrot.slane %v4202, 4
        %v4205 = vshll.u32 %v3838, 16
        %v4207 = vrot.slane %v4205, 5
        %v4208 = vor.u32 %v4204, %v4207
        %v4209 = vrot.slane %v4208, 4
        %v4211 = vshll.u32 %v3839, 16
        %v4213 = vrot.slane %v4211, 5
        %v4214 = vsel %vm543, %v4209, %v4213
        %v4215 = vshrl.u32 %v3839, 16
        %v4217 = vrot.slane %v4215, 4
        %v4218 = vor.u32 %v4217, %v4213
        %v4219 = vrot.slane %v4218, 4
        %v4221 = vshll.u32 %v3840, 16
        %v4223 = vrot.slane %v4221, 5
        %v4224 = vsel %vm543, %v4219, %v4223
        %s4225 = scalar_lea.vmem %s1, 448
        %v4226 = vld [vmem:[%s4225] sm:$0xf]
        %v4227 = vld [vmem:[%s4225 + $0x4] sm:$0xf]
        %v4228 = vld [vmem:[%s4225 + $0x8] sm:$0xf]
        %v4229 = vld [vmem:[%s4225 + $0xc] sm:$0xf]
        %v4230 = vld [vmem:[%s4225 + $0x10] sm:$0xf]
        %v4231 = vld [vmem:[%s4225 + $0x14] sm:$0xf]
        %v4232 = vld [vmem:[%s4225 + $0x18] sm:$0xf]
        %v4233 = vld [vmem:[%s4225 + $0x1c] sm:$0xf]
        %v4234 = vld [vmem:[%s4225 + $0x20] sm:$0xf]
        %v4235 = vld [vmem:[%s4225 + $0x24] sm:$0xf]
        %v4236 = vld [vmem:[%s4225 + $0x28] sm:$0xf]
        %v4237 = vld [vmem:[%s4225 + $0x2c] sm:$0xf]
        %v4238 = vld [vmem:[%s4225 + $0x30] sm:$0xf]
        %v4239 = vld [vmem:[%s4225 + $0x34] sm:$0xf]
        %v4240 = vld [vmem:[%s4225 + $0x38] sm:$0xf]
        %v4241 = vld [vmem:[%s4225 + $0x3c] sm:$0xf]
        %v4242 = vunpack.c.l.b16 %v3854
        %v4243 = vunpack.c.l.b16 %v3864
        %v4244 = vunpack.c.l.b16 %v3878
        %v4245 = vunpack.c.l.b16 %v3888
        %v4246 = vunpack.c.l.b16 %v3902
        %v4247 = vunpack.c.l.b16 %v3912
        %v4248 = vunpack.c.l.b16 %v3926
        %v4249 = vunpack.c.l.b16 %v3936
        %v4250 = vunpack.c.l.b16 %v3950
        %v4251 = vunpack.c.l.b16 %v3960
        %v4252 = vunpack.c.l.b16 %v3974
        %v4253 = vunpack.c.l.b16 %v3984
        %v4254 = vunpack.c.l.b16 %v3998
        %v4255 = vunpack.c.l.b16 %v4008
        %v4256 = vunpack.c.l.b16 %v4022
        %v4257 = vunpack.c.l.b16 %v4032
        %v4258 = vunpack.c.l.b16 %v4046
        %v4259 = vunpack.c.l.b16 %v4056
        %v4260 = vunpack.c.l.b16 %v4070
        %v4261 = vunpack.c.l.b16 %v4080
        %v4262 = vunpack.c.l.b16 %v4094
        %v4263 = vunpack.c.l.b16 %v4104
        %v4264 = vunpack.c.l.b16 %v4118
        %v4265 = vunpack.c.l.b16 %v4128
        %v4266 = vunpack.c.l.b16 %v4142
        %v4267 = vunpack.c.l.b16 %v4152
        %v4268 = vunpack.c.l.b16 %v4166
        %v4269 = vunpack.c.l.b16 %v4176
        %v4270 = vunpack.c.l.b16 %v4190
        %v4271 = vunpack.c.l.b16 %v4200
        %v4272 = vunpack.c.l.b16 %v4214
        %v4273 = vunpack.c.l.b16 %v4224
        %v4274 = vpack.c.b16 %v4243, %v4242
        %v4275 = vpack.c.b16 %v4245, %v4244
        %v4276 = vpack.c.b16 %v4247, %v4246
        %v4277 = vpack.c.b16 %v4249, %v4248
        %v4278 = vpack.c.b16 %v4251, %v4250
        %v4279 = vpack.c.b16 %v4253, %v4252
        %v4280 = vpack.c.b16 %v4255, %v4254
        %v4281 = vpack.c.b16 %v4257, %v4256
        %v4282 = vpack.c.b16 %v4259, %v4258
        %v4283 = vpack.c.b16 %v4261, %v4260
        %v4284 = vpack.c.b16 %v4263, %v4262
        %v4285 = vpack.c.b16 %v4265, %v4264
        %v4286 = vpack.c.b16 %v4267, %v4266
        %v4287 = vpack.c.b16 %v4269, %v4268
        %v4288 = vpack.c.b16 %v4271, %v4270
        %v4289 = vpack.c.b16 %v4273, %v4272
        %v4322 = vunpack.c.l.b16 %v4226
        %v4323 = vunpack.c.l.b16 %v4227
        %v4324 = vunpack.c.l.b16 %v4228
        %v4325 = vunpack.c.l.b16 %v4229
        %v4326 = vunpack.c.l.b16 %v4230
        %v4327 = vunpack.c.l.b16 %v4231
        %v4328 = vunpack.c.l.b16 %v4232
        %v4329 = vunpack.c.l.b16 %v4233
        %v4330 = vunpack.c.l.b16 %v4234
        %v4331 = vunpack.c.l.b16 %v4235
        %v4332 = vunpack.c.l.b16 %v4236
        %v4333 = vunpack.c.l.b16 %v4237
        %v4334 = vunpack.c.l.b16 %v4238
        %v4335 = vunpack.c.l.b16 %v4239
        %v4336 = vunpack.c.l.b16 %v4240
        %v4337 = vunpack.c.l.b16 %v4241
        %v4338 = vpack.c.b16 %v4323, %v4322
        %v4339 = vpack.c.b16 %v4325, %v4324
        %v4340 = vpack.c.b16 %v4327, %v4326
        %v4341 = vpack.c.b16 %v4329, %v4328
        %v4342 = vpack.c.b16 %v4331, %v4330
        %v4343 = vpack.c.b16 %v4333, %v4332
        %v4344 = vpack.c.b16 %v4335, %v4334
        %v4345 = vpack.c.b16 %v4337, %v4336
        %4354 = vmatpush.bf16.msra.mxu0 %v4345
        %4355 = vmatpush.bf16.msra.mxu0 %v4344
        %4356 = vmatpush.bf16.msra.mxu0 %v4343
        %4357 = vmatpush.bf16.msra.mxu0 %v4342
        %4358 = vmatpush.bf16.msra.mxu0 %v4341
        %4359 = vmatpush.bf16.msra.mxu0 %v4340
        %4360 = vmatpush.bf16.msra.mxu0 %v4339
        %4361 = vmatpush.bf16.msra.mxu0 %v4338
        %4362 = vmatmul.bf16.gmra.mxu0 %v4274
        %v4363 = vpop.f32.mrf.mxu0
        %v4364 = vadd.f32 0.0, %v4363
        %v4365 = vpop.f32.mrf.mxu0
        %v4366 = vadd.f32 0.0, %v4365
        %4367 = vmatmul.bf16.gmra.mxu0 %v4275
        %v4368 = vpop.f32.mrf.mxu0
        %v4369 = vadd.f32 0.0, %v4368
        %v4370 = vpop.f32.mrf.mxu0
        %v4371 = vadd.f32 0.0, %v4370
        %4372 = vmatmul.bf16.gmra.mxu0 %v4276
        %v4373 = vpop.f32.mrf.mxu0
        %v4374 = vadd.f32 0.0, %v4373
        %v4375 = vpop.f32.mrf.mxu0
        %v4376 = vadd.f32 0.0, %v4375
        %4377 = vmatmul.bf16.gmra.mxu0 %v4277
        %v4378 = vpop.f32.mrf.mxu0
        %v4379 = vadd.f32 0.0, %v4378
        %v4380 = vpop.f32.mrf.mxu0
        %v4381 = vadd.f32 0.0, %v4380
        %4382 = vmatmul.bf16.gmra.mxu0 %v4278
        %v4383 = vpop.f32.mrf.mxu0
        %v4384 = vadd.f32 0.0, %v4383
        %v4385 = vpop.f32.mrf.mxu0
        %v4386 = vadd.f32 0.0, %v4385
        %4387 = vmatmul.bf16.gmra.mxu0 %v4279
        %v4388 = vpop.f32.mrf.mxu0
        %v4389 = vadd.f32 0.0, %v4388
        %v4390 = vpop.f32.mrf.mxu0
        %v4391 = vadd.f32 0.0, %v4390
        %4392 = vmatmul.bf16.gmra.mxu0 %v4280
        %v4393 = vpop.f32.mrf.mxu0
        %v4394 = vadd.f32 0.0, %v4393
        %v4395 = vpop.f32.mrf.mxu0
        %v4396 = vadd.f32 0.0, %v4395
        %4397 = vmatmul.bf16.gmra.mxu0 %v4281
        %v4398 = vpop.f32.mrf.mxu0
        %v4399 = vadd.f32 0.0, %v4398
        %v4400 = vpop.f32.mrf.mxu0
        %v4401 = vadd.f32 0.0, %v4400
        %4402 = vmatmul.bf16.gmra.mxu0 %v4282
        %v4403 = vpop.f32.mrf.mxu0
        %v4404 = vadd.f32 0.0, %v4403
        %v4405 = vpop.f32.mrf.mxu0
        %v4406 = vadd.f32 0.0, %v4405
        %4407 = vmatmul.bf16.gmra.mxu0 %v4283
        %v4408 = vpop.f32.mrf.mxu0
        %v4409 = vadd.f32 0.0, %v4408
        %v4410 = vpop.f32.mrf.mxu0
        %v4411 = vadd.f32 0.0, %v4410
        %4412 = vmatmul.bf16.gmra.mxu0 %v4284
        %v4413 = vpop.f32.mrf.mxu0
        %v4414 = vadd.f32 0.0, %v4413
        %v4415 = vpop.f32.mrf.mxu0
        %v4416 = vadd.f32 0.0, %v4415
        %4417 = vmatmul.bf16.gmra.mxu0 %v4285
        %v4418 = vpop.f32.mrf.mxu0
        %v4419 = vadd.f32 0.0, %v4418
        %v4420 = vpop.f32.mrf.mxu0
        %v4421 = vadd.f32 0.0, %v4420
        %4422 = vmatmul.bf16.gmra.mxu0 %v4286
        %v4423 = vpop.f32.mrf.mxu0
        %v4424 = vadd.f32 0.0, %v4423
        %v4425 = vpop.f32.mrf.mxu0
        %v4426 = vadd.f32 0.0, %v4425
        %4427 = vmatmul.bf16.gmra.mxu0 %v4287
        %v4428 = vpop.f32.mrf.mxu0
        %v4429 = vadd.f32 0.0, %v4428
        %v4430 = vpop.f32.mrf.mxu0
        %v4431 = vadd.f32 0.0, %v4430
        %4432 = vmatmul.bf16.gmra.mxu0 %v4288
        %v4433 = vpop.f32.mrf.mxu0
        %v4434 = vadd.f32 0.0, %v4433
        %v4435 = vpop.f32.mrf.mxu0
        %v4436 = vadd.f32 0.0, %v4435
        %4437 = vmatmul.bf16.gmra.mxu0 %v4289
        %v4438 = vpop.f32.mrf.mxu0
        %v4439 = vadd.f32 0.0, %v4438
        %v4440 = vpop.f32.mrf.mxu0
        %v4441 = vadd.f32 0.0, %v4440
        %4442 = vdwg.mxu0
        %v4443 = vld [vmem:[%s167] sm:$0xff]
        %v4444 = vld [vmem:[%s167 + $0x8] sm:$0xff]
        %v4445 = vld [vmem:[%s167 + $0x10] sm:$0xff]
        %v4446 = vld [vmem:[%s167 + $0x18] sm:$0xff]
        %v4447 = vld [vmem:[%s167 + $0x20] sm:$0xff]
        %v4448 = vld [vmem:[%s167 + $0x28] sm:$0xff]
        %v4449 = vld [vmem:[%s167 + $0x30] sm:$0xff]
        %v4450 = vld [vmem:[%s167 + $0x38] sm:$0xff]
        %v4451 = vld [vmem:[%s167 + $0x40] sm:$0xff]
        %v4452 = vld [vmem:[%s167 + $0x48] sm:$0xff]
        %v4453 = vld [vmem:[%s167 + $0x50] sm:$0xff]
        %v4454 = vld [vmem:[%s167 + $0x58] sm:$0xff]
        %v4455 = vld [vmem:[%s167 + $0x60] sm:$0xff]
        %v4456 = vld [vmem:[%s167 + $0x68] sm:$0xff]
        %v4457 = vld [vmem:[%s167 + $0x70] sm:$0xff]
        %v4458 = vld [vmem:[%s167 + $0x78] sm:$0xff]
        %v4459 = vld [vmem:[%s167 + $0x80] sm:$0xff]
        %v4460 = vld [vmem:[%s167 + $0x88] sm:$0xff]
        %v4461 = vld [vmem:[%s167 + $0x90] sm:$0xff]
        %v4462 = vld [vmem:[%s167 + $0x98] sm:$0xff]
        %v4463 = vld [vmem:[%s167 + $0xa0] sm:$0xff]
        %v4464 = vld [vmem:[%s167 + $0xa8] sm:$0xff]
        %v4465 = vld [vmem:[%s167 + $0xb0] sm:$0xff]
        %v4466 = vld [vmem:[%s167 + $0xb8] sm:$0xff]
        %v4467 = vld [vmem:[%s167 + $0xc0] sm:$0xff]
        %v4468 = vld [vmem:[%s167 + $0xc8] sm:$0xff]
        %v4469 = vld [vmem:[%s167 + $0xd0] sm:$0xff]
        %v4470 = vld [vmem:[%s167 + $0xd8] sm:$0xff]
        %v4471 = vld [vmem:[%s167 + $0xe0] sm:$0xff]
        %v4472 = vld [vmem:[%s167 + $0xe8] sm:$0xff]
        %v4473 = vld [vmem:[%s167 + $0xf0] sm:$0xff]
        %v4474 = vld [vmem:[%s167 + $0xf8] sm:$0xff]
        %v4475 = vadd.f32 %v4443, %v4364
        %v4476 = vadd.f32 %v4444, %v4366
        %v4477 = vadd.f32 %v4445, %v4369
        %v4478 = vadd.f32 %v4446, %v4371
        %v4479 = vadd.f32 %v4447, %v4374
        %v4480 = vadd.f32 %v4448, %v4376
        %v4481 = vadd.f32 %v4449, %v4379
        %v4482 = vadd.f32 %v4450, %v4381
        %v4483 = vadd.f32 %v4451, %v4384
        %v4484 = vadd.f32 %v4452, %v4386
        %v4485 = vadd.f32 %v4453, %v4389
        %v4486 = vadd.f32 %v4454, %v4391
        %v4487 = vadd.f32 %v4455, %v4394
        %v4488 = vadd.f32 %v4456, %v4396
        %v4489 = vadd.f32 %v4457, %v4399
        %v4490 = vadd.f32 %v4458, %v4401
        %v4491 = vadd.f32 %v4459, %v4404
        %v4492 = vadd.f32 %v4460, %v4406
        %v4493 = vadd.f32 %v4461, %v4409
        %v4494 = vadd.f32 %v4462, %v4411
        %v4495 = vadd.f32 %v4463, %v4414
        %v4496 = vadd.f32 %v4464, %v4416
        %v4497 = vadd.f32 %v4465, %v4419
        %v4498 = vadd.f32 %v4466, %v4421
        %v4499 = vadd.f32 %v4467, %v4424
        %v4500 = vadd.f32 %v4468, %v4426
        %v4501 = vadd.f32 %v4469, %v4429
        %v4502 = vadd.f32 %v4470, %v4431
        %v4503 = vadd.f32 %v4471, %v4434
        %v4504 = vadd.f32 %v4472, %v4436
        %v4505 = vadd.f32 %v4473, %v4439
        %v4506 = vadd.f32 %v4474, %v4441
        %4507 = vst [vmem:[%s167] sm:$0xff] %v4475
        %4508 = vst [vmem:[%s167 + $0x8] sm:$0xff] %v4476
        %4509 = vst [vmem:[%s167 + $0x10] sm:$0xff] %v4477
        %4510 = vst [vmem:[%s167 + $0x18] sm:$0xff] %v4478
        %4511 = vst [vmem:[%s167 + $0x20] sm:$0xff] %v4479
        %4512 = vst [vmem:[%s167 + $0x28] sm:$0xff] %v4480
        %4513 = vst [vmem:[%s167 + $0x30] sm:$0xff] %v4481
        %4514 = vst [vmem:[%s167 + $0x38] sm:$0xff] %v4482
        %4515 = vst [vmem:[%s167 + $0x40] sm:$0xff] %v4483
        %4516 = vst [vmem:[%s167 + $0x48] sm:$0xff] %v4484
        %4517 = vst [vmem:[%s167 + $0x50] sm:$0xff] %v4485
        %4518 = vst [vmem:[%s167 + $0x58] sm:$0xff] %v4486
        %4519 = vst [vmem:[%s167 + $0x60] sm:$0xff] %v4487
        %4520 = vst [vmem:[%s167 + $0x68] sm:$0xff] %v4488
        %4521 = vst [vmem:[%s167 + $0x70] sm:$0xff] %v4489
        %4522 = vst [vmem:[%s167 + $0x78] sm:$0xff] %v4490
        %4523 = vst [vmem:[%s167 + $0x80] sm:$0xff] %v4491
        %4524 = vst [vmem:[%s167 + $0x88] sm:$0xff] %v4492
        %4525 = vst [vmem:[%s167 + $0x90] sm:$0xff] %v4493
        %4526 = vst [vmem:[%s167 + $0x98] sm:$0xff] %v4494
        %4527 = vst [vmem:[%s167 + $0xa0] sm:$0xff] %v4495
        %4528 = vst [vmem:[%s167 + $0xa8] sm:$0xff] %v4496
        %4529 = vst [vmem:[%s167 + $0xb0] sm:$0xff] %v4497
        %4530 = vst [vmem:[%s167 + $0xb8] sm:$0xff] %v4498
        %4531 = vst [vmem:[%s167 + $0xc0] sm:$0xff] %v4499
        %4532 = vst [vmem:[%s167 + $0xc8] sm:$0xff] %v4500
        %4533 = vst [vmem:[%s167 + $0xd0] sm:$0xff] %v4501
        %4534 = vst [vmem:[%s167 + $0xd8] sm:$0xff] %v4502
        %4535 = vst [vmem:[%s167 + $0xe0] sm:$0xff] %v4503
        %4536 = vst [vmem:[%s167 + $0xe8] sm:$0xff] %v4504
        %4537 = vst [vmem:[%s167 + $0xf0] sm:$0xff] %v4505
        %4538 = vst [vmem:[%s167 + $0xf8] sm:$0xff] %v4506
        %v4539 = vld [vmem:[%s3414] sm:$0xe]
        %v4540 = vld [vmem:[%s3414 + $0x4] sm:$0xf]
        %v4541 = vld [vmem:[%s3414 + $0x8] sm:$0x1]
        %v4542 = vld [vmem:[%s3414 + $0xc] sm:$0xe]
        %v4543 = vld [vmem:[%s3414 + $0x10] sm:$0xf]
        %v4544 = vld [vmem:[%s3414 + $0x14] sm:$0x1]
        %v4545 = vld [vmem:[%s3414 + $0x18] sm:$0xe]
        %v4546 = vld [vmem:[%s3414 + $0x1c] sm:$0xf]
        %v4547 = vld [vmem:[%s3414 + $0x20] sm:$0x1]
        %v4548 = vld [vmem:[%s3414 + $0x24] sm:$0xe]
        %v4549 = vld [vmem:[%s3414 + $0x28] sm:$0xf]
        %v4550 = vld [vmem:[%s3414 + $0x2c] sm:$0x1]
        %v4551 = vld [vmem:[%s3414 + $0x30] sm:$0xe]
        %v4552 = vld [vmem:[%s3414 + $0x34] sm:$0xf]
        %v4553 = vld [vmem:[%s3414 + $0x38] sm:$0x1]
        %v4554 = vld [vmem:[%s3414 + $0x3c] sm:$0xe]
        %v4555 = vld [vmem:[%s3414 + $0x40] sm:$0xf]
        %v4556 = vld [vmem:[%s3414 + $0x44] sm:$0x1]
        %v4557 = vld [vmem:[%s3414 + $0x48] sm:$0xe]
        %v4558 = vld [vmem:[%s3414 + $0x4c] sm:$0xf]
        %v4559 = vld [vmem:[%s3414 + $0x50] sm:$0x1]
        %v4560 = vld [vmem:[%s3414 + $0x54] sm:$0xe]
        %v4561 = vld [vmem:[%s3414 + $0x58] sm:$0xf]
        %v4562 = vld [vmem:[%s3414 + $0x5c] sm:$0x1]
        %v4563 = vld [vmem:[%s3414 + $0x60] sm:$0xe]
        %v4564 = vld [vmem:[%s3414 + $0x64] sm:$0xf]
        %v4565 = vld [vmem:[%s3414 + $0x68] sm:$0x1]
        %v4566 = vld [vmem:[%s3414 + $0x6c] sm:$0xe]
        %v4567 = vld [vmem:[%s3414 + $0x70] sm:$0xf]
        %v4568 = vld [vmem:[%s3414 + $0x74] sm:$0x1]
        %v4569 = vld [vmem:[%s3414 + $0x78] sm:$0xe]
        %v4570 = vld [vmem:[%s3414 + $0x7c] sm:$0xf]
        %v4571 = vld [vmem:[%s3414 + $0x80] sm:$0x1]
        %v4572 = vld [vmem:[%s3414 + $0x84] sm:$0xe]
        %v4573 = vld [vmem:[%s3414 + $0x88] sm:$0xf]
        %v4574 = vld [vmem:[%s3414 + $0x8c] sm:$0x1]
        %v4575 = vld [vmem:[%s3414 + $0x90] sm:$0xe]
        %v4576 = vld [vmem:[%s3414 + $0x94] sm:$0xf]
        %v4577 = vld [vmem:[%s3414 + $0x98] sm:$0x1]
        %v4578 = vld [vmem:[%s3414 + $0x9c] sm:$0xe]
        %v4579 = vld [vmem:[%s3414 + $0xa0] sm:$0xf]
        %v4580 = vld [vmem:[%s3414 + $0xa4] sm:$0x1]
        %v4581 = vld [vmem:[%s3414 + $0xa8] sm:$0xe]
        %v4582 = vld [vmem:[%s3414 + $0xac] sm:$0xf]
        %v4583 = vld [vmem:[%s3414 + $0xb0] sm:$0x1]
        %v4584 = vld [vmem:[%s3414 + $0xb4] sm:$0xe]
        %v4585 = vld [vmem:[%s3414 + $0xb8] sm:$0xf]
        %v4586 = vld [vmem:[%s3414 + $0xbc] sm:$0x1]
        %v4635 = vrot.slane %v4539, 5
        %v4636 = vrot.slane %v4635, 4
        %v4637 = vrot.slane %v4540, 5
        %v4638 = vsel %vm1340, %v4636, %v4637
        %v4639 = vrot.slane %v4637, 4
        %v4640 = vrot.slane %v4541, 5
        %v4641 = vsel %vm1340, %v4639, %v4640
        %v4642 = vrot.slane %v4542, 5
        %v4643 = vrot.slane %v4642, 4
        %v4644 = vrot.slane %v4543, 5
        %v4645 = vsel %vm1340, %v4643, %v4644
        %v4646 = vrot.slane %v4644, 4
        %v4647 = vrot.slane %v4544, 5
        %v4648 = vsel %vm1340, %v4646, %v4647
        %v4649 = vrot.slane %v4545, 5
        %v4650 = vrot.slane %v4649, 4
        %v4651 = vrot.slane %v4546, 5
        %v4652 = vsel %vm1340, %v4650, %v4651
        %v4653 = vrot.slane %v4651, 4
        %v4654 = vrot.slane %v4547, 5
        %v4655 = vsel %vm1340, %v4653, %v4654
        %v4656 = vrot.slane %v4548, 5
        %v4657 = vrot.slane %v4656, 4
        %v4658 = vrot.slane %v4549, 5
        %v4659 = vsel %vm1340, %v4657, %v4658
        %v4660 = vrot.slane %v4658, 4
        %v4661 = vrot.slane %v4550, 5
        %v4662 = vsel %vm1340, %v4660, %v4661
        %v4663 = vrot.slane %v4551, 5
        %v4664 = vrot.slane %v4663, 4
        %v4665 = vrot.slane %v4552, 5
        %v4666 = vsel %vm1340, %v4664, %v4665
        %v4667 = vrot.slane %v4665, 4
        %v4668 = vrot.slane %v4553, 5
        %v4669 = vsel %vm1340, %v4667, %v4668
        %v4670 = vrot.slane %v4554, 5
        %v4671 = vrot.slane %v4670, 4
        %v4672 = vrot.slane %v4555, 5
        %v4673 = vsel %vm1340, %v4671, %v4672
        %v4674 = vrot.slane %v4672, 4
        %v4675 = vrot.slane %v4556, 5
        %v4676 = vsel %vm1340, %v4674, %v4675
        %v4677 = vrot.slane %v4557, 5
        %v4678 = vrot.slane %v4677, 4
        %v4679 = vrot.slane %v4558, 5
        %v4680 = vsel %vm1340, %v4678, %v4679
        %v4681 = vrot.slane %v4679, 4
        %v4682 = vrot.slane %v4559, 5
        %v4683 = vsel %vm1340, %v4681, %v4682
        %v4684 = vrot.slane %v4560, 5
        %v4685 = vrot.slane %v4684, 4
        %v4686 = vrot.slane %v4561, 5
        %v4687 = vsel %vm1340, %v4685, %v4686
        %v4688 = vrot.slane %v4686, 4
        %v4689 = vrot.slane %v4562, 5
        %v4690 = vsel %vm1340, %v4688, %v4689
        %v4691 = vrot.slane %v4563, 5
        %v4692 = vrot.slane %v4691, 4
        %v4693 = vrot.slane %v4564, 5
        %v4694 = vsel %vm1340, %v4692, %v4693
        %v4695 = vrot.slane %v4693, 4
        %v4696 = vrot.slane %v4565, 5
        %v4697 = vsel %vm1340, %v4695, %v4696
        %v4698 = vrot.slane %v4566, 5
        %v4699 = vrot.slane %v4698, 4
        %v4700 = vrot.slane %v4567, 5
        %v4701 = vsel %vm1340, %v4699, %v4700
        %v4702 = vrot.slane %v4700, 4
        %v4703 = vrot.slane %v4568, 5
        %v4704 = vsel %vm1340, %v4702, %v4703
        %v4705 = vrot.slane %v4569, 5
        %v4706 = vrot.slane %v4705, 4
        %v4707 = vrot.slane %v4570, 5
        %v4708 = vsel %vm1340, %v4706, %v4707
        %v4709 = vrot.slane %v4707, 4
        %v4710 = vrot.slane %v4571, 5
        %v4711 = vsel %vm1340, %v4709, %v4710
        %v4712 = vrot.slane %v4572, 5
        %v4713 = vrot.slane %v4712, 4
        %v4714 = vrot.slane %v4573, 5
        %v4715 = vsel %vm1340, %v4713, %v4714
        %v4716 = vrot.slane %v4714, 4
        %v4717 = vrot.slane %v4574, 5
        %v4718 = vsel %vm1340, %v4716, %v4717
        %v4719 = vrot.slane %v4575, 5
        %v4720 = vrot.slane %v4719, 4
        %v4721 = vrot.slane %v4576, 5
        %v4722 = vsel %vm1340, %v4720, %v4721
        %v4723 = vrot.slane %v4721, 4
        %v4724 = vrot.slane %v4577, 5
        %v4725 = vsel %vm1340, %v4723, %v4724
        %v4726 = vrot.slane %v4578, 5
        %v4727 = vrot.slane %v4726, 4
        %v4728 = vrot.slane %v4579, 5
        %v4729 = vsel %vm1340, %v4727, %v4728
        %v4730 = vrot.slane %v4728, 4
        %v4731 = vrot.slane %v4580, 5
        %v4732 = vsel %vm1340, %v4730, %v4731
        %v4733 = vrot.slane %v4581, 5
        %v4734 = vrot.slane %v4733, 4
        %v4735 = vrot.slane %v4582, 5
        %v4736 = vsel %vm1340, %v4734, %v4735
        %v4737 = vrot.slane %v4735, 4
        %v4738 = vrot.slane %v4583, 5
        %v4739 = vsel %vm1340, %v4737, %v4738
        %v4740 = vrot.slane %v4584, 5
        %v4741 = vrot.slane %v4740, 4
        %v4742 = vrot.slane %v4585, 5
        %v4743 = vsel %vm1340, %v4741, %v4742
        %v4744 = vrot.slane %v4742, 4
        %v4745 = vrot.slane %v4586, 5
        %v4746 = vsel %vm1340, %v4744, %v4745
        %s4747 = scalar_lea.vmem %s1, 512
        %v4748 = vld [vmem:[%s4747] sm:$0xf]
        %v4749 = vld [vmem:[%s4747 + $0x4] sm:$0xf]
        %v4750 = vld [vmem:[%s4747 + $0x8] sm:$0xf]
        %v4751 = vld [vmem:[%s4747 + $0xc] sm:$0xf]
        %v4752 = vld [vmem:[%s4747 + $0x10] sm:$0xf]
        %v4753 = vld [vmem:[%s4747 + $0x14] sm:$0xf]
        %v4754 = vld [vmem:[%s4747 + $0x18] sm:$0xf]
        %v4755 = vld [vmem:[%s4747 + $0x1c] sm:$0xf]
        %v4756 = vld [vmem:[%s4747 + $0x20] sm:$0xf]
        %v4757 = vld [vmem:[%s4747 + $0x24] sm:$0xf]
        %v4758 = vld [vmem:[%s4747 + $0x28] sm:$0xf]
        %v4759 = vld [vmem:[%s4747 + $0x2c] sm:$0xf]
        %v4760 = vld [vmem:[%s4747 + $0x30] sm:$0xf]
        %v4761 = vld [vmem:[%s4747 + $0x34] sm:$0xf]
        %v4762 = vld [vmem:[%s4747 + $0x38] sm:$0xf]
        %v4763 = vld [vmem:[%s4747 + $0x3c] sm:$0xf]
        %v4764 = vunpack.c.l.b16 %v4638
        %v4765 = vunpack.c.l.b16 %v4641
        %v4766 = vunpack.c.l.b16 %v4645
        %v4767 = vunpack.c.l.b16 %v4648
        %v4768 = vunpack.c.l.b16 %v4652
        %v4769 = vunpack.c.l.b16 %v4655
        %v4770 = vunpack.c.l.b16 %v4659
        %v4771 = vunpack.c.l.b16 %v4662
        %v4772 = vunpack.c.l.b16 %v4666
        %v4773 = vunpack.c.l.b16 %v4669
        %v4774 = vunpack.c.l.b16 %v4673
        %v4775 = vunpack.c.l.b16 %v4676
        %v4776 = vunpack.c.l.b16 %v4680
        %v4777 = vunpack.c.l.b16 %v4683
        %v4778 = vunpack.c.l.b16 %v4687
        %v4779 = vunpack.c.l.b16 %v4690
        %v4780 = vunpack.c.l.b16 %v4694
        %v4781 = vunpack.c.l.b16 %v4697
        %v4782 = vunpack.c.l.b16 %v4701
        %v4783 = vunpack.c.l.b16 %v4704
        %v4784 = vunpack.c.l.b16 %v4708
        %v4785 = vunpack.c.l.b16 %v4711
        %v4786 = vunpack.c.l.b16 %v4715
        %v4787 = vunpack.c.l.b16 %v4718
        %v4788 = vunpack.c.l.b16 %v4722
        %v4789 = vunpack.c.l.b16 %v4725
        %v4790 = vunpack.c.l.b16 %v4729
        %v4791 = vunpack.c.l.b16 %v4732
        %v4792 = vunpack.c.l.b16 %v4736
        %v4793 = vunpack.c.l.b16 %v4739
        %v4794 = vunpack.c.l.b16 %v4743
        %v4795 = vunpack.c.l.b16 %v4746
        %v4796 = vpack.c.b16 %v4765, %v4764
        %v4797 = vpack.c.b16 %v4767, %v4766
        %v4798 = vpack.c.b16 %v4769, %v4768
        %v4799 = vpack.c.b16 %v4771, %v4770
        %v4800 = vpack.c.b16 %v4773, %v4772
        %v4801 = vpack.c.b16 %v4775, %v4774
        %v4802 = vpack.c.b16 %v4777, %v4776
        %v4803 = vpack.c.b16 %v4779, %v4778
        %v4804 = vpack.c.b16 %v4781, %v4780
        %v4805 = vpack.c.b16 %v4783, %v4782
        %v4806 = vpack.c.b16 %v4785, %v4784
        %v4807 = vpack.c.b16 %v4787, %v4786
        %v4808 = vpack.c.b16 %v4789, %v4788
        %v4809 = vpack.c.b16 %v4791, %v4790
        %v4810 = vpack.c.b16 %v4793, %v4792
        %v4811 = vpack.c.b16 %v4795, %v4794
        %v4844 = vunpack.c.l.b16 %v4748
        %v4845 = vunpack.c.l.b16 %v4749
        %v4846 = vunpack.c.l.b16 %v4750
        %v4847 = vunpack.c.l.b16 %v4751
        %v4848 = vunpack.c.l.b16 %v4752
        %v4849 = vunpack.c.l.b16 %v4753
        %v4850 = vunpack.c.l.b16 %v4754
        %v4851 = vunpack.c.l.b16 %v4755
        %v4852 = vunpack.c.l.b16 %v4756
        %v4853 = vunpack.c.l.b16 %v4757
        %v4854 = vunpack.c.l.b16 %v4758
        %v4855 = vunpack.c.l.b16 %v4759
        %v4856 = vunpack.c.l.b16 %v4760
        %v4857 = vunpack.c.l.b16 %v4761
        %v4858 = vunpack.c.l.b16 %v4762
        %v4859 = vunpack.c.l.b16 %v4763
        %v4860 = vpack.c.b16 %v4845, %v4844
        %v4861 = vpack.c.b16 %v4847, %v4846
        %v4862 = vpack.c.b16 %v4849, %v4848
        %v4863 = vpack.c.b16 %v4851, %v4850
        %v4864 = vpack.c.b16 %v4853, %v4852
        %v4865 = vpack.c.b16 %v4855, %v4854
        %v4866 = vpack.c.b16 %v4857, %v4856
        %v4867 = vpack.c.b16 %v4859, %v4858
        %4876 = vmatpush.bf16.msra.mxu0 %v4867
        %4877 = vmatpush.bf16.msra.mxu0 %v4866
        %4878 = vmatpush.bf16.msra.mxu0 %v4865
        %4879 = vmatpush.bf16.msra.mxu0 %v4864
        %4880 = vmatpush.bf16.msra.mxu0 %v4863
        %4881 = vmatpush.bf16.msra.mxu0 %v4862
        %4882 = vmatpush.bf16.msra.mxu0 %v4861
        %4883 = vmatpush.bf16.msra.mxu0 %v4860
        %4884 = vmatmul.bf16.gmra.mxu0 %v4796
        %v4885 = vpop.f32.mrf.mxu0
        %v4886 = vadd.f32 0.0, %v4885
        %v4887 = vpop.f32.mrf.mxu0
        %v4888 = vadd.f32 0.0, %v4887
        %4889 = vmatmul.bf16.gmra.mxu0 %v4797
        %v4890 = vpop.f32.mrf.mxu0
        %v4891 = vadd.f32 0.0, %v4890
        %v4892 = vpop.f32.mrf.mxu0
        %v4893 = vadd.f32 0.0, %v4892
        %4894 = vmatmul.bf16.gmra.mxu0 %v4798
        %v4895 = vpop.f32.mrf.mxu0
        %v4896 = vadd.f32 0.0, %v4895
        %v4897 = vpop.f32.mrf.mxu0
        %v4898 = vadd.f32 0.0, %v4897
        %4899 = vmatmul.bf16.gmra.mxu0 %v4799
        %v4900 = vpop.f32.mrf.mxu0
        %v4901 = vadd.f32 0.0, %v4900
        %v4902 = vpop.f32.mrf.mxu0
        %v4903 = vadd.f32 0.0, %v4902
        %4904 = vmatmul.bf16.gmra.mxu0 %v4800
        %v4905 = vpop.f32.mrf.mxu0
        %v4906 = vadd.f32 0.0, %v4905
        %v4907 = vpop.f32.mrf.mxu0
        %v4908 = vadd.f32 0.0, %v4907
        %4909 = vmatmul.bf16.gmra.mxu0 %v4801
        %v4910 = vpop.f32.mrf.mxu0
        %v4911 = vadd.f32 0.0, %v4910
        %v4912 = vpop.f32.mrf.mxu0
        %v4913 = vadd.f32 0.0, %v4912
        %4914 = vmatmul.bf16.gmra.mxu0 %v4802
        %v4915 = vpop.f32.mrf.mxu0
        %v4916 = vadd.f32 0.0, %v4915
        %v4917 = vpop.f32.mrf.mxu0
        %v4918 = vadd.f32 0.0, %v4917
        %4919 = vmatmul.bf16.gmra.mxu0 %v4803
        %v4920 = vpop.f32.mrf.mxu0
        %v4921 = vadd.f32 0.0, %v4920
        %v4922 = vpop.f32.mrf.mxu0
        %v4923 = vadd.f32 0.0, %v4922
        %4924 = vmatmul.bf16.gmra.mxu0 %v4804
        %v4925 = vpop.f32.mrf.mxu0
        %v4926 = vadd.f32 0.0, %v4925
        %v4927 = vpop.f32.mrf.mxu0
        %v4928 = vadd.f32 0.0, %v4927
        %4929 = vmatmul.bf16.gmra.mxu0 %v4805
        %v4930 = vpop.f32.mrf.mxu0
        %v4931 = vadd.f32 0.0, %v4930
        %v4932 = vpop.f32.mrf.mxu0
        %v4933 = vadd.f32 0.0, %v4932
        %4934 = vmatmul.bf16.gmra.mxu0 %v4806
        %v4935 = vpop.f32.mrf.mxu0
        %v4936 = vadd.f32 0.0, %v4935
        %v4937 = vpop.f32.mrf.mxu0
        %v4938 = vadd.f32 0.0, %v4937
        %4939 = vmatmul.bf16.gmra.mxu0 %v4807
        %v4940 = vpop.f32.mrf.mxu0
        %v4941 = vadd.f32 0.0, %v4940
        %v4942 = vpop.f32.mrf.mxu0
        %v4943 = vadd.f32 0.0, %v4942
        %4944 = vmatmul.bf16.gmra.mxu0 %v4808
        %v4945 = vpop.f32.mrf.mxu0
        %v4946 = vadd.f32 0.0, %v4945
        %v4947 = vpop.f32.mrf.mxu0
        %v4948 = vadd.f32 0.0, %v4947
        %4949 = vmatmul.bf16.gmra.mxu0 %v4809
        %v4950 = vpop.f32.mrf.mxu0
        %v4951 = vadd.f32 0.0, %v4950
        %v4952 = vpop.f32.mrf.mxu0
        %v4953 = vadd.f32 0.0, %v4952
        %4954 = vmatmul.bf16.gmra.mxu0 %v4810
        %v4955 = vpop.f32.mrf.mxu0
        %v4956 = vadd.f32 0.0, %v4955
        %v4957 = vpop.f32.mrf.mxu0
        %v4958 = vadd.f32 0.0, %v4957
        %4959 = vmatmul.bf16.gmra.mxu0 %v4811
        %v4960 = vpop.f32.mrf.mxu0
        %v4961 = vadd.f32 0.0, %v4960
        %v4962 = vpop.f32.mrf.mxu0
        %v4963 = vadd.f32 0.0, %v4962
        %4964 = vdwg.mxu0
        %v4965 = vld [vmem:[%s167] sm:$0xff]
        %v4966 = vld [vmem:[%s167 + $0x8] sm:$0xff]
        %v4967 = vld [vmem:[%s167 + $0x10] sm:$0xff]
        %v4968 = vld [vmem:[%s167 + $0x18] sm:$0xff]
        %v4969 = vld [vmem:[%s167 + $0x20] sm:$0xff]
        %v4970 = vld [vmem:[%s167 + $0x28] sm:$0xff]
        %v4971 = vld [vmem:[%s167 + $0x30] sm:$0xff]
        %v4972 = vld [vmem:[%s167 + $0x38] sm:$0xff]
        %v4973 = vld [vmem:[%s167 + $0x40] sm:$0xff]
        %v4974 = vld [vmem:[%s167 + $0x48] sm:$0xff]
        %v4975 = vld [vmem:[%s167 + $0x50] sm:$0xff]
        %v4976 = vld [vmem:[%s167 + $0x58] sm:$0xff]
        %v4977 = vld [vmem:[%s167 + $0x60] sm:$0xff]
        %v4978 = vld [vmem:[%s167 + $0x68] sm:$0xff]
        %v4979 = vld [vmem:[%s167 + $0x70] sm:$0xff]
        %v4980 = vld [vmem:[%s167 + $0x78] sm:$0xff]
        %v4981 = vld [vmem:[%s167 + $0x80] sm:$0xff]
        %v4982 = vld [vmem:[%s167 + $0x88] sm:$0xff]
        %v4983 = vld [vmem:[%s167 + $0x90] sm:$0xff]
        %v4984 = vld [vmem:[%s167 + $0x98] sm:$0xff]
        %v4985 = vld [vmem:[%s167 + $0xa0] sm:$0xff]
        %v4986 = vld [vmem:[%s167 + $0xa8] sm:$0xff]
        %v4987 = vld [vmem:[%s167 + $0xb0] sm:$0xff]
        %v4988 = vld [vmem:[%s167 + $0xb8] sm:$0xff]
        %v4989 = vld [vmem:[%s167 + $0xc0] sm:$0xff]
        %v4990 = vld [vmem:[%s167 + $0xc8] sm:$0xff]
        %v4991 = vld [vmem:[%s167 + $0xd0] sm:$0xff]
        %v4992 = vld [vmem:[%s167 + $0xd8] sm:$0xff]
        %v4993 = vld [vmem:[%s167 + $0xe0] sm:$0xff]
        %v4994 = vld [vmem:[%s167 + $0xe8] sm:$0xff]
        %v4995 = vld [vmem:[%s167 + $0xf0] sm:$0xff]
        %v4996 = vld [vmem:[%s167 + $0xf8] sm:$0xff]
        %v4997 = vadd.f32 %v4965, %v4886
        %v4998 = vadd.f32 %v4966, %v4888
        %v4999 = vadd.f32 %v4967, %v4891
        %v5000 = vadd.f32 %v4968, %v4893
        %v5001 = vadd.f32 %v4969, %v4896
        %v5002 = vadd.f32 %v4970, %v4898
        %v5003 = vadd.f32 %v4971, %v4901
        %v5004 = vadd.f32 %v4972, %v4903
        %v5005 = vadd.f32 %v4973, %v4906
        %v5006 = vadd.f32 %v4974, %v4908
        %v5007 = vadd.f32 %v4975, %v4911
        %v5008 = vadd.f32 %v4976, %v4913
        %v5009 = vadd.f32 %v4977, %v4916
        %v5010 = vadd.f32 %v4978, %v4918
        %v5011 = vadd.f32 %v4979, %v4921
        %v5012 = vadd.f32 %v4980, %v4923
        %v5013 = vadd.f32 %v4981, %v4926
        %v5014 = vadd.f32 %v4982, %v4928
        %v5015 = vadd.f32 %v4983, %v4931
        %v5016 = vadd.f32 %v4984, %v4933
        %v5017 = vadd.f32 %v4985, %v4936
        %v5018 = vadd.f32 %v4986, %v4938
        %v5019 = vadd.f32 %v4987, %v4941
        %v5020 = vadd.f32 %v4988, %v4943
        %v5021 = vadd.f32 %v4989, %v4946
        %v5022 = vadd.f32 %v4990, %v4948
        %v5023 = vadd.f32 %v4991, %v4951
        %v5024 = vadd.f32 %v4992, %v4953
        %v5025 = vadd.f32 %v4993, %v4956
        %v5026 = vadd.f32 %v4994, %v4958
        %v5027 = vadd.f32 %v4995, %v4961
        %v5028 = vadd.f32 %v4996, %v4963
        %5029 = vst [vmem:[%s167] sm:$0xff] %v4997
        %5030 = vst [vmem:[%s167 + $0x8] sm:$0xff] %v4998
        %5031 = vst [vmem:[%s167 + $0x10] sm:$0xff] %v4999
        %5032 = vst [vmem:[%s167 + $0x18] sm:$0xff] %v5000
        %5033 = vst [vmem:[%s167 + $0x20] sm:$0xff] %v5001
        %5034 = vst [vmem:[%s167 + $0x28] sm:$0xff] %v5002
        %5035 = vst [vmem:[%s167 + $0x30] sm:$0xff] %v5003
        %5036 = vst [vmem:[%s167 + $0x38] sm:$0xff] %v5004
        %5037 = vst [vmem:[%s167 + $0x40] sm:$0xff] %v5005
        %5038 = vst [vmem:[%s167 + $0x48] sm:$0xff] %v5006
        %5039 = vst [vmem:[%s167 + $0x50] sm:$0xff] %v5007
        %5040 = vst [vmem:[%s167 + $0x58] sm:$0xff] %v5008
        %5041 = vst [vmem:[%s167 + $0x60] sm:$0xff] %v5009
        %5042 = vst [vmem:[%s167 + $0x68] sm:$0xff] %v5010
        %5043 = vst [vmem:[%s167 + $0x70] sm:$0xff] %v5011
        %5044 = vst [vmem:[%s167 + $0x78] sm:$0xff] %v5012
        %5045 = vst [vmem:[%s167 + $0x80] sm:$0xff] %v5013
        %5046 = vst [vmem:[%s167 + $0x88] sm:$0xff] %v5014
        %5047 = vst [vmem:[%s167 + $0x90] sm:$0xff] %v5015
        %5048 = vst [vmem:[%s167 + $0x98] sm:$0xff] %v5016
        %5049 = vst [vmem:[%s167 + $0xa0] sm:$0xff] %v5017
        %5050 = vst [vmem:[%s167 + $0xa8] sm:$0xff] %v5018
        %5051 = vst [vmem:[%s167 + $0xb0] sm:$0xff] %v5019
        %5052 = vst [vmem:[%s167 + $0xb8] sm:$0xff] %v5020
        %5053 = vst [vmem:[%s167 + $0xc0] sm:$0xff] %v5021
        %5054 = vst [vmem:[%s167 + $0xc8] sm:$0xff] %v5022
        %5055 = vst [vmem:[%s167 + $0xd0] sm:$0xff] %v5023
        %5056 = vst [vmem:[%s167 + $0xd8] sm:$0xff] %v5024
        %5057 = vst [vmem:[%s167 + $0xe0] sm:$0xff] %v5025
        %5058 = vst [vmem:[%s167 + $0xe8] sm:$0xff] %v5026
        %5059 = vst [vmem:[%s167 + $0xf0] sm:$0xff] %v5027
        %5060 = vst [vmem:[%s167 + $0xf8] sm:$0xff] %v5028
        %v5061 = vld [vmem:[%s167] sm:$0xff]
        %v5062 = vld [vmem:[%s167 + $0x8] sm:$0xff]
        %v5063 = vld [vmem:[%s167 + $0x10] sm:$0xff]
        %v5064 = vld [vmem:[%s167 + $0x18] sm:$0xff]
        %v5065 = vld [vmem:[%s167 + $0x20] sm:$0xff]
        %v5066 = vld [vmem:[%s167 + $0x28] sm:$0xff]
        %v5067 = vld [vmem:[%s167 + $0x30] sm:$0xff]
        %v5068 = vld [vmem:[%s167 + $0x38] sm:$0xff]
        %v5069 = vld [vmem:[%s167 + $0x40] sm:$0xff]
        %v5070 = vld [vmem:[%s167 + $0x48] sm:$0xff]
        %v5071 = vld [vmem:[%s167 + $0x50] sm:$0xff]
        %v5072 = vld [vmem:[%s167 + $0x58] sm:$0xff]
        %v5073 = vld [vmem:[%s167 + $0x60] sm:$0xff]
        %v5074 = vld [vmem:[%s167 + $0x68] sm:$0xff]
        %v5075 = vld [vmem:[%s167 + $0x70] sm:$0xff]
        %v5076 = vld [vmem:[%s167 + $0x78] sm:$0xff]
        %v5077 = vld [vmem:[%s167 + $0x80] sm:$0xff]
        %v5078 = vld [vmem:[%s167 + $0x88] sm:$0xff]
        %v5079 = vld [vmem:[%s167 + $0x90] sm:$0xff]
        %v5080 = vld [vmem:[%s167 + $0x98] sm:$0xff]
        %v5081 = vld [vmem:[%s167 + $0xa0] sm:$0xff]
        %v5082 = vld [vmem:[%s167 + $0xa8] sm:$0xff]
        %v5083 = vld [vmem:[%s167 + $0xb0] sm:$0xff]
        %v5084 = vld [vmem:[%s167 + $0xb8] sm:$0xff]
        %v5085 = vld [vmem:[%s167 + $0xc0] sm:$0xff]
        %v5086 = vld [vmem:[%s167 + $0xc8] sm:$0xff]
        %v5087 = vld [vmem:[%s167 + $0xd0] sm:$0xff]
        %v5088 = vld [vmem:[%s167 + $0xd8] sm:$0xff]
        %v5089 = vld [vmem:[%s167 + $0xe0] sm:$0xff]
        %v5090 = vld [vmem:[%s167 + $0xe8] sm:$0xff]
        %v5091 = vld [vmem:[%s167 + $0xf0] sm:$0xff]
        %v5092 = vld [vmem:[%s167 + $0xf8] sm:$0xff]
        %v5093 = vadd.f32 %v5061, %v5062
        %v5094 = vadd.f32 %v5093, %v5063
        %v5095 = vadd.f32 %v5094, %v5064
        %v5096 = vadd.f32 %v5095, %v5065
        %v5097 = vadd.f32 %v5096, %v5066
        %v5098 = vadd.f32 %v5097, %v5067
        %v5099 = vadd.f32 %v5098, %v5068
        %v5100 = vadd.f32 %v5099, %v5069
        %v5101 = vadd.f32 %v5100, %v5070
        %v5102 = vadd.f32 %v5101, %v5071
        %v5103 = vadd.f32 %v5102, %v5072
        %v5104 = vadd.f32 %v5103, %v5073
        %v5105 = vadd.f32 %v5104, %v5074
        %v5106 = vadd.f32 %v5105, %v5075
        %v5107 = vadd.f32 %v5106, %v5076
        %v5108 = vadd.f32 %v5107, %v5077
        %v5109 = vadd.f32 %v5108, %v5078
        %v5110 = vadd.f32 %v5109, %v5079
        %v5111 = vadd.f32 %v5110, %v5080
        %v5112 = vadd.f32 %v5111, %v5081
        %v5113 = vadd.f32 %v5112, %v5082
        %v5114 = vadd.f32 %v5113, %v5083
        %v5115 = vadd.f32 %v5114, %v5084
        %v5116 = vadd.f32 %v5115, %v5085
        %v5117 = vadd.f32 %v5116, %v5086
        %v5118 = vadd.f32 %v5117, %v5087
        %v5119 = vadd.f32 %v5118, %v5088
        %v5120 = vadd.f32 %v5119, %v5089
        %v5121 = vadd.f32 %v5120, %v5090
        %v5122 = vadd.f32 %v5121, %v5091
        %v5123 = vadd.f32 %v5122, %v5092
        %v5124 = vrot.slane %v5123, 4
        %v5125 = vadd.f32 %v5123, %v5124
        %v5126 = vrot.slane %v5125, 2
        %v5127 = vadd.f32 %v5125, %v5126
        %v5128 = vrot.slane %v5127, 1
        %v5129 = vadd.f32 %v5127, %v5128
        %v5130 = vmul.f32 %v5061, %v5061
        %v5131 = vmul.f32 %v5062, %v5062
        %v5132 = vmul.f32 %v5063, %v5063
        %v5133 = vmul.f32 %v5064, %v5064
        %v5134 = vmul.f32 %v5065, %v5065
        %v5135 = vmul.f32 %v5066, %v5066
        %v5136 = vmul.f32 %v5067, %v5067
        %v5137 = vmul.f32 %v5068, %v5068
        %v5138 = vmul.f32 %v5069, %v5069
        %v5139 = vmul.f32 %v5070, %v5070
        %v5140 = vmul.f32 %v5071, %v5071
        %v5141 = vmul.f32 %v5072, %v5072
        %v5142 = vmul.f32 %v5073, %v5073
        %v5143 = vmul.f32 %v5074, %v5074
        %v5144 = vmul.f32 %v5075, %v5075
        %v5145 = vmul.f32 %v5076, %v5076
        %v5146 = vmul.f32 %v5077, %v5077
        %v5147 = vmul.f32 %v5078, %v5078
        %v5148 = vmul.f32 %v5079, %v5079
        %v5149 = vmul.f32 %v5080, %v5080
        %v5150 = vmul.f32 %v5081, %v5081
        %v5151 = vmul.f32 %v5082, %v5082
        %v5152 = vmul.f32 %v5083, %v5083
        %v5153 = vmul.f32 %v5084, %v5084
        %v5154 = vmul.f32 %v5085, %v5085
        %v5155 = vmul.f32 %v5086, %v5086
        %v5156 = vmul.f32 %v5087, %v5087
        %v5157 = vmul.f32 %v5088, %v5088
        %v5158 = vmul.f32 %v5089, %v5089
        %v5159 = vmul.f32 %v5090, %v5090
        %v5160 = vmul.f32 %v5091, %v5091
        %v5161 = vmul.f32 %v5092, %v5092
        %v5162 = vadd.f32 %v5130, %v5131
        %v5163 = vadd.f32 %v5162, %v5132
        %v5164 = vadd.f32 %v5163, %v5133
        %v5165 = vadd.f32 %v5164, %v5134
        %v5166 = vadd.f32 %v5165, %v5135
        %v5167 = vadd.f32 %v5166, %v5136
        %v5168 = vadd.f32 %v5167, %v5137
        %v5169 = vadd.f32 %v5168, %v5138
        %v5170 = vadd.f32 %v5169, %v5139
        %v5171 = vadd.f32 %v5170, %v5140
        %v5172 = vadd.f32 %v5171, %v5141
        %v5173 = vadd.f32 %v5172, %v5142
        %v5174 = vadd.f32 %v5173, %v5143
        %v5175 = vadd.f32 %v5174, %v5144
        %v5176 = vadd.f32 %v5175, %v5145
        %v5177 = vadd.f32 %v5176, %v5146
        %v5178 = vadd.f32 %v5177, %v5147
        %v5179 = vadd.f32 %v5178, %v5148
        %v5180 = vadd.f32 %v5179, %v5149
        %v5181 = vadd.f32 %v5180, %v5150
        %v5182 = vadd.f32 %v5181, %v5151
        %v5183 = vadd.f32 %v5182, %v5152
        %v5184 = vadd.f32 %v5183, %v5153
        %v5185 = vadd.f32 %v5184, %v5154
        %v5186 = vadd.f32 %v5185, %v5155
        %v5187 = vadd.f32 %v5186, %v5156
        %v5188 = vadd.f32 %v5187, %v5157
        %v5189 = vadd.f32 %v5188, %v5158
        %v5190 = vadd.f32 %v5189, %v5159
        %v5191 = vadd.f32 %v5190, %v5160
        %v5192 = vadd.f32 %v5191, %v5161
        %v5193 = vrot.slane %v5192, 4
        %v5194 = vadd.f32 %v5192, %v5193
        %v5195 = vrot.slane %v5194, 2
        %v5196 = vadd.f32 %v5194, %v5195
        %v5197 = vrot.slane %v5196, 1
        %v5198 = vadd.f32 %v5196, %v5197
        %vm5199 = vcmask 1040384
        %v5200 = vsel %vm5199, %v5129, %v5198
        %vm5201 = vcmask 1041408
        %v5202 = vsel %vm5201, %v5200, 0.0
        %5203 = vst [vmem:[%s174] sm:$0xff] %v5202
        %s5204 = sand.u32 %s76, 1
        %s5205 = scalar_lea.sflag [#allocation3], %s5204
        %s5206 = sand.u32 %s76, 1
        %s5207 = smul.addr %s5206, 256
        %s5208 = scalar_lea.vmem [#allocation2], %s5207
        %s5209 = sand.u32 %s102, 1
        %s5210 = scalar_lea.sflag [#allocation5], %s5209
        %s5211 = sand.u32 %s102, 1
        %s5212 = smul.addr %s5211, 8
        %s5213 = scalar_lea.vmem [#allocation4], %s5212
        // Predicated region
        $region29: #{tpu_custom_call.1} parent=27 // pred_check
          %p5214 = pneg %p86
        $region30: #{tpu_custom_call.1} parent=27 // pred_check_branch
          %5216 = sbr.rel (%p5214) target = $region32
        $region31: #{tpu_custom_call.1} parent=27 // pred_region
          %5218 = vsyncadd %s5205, 0
          %s5219 = smul.addr %s21, 32
          %s5220 = smul.addr %s5219, 8
          %s5221 = scalar_lea.hbm %s2, %s5220
          %s5222 = sshll.u32 %s5208, 4
          %s5223 = int_to_ptr.vmem [resolvable:$true] %s5222
          %s5224 = sshll.u32 %s5221, 4
          %s5225 = int_to_ptr.hbm [resolvable:$true] %s5224
          %5230 = dma.vmem_to_hbm [thread:$0]  %s5223, 4096, %s5225, %s5205, 128, 128, 8
        $region32: #{tpu_custom_call.1} parent=27 // pred_fallthru
          _
        // Predicated region
        $region33: #{tpu_custom_call.1} parent=27 // pred_check
          %p5231 = pneg %p112
        $region34: #{tpu_custom_call.1} parent=27 // pred_check_branch
          %5233 = sbr.rel (%p5231) target = $region36
        $region35: #{tpu_custom_call.1} parent=27 // pred_region
          %5235 = vsyncadd %s5210, 0
          %s5236 = smul.addr %s21, 8
          %s5237 = scalar_lea.hbm %s3, %s5236
          %s5239 = sshll.u32 %s5213, 4
          %s5240 = int_to_ptr.vmem [resolvable:$true] %s5239
          %s5241 = sshll.u32 %s5237, 4
          %s5242 = int_to_ptr.hbm [resolvable:$true] %s5241
          %5244 = dma.vmem_to_hbm [thread:$0]  %s5240, 128, %s5242, %s5210
        $region36: #{tpu_custom_call.1} parent=27 // pred_fallthru
          _
      $region28: #{tpu_custom_call.1} parent=5 // pred_fallthru
        _
      %p5245 = scmp.le.s32.totalorder 2, %s16
      // Predicated region
      $region37: #{tpu_custom_call.1} parent=5 // pred_check
        %p5246 = pneg %p5245
      $region38: #{tpu_custom_call.1} parent=5 // pred_check_branch
        %5248 = sbr.rel (%p5246) target = $region40
      $region39: #{tpu_custom_call.1} parent=5 // pred_region
        %s5249 = ssub.s32 %s16, 2
        // Predicated region
        $region41: #{tpu_custom_call.1} parent=39 // pred_check
          %p5250 = pneg %p92
        $region42: #{tpu_custom_call.1} parent=39 // pred_check_branch
          %5252 = sbr.rel (%p5250) target = $region44
        $region43: #{tpu_custom_call.1} parent=39 // pred_region
          %s5253 = sand.u32 %s77, 1
          %s5254 = scalar_lea.sflag [#allocation3], %s5253
          %s5255 = sand.u32 %s77, 1
          %s5256 = smul.addr %s5255, 256
          %s5257 = scalar_lea.vmem [#allocation2], %s5256
          %5259 = dma.done %s5254, 4096
        $region44: #{tpu_custom_call.1} parent=39 // pred_fallthru
          _
        // Predicated region
        $region45: #{tpu_custom_call.1} parent=39 // pred_check
          %p5260 = pneg %p118
        $region46: #{tpu_custom_call.1} parent=39 // pred_check_branch
          %5262 = sbr.rel (%p5260) target = $region48
        $region47: #{tpu_custom_call.1} parent=39 // pred_region
          %s5263 = sand.u32 %s103, 1
          %s5264 = scalar_lea.sflag [#allocation5], %s5263
          %s5265 = sand.u32 %s103, 1
          %s5266 = smul.addr %s5265, 8
          %s5267 = scalar_lea.vmem [#allocation4], %s5266
          %5269 = dma.done %s5264, 128
        $region48: #{tpu_custom_call.1} parent=39 // pred_fallthru
          _
      $region40: #{tpu_custom_call.1} parent=5 // pred_fallthru
        _
    $region6: #{tpu_custom_call.1} parent=1 // loop_footer
      %s20 = sadd.s32 1, %s16
    $region7: #{tpu_custom_call.1} parent=1 // loop_footer_branch
      %15 = sbr.rel target = $region3
    $region8: #{tpu_custom_call.1} parent=1 // loop_exit
      _
    %5270 = vsyncpa [#allocation3], 1
    %s5271 = scalar_lea.sflag [#allocation3], 1
    %5272 = vsyncpa %s5271, 1
    %5273 = vsyncpa [#allocation5], 1
    %s5274 = scalar_lea.sflag [#allocation5], 1
    %5275 = vsyncpa %s5274, 1

</llo_original>
